<compile_context>
chip_gen: v7x
topology: tpu7x:2x2x1
jax: 0.10.0
libtpu: 0.0.40
codegen_flags: <defaults>
</compile_context>

<pallas_src>
import numpy as np
import jax
import jax.numpy as jnp
from jax.experimental import pallas as pl
from jax.experimental.pallas import tpu as pltpu

# ----------------------------- config (cfg.N etc.) ---------------------------
B, N = 2, 8                      # batch, number of video clips / time steps
C, HIMG, WIMG = 4, 16, 16        # per-frame NCHW dims
D_VID = 512                      # video backbone feature dim
D_AUD = 256                      # audio feature dim (D_VID + D_AUD = 768)
T_AUD = 32                       # audio time steps before slicing
D_CAT = 512                      # cat_linear output dim
H_LSTM = 64                      # LSTM hidden size (linear2 input dim)
H_PAD = 128                      # lane-tile-padded hidden width per gate
N_OUT = 5                        # linear2 output dim


def _vmem_spec():
    return pl.BlockSpec(memory_space=pltpu.MemorySpace.VMEM)


def _audio_slice_matrix():
    """Constant (N*B, B*T) 0/1 matrix so that sel @ audio_flat implements
    slice_audio_features (chunk sums, last chunk takes the remainder), with
    output rows in time-major-flat order (row = n*B + b)."""
    t_len = T_AUD // N
    sel = np.zeros((N * B, B * T_AUD), np.float32)
    for b in range(B):
        for n in range(N):
            stop = T_AUD if n == N - 1 else (n + 1) * t_len
            sel[n * B + b, b * T_AUD + n * t_len: b * T_AUD + stop] = 1.0
    return jnp.asarray(sel)


def _pad_gate_cols(w):
    """(4, in, H) gate-stacked weight -> (in, 4*H_PAD) fused [i|f|g|o] layout
    where gate g lives in columns [g*H_PAD, g*H_PAD + H_LSTM); the remaining
    columns of each gate block are zero (keeps pad lanes exactly zero)."""
    in_dim = w.shape[1]
    out = jnp.zeros((in_dim, 4 * H_PAD), w.dtype)
    for g in range(4):
        out = out.at[:, g * H_PAD:g * H_PAD + H_LSTM].set(w[g])
    return out


# ----------------------- fused forward-pass kernel ---------------------------
def bio_lstm_fused_kernel(xv_ref, aud_ref, sel_ref,
                          wvid_ref, bvid_ref,
                          wcv_ref, wca_ref, bcat_ref,
                          wih_ref, whh_ref, bgate_ref,
                          w2_ref, b2_ref,
                          out_ref):
    f32 = jnp.float32
    bf16 = jnp.bfloat16

    # ---- hoisted time-independent projections, batched over M = N*B = 16 ----
    # video backbone stand-in (flatten + Linear): bf16 x bf16 MXU, f32 acc.
    vfeat = (jnp.dot(xv_ref[...], wvid_ref[...], preferred_element_type=f32)
             + bvid_ref[...])                                   # (N*B, 512) f32

    # slice_audio_features as one 0/1 selection matmul: (N*B, B*T) @ (B*T, 256)
    afeat = jnp.dot(sel_ref[...], aud_ref[...],
                    preferred_element_type=f32)                 # (N*B, 256) f32

    # cat_linear on [video | audio]; split weights avoid the concat.
    xcat = (jnp.dot(vfeat.astype(bf16), wcv_ref[...], preferred_element_type=f32)
            + jnp.dot(afeat.astype(bf16), wca_ref[...], preferred_element_type=f32)
            + bcat_ref[...])                                    # (N*B, 512) f32

    # LSTM input-gate projection for ALL timesteps; fused [i|f|g|o] gates,
    # each gate padded to 128 lanes (padded columns are exactly 0).
    xg = (jnp.dot(xcat.astype(bf16), wih_ref[...], preferred_element_type=f32)
          + bgate_ref[...])                                     # (N*B, 4*128) f32

    # --------- serial recurrence: only h @ Whh_pad + gates per step ----------
    whh = whh_ref[...]                       # (128, 4*128) bf16, hoisted load
    h = jnp.zeros((B, H_PAD), f32)           # cols [64:128) stay exactly 0
    c = jnp.zeros((B, H_PAD), f32)
    h_steps = []
    for t in range(N):                       # static unroll; rows t*B:(t+1)*B
        gates = xg[t * B:(t + 1) * B, :] + jnp.dot(
            h.astype(bf16), whh, preferred_element_type=f32)    # (B, 4*128) f32
        sg = jax.nn.sigmoid(gates)                              # one EUP pass
        g_g = jnp.tanh(gates[:, 2 * H_PAD:3 * H_PAD])           # lane-aligned
        i_g = sg[:, 0 * H_PAD:1 * H_PAD]                        # free views
        f_g = sg[:, 1 * H_PAD:2 * H_PAD]
        o_g = sg[:, 3 * H_PAD:4 * H_PAD]
        c = f_g * c + i_g * g_g              # pad half: 0.5*0 + 0.5*0 = 0
        h = o_g * jnp.tanh(c)                # pad half: 0.5*tanh(0)   = 0
        h_steps.append(h)

    # ---- hoisted head: (N*B, 128) @ (128, 5) + sigmoid + mean over N --------
    h_all = jnp.concatenate(h_steps, axis=0)                    # (N*B, 128) f32
    probs = jax.nn.sigmoid(
        jnp.dot(h_all, w2_ref[...], preferred_element_type=f32)
        + b2_ref[...])                                          # (N*B, 5)
    acc = probs[0:B, :]
    for t in range(1, N):
        acc = acc + probs[t * B:(t + 1) * B, :]
    out_ref[...] = acc * (1.0 / N)                              # sum(dim=1)/cfg.N


# ------------------------------ full forward ---------------------------------
def bio_model_lstm_forward(video_input, audio_feat, params):
    (wvid, bvid, wcv, wca, bcat, wih, whh, blstm, w2, b2) = params
    bf16 = jnp.bfloat16

    # parallel_extract flatten; time-major-flat (row = t*B + b) so each LSTM
    # step reads a contiguous static row slice inside the kernel.
    xv = jnp.transpose(video_input, (1, 0, 2, 3, 4)).reshape(
        N * B, C * HIMG * WIMG).astype(bf16)                    # (N*B, CHW) bf16
    aud = audio_feat.reshape(B * T_AUD, D_AUD).astype(bf16)     # (B*T, 256) bf16
    sel = _audio_slice_matrix().astype(bf16)                    # 0/1, exact in bf16

    # gate fusion + 128-lane padding (gate g at cols [g*128, g*128+64)).
    wih_p = _pad_gate_cols(wih).astype(bf16)                    # (512, 512) bf16
    whh_p = jnp.zeros((H_PAD, 4 * H_PAD), jnp.float32).at[:H_LSTM].set(
        _pad_gate_cols(whh)).astype(bf16)                       # (128, 512) bf16
    bgate = _pad_gate_cols(blstm)                               # (1, 512) f32
    w2_p = jnp.zeros((H_PAD, N_OUT), jnp.float32).at[:H_LSTM].set(w2)  # (128, 5)

    return pl.pallas_call(
        bio_lstm_fused_kernel,
        out_shape=jax.ShapeDtypeStruct((B, N_OUT), jnp.float32),
        in_specs=[_vmem_spec()] * 13,
        out_specs=_vmem_spec(),
    )(xv, aud, sel,
      wvid.astype(bf16), bvid,
      wcv.astype(bf16), wca.astype(bf16), bcat,
      wih_p, whh_p, bgate,
      w2_p, b2)


# ------------------------------ pure-JAX reference ---------------------------
def reference_forward(video_input, audio_feat, params):
    (wvid, bvid, wcv, wca, bcat, wih, whh, blstm, w2, b2) = params
    x_flat = video_input.reshape(B * N, -1)
    vfeat = (x_flat @ wvid + bvid).reshape(B, N, D_VID)
    t_len = T_AUD // N
    chunks = []
    for t in range(N):
        stop = T_AUD if t == N - 1 else (t + 1) * t_len
        chunks.append(jnp.sum(audio_feat[:, t * t_len:stop, :], axis=1,
                              keepdims=True))
    afeat = jnp.concatenate(chunks, axis=1)
    fusion = jnp.concatenate([vfeat, afeat], axis=-1)
    wcat = jnp.concatenate([wcv, wca], axis=0)             # (768, 512)
    x = fusion @ wcat + bcat                               # (B, N, 512)
    h = jnp.zeros((B, H_LSTM), jnp.float32)
    c = jnp.zeros((B, H_LSTM), jnp.float32)
    acc = jnp.zeros((B, N_OUT), jnp.float32)
    for t in range(N):
        xt = x[:, t, :]
        i = jax.nn.sigmoid(xt @ wih[0] + h @ whh[0] + blstm[0])
        f = jax.nn.sigmoid(xt @ wih[1] + h @ whh[1] + blstm[1])
        g = jnp.tanh(xt @ wih[2] + h @ whh[2] + blstm[2])
        o = jax.nn.sigmoid(xt @ wih[3] + h @ whh[3] + blstm[3])
        c = f * c + i * g
        h = o * jnp.tanh(c)
        acc = acc + jax.nn.sigmoid(h @ w2 + b2)
    return acc / float(N)


# ------------------------------ param init -----------------------------------
def init_params(key):
    ks = jax.random.split(key, 10)
    s = 0.05
    wvid = jax.random.normal(ks[0], (C * HIMG * WIMG, D_VID), jnp.float32) * s
    bvid = jax.random.normal(ks[1], (1, D_VID), jnp.float32) * s
    wcv = jax.random.normal(ks[2], (D_VID, D_CAT), jnp.float32) * s
    wca = jax.random.normal(ks[3], (D_AUD, D_CAT), jnp.float32) * s
    bcat = jax.random.normal(ks[4], (1, D_CAT), jnp.float32) * s
    wih = jax.random.normal(ks[5], (4, D_CAT, H_LSTM), jnp.float32) * s
    whh = jax.random.normal(ks[6], (4, H_LSTM, H_LSTM), jnp.float32) * s
    blstm = jax.random.normal(ks[7], (4, 1, H_LSTM), jnp.float32) * s
    # linear2: init_model -> weight ~ N(0.1, 1) (scaled down), bias zeros
    w2 = 0.1 + jax.random.normal(ks[8], (H_LSTM, N_OUT), jnp.float32) * s
    b2 = jnp.zeros((1, N_OUT), jnp.float32)
    return (wvid, bvid, wcv, wca, bcat, wih, whh, blstm, w2, b2)


if __name__ == "__main__":
    key = jax.random.PRNGKey(0)
    k_v, k_a, k_p = jax.random.split(key, 3)
    video_input = jax.random.normal(k_v, (B, N, C, HIMG, WIMG), jnp.float32)
    audio_feat = jax.random.normal(k_a, (B, T_AUD, D_AUD), jnp.float32)
    params = init_params(k_p)

    out = jax.jit(bio_model_lstm_forward)(video_input, audio_feat, params)
    out = jax.block_until_ready(out)

    ref = reference_forward(video_input, audio_feat, params)
    assert out.shape == (B, N_OUT)
    # bf16 MXU operands -> loosened parity vs. the pure-f32 reference.
    assert jnp.allclose(out, ref, rtol=5e-2, atol=5e-3), (out, ref)
    print("KERNEL_OK")
</pallas_src>

<mosaic_0001>
module attributes {stable_mosaic.version = 11 : i64} {
  func.func @bio_lstm_fused_kernel(%arg0: memref<16x1024xbf16, #tpu.memory_space<vmem>>, %arg1: memref<64x256xbf16, #tpu.memory_space<vmem>>, %arg2: memref<16x64xbf16, #tpu.memory_space<vmem>>, %arg3: memref<1024x512xbf16, #tpu.memory_space<vmem>>, %arg4: memref<1x512xf32, #tpu.memory_space<vmem>>, %arg5: memref<512x512xbf16, #tpu.memory_space<vmem>>, %arg6: memref<256x512xbf16, #tpu.memory_space<vmem>>, %arg7: memref<1x512xf32, #tpu.memory_space<vmem>>, %arg8: memref<512x512xbf16, #tpu.memory_space<vmem>>, %arg9: memref<128x512xbf16, #tpu.memory_space<vmem>>, %arg10: memref<1x512xf32, #tpu.memory_space<vmem>>, %arg11: memref<128x5xf32, #tpu.memory_space<vmem>>, %arg12: memref<1x5xf32, #tpu.memory_space<vmem>>, %arg13: memref<2x5xf32, #tpu.memory_space<vmem>>) attributes {dimension_semantics = [], scalar_prefetch = 0 : i64, scratch_operands = 0 : i64, tpu.core_type = #tpu.core_type<tc>} {
    %c0 = arith.constant 0 : index
    %c0_0 = arith.constant 0 : index
    %0 = vector.load %arg0[%c0, %c0_0] : memref<16x1024xbf16, #tpu.memory_space<vmem>>, vector<16x1024xbf16>
    %c0_1 = arith.constant 0 : index
    %c0_2 = arith.constant 0 : index
    %1 = vector.load %arg3[%c0_1, %c0_2] : memref<1024x512xbf16, #tpu.memory_space<vmem>>, vector<1024x512xbf16>
    %cst = arith.constant dense<0.000000e+00> : vector<16x512xf32>
    %2 = tpu.matmul %0, %1, %cst {dimension_numbers = #tpu.dot_dimension_numbers<[1], [0], [0], [1], [0, 0, 1, 1], [], []>} : vector<16x1024xbf16>, vector<1024x512xbf16>, vector<16x512xf32> -> vector<16x512xf32>
    %c0_3 = arith.constant 0 : index
    %c0_4 = arith.constant 0 : index
    %3 = vector.load %arg4[%c0_3, %c0_4] : memref<1x512xf32, #tpu.memory_space<vmem>>, vector<1x512xf32>
    %4 = vector.broadcast %3 : vector<1x512xf32> to vector<16x512xf32>
    %5 = arith.addf %2, %4 : vector<16x512xf32>
    %c0_5 = arith.constant 0 : index
    %c0_6 = arith.constant 0 : index
    %6 = vector.load %arg2[%c0_5, %c0_6] : memref<16x64xbf16, #tpu.memory_space<vmem>>, vector<16x64xbf16>
    %c0_7 = arith.constant 0 : index
    %c0_8 = arith.constant 0 : index
    %7 = vector.load %arg1[%c0_7, %c0_8] : memref<64x256xbf16, #tpu.memory_space<vmem>>, vector<64x256xbf16>
    %cst_9 = arith.constant dense<0.000000e+00> : vector<16x256xf32>
    %8 = tpu.matmul %6, %7, %cst_9 {dimension_numbers = #tpu.dot_dimension_numbers<[1], [0], [0], [1], [0, 0, 1, 1], [], []>} : vector<16x64xbf16>, vector<64x256xbf16>, vector<16x256xf32> -> vector<16x256xf32>
    %9 = arith.truncf %5 : vector<16x512xf32> to vector<16x512xbf16>
    %c0_10 = arith.constant 0 : index
    %c0_11 = arith.constant 0 : index
    %10 = vector.load %arg5[%c0_10, %c0_11] : memref<512x512xbf16, #tpu.memory_space<vmem>>, vector<512x512xbf16>
    %cst_12 = arith.constant dense<0.000000e+00> : vector<16x512xf32>
    %11 = tpu.matmul %9, %10, %cst_12 {dimension_numbers = #tpu.dot_dimension_numbers<[1], [0], [0], [1], [0, 0, 1, 1], [], []>} : vector<16x512xbf16>, vector<512x512xbf16>, vector<16x512xf32> -> vector<16x512xf32>
    %12 = arith.truncf %8 : vector<16x256xf32> to vector<16x256xbf16>
    %c0_13 = arith.constant 0 : index
    %c0_14 = arith.constant 0 : index
    %13 = vector.load %arg6[%c0_13, %c0_14] : memref<256x512xbf16, #tpu.memory_space<vmem>>, vector<256x512xbf16>
    %cst_15 = arith.constant dense<0.000000e+00> : vector<16x512xf32>
    %14 = tpu.matmul %12, %13, %cst_15 {dimension_numbers = #tpu.dot_dimension_numbers<[1], [0], [0], [1], [0, 0, 1, 1], [], []>} : vector<16x256xbf16>, vector<256x512xbf16>, vector<16x512xf32> -> vector<16x512xf32>
    %15 = arith.addf %11, %14 : vector<16x512xf32>
    %c0_16 = arith.constant 0 : index
    %c0_17 = arith.constant 0 : index
    %16 = vector.load %arg7[%c0_16, %c0_17] : memref<1x512xf32, #tpu.memory_space<vmem>>, vector<1x512xf32>
    %17 = vector.broadcast %16 : vector<1x512xf32> to vector<16x512xf32>
    %18 = arith.addf %15, %17 : vector<16x512xf32>
    %19 = arith.truncf %18 : vector<16x512xf32> to vector<16x512xbf16>
    %c0_18 = arith.constant 0 : index
    %c0_19 = arith.constant 0 : index
    %20 = vector.load %arg8[%c0_18, %c0_19] : memref<512x512xbf16, #tpu.memory_space<vmem>>, vector<512x512xbf16>
    %cst_20 = arith.constant dense<0.000000e+00> : vector<16x512xf32>
    %21 = tpu.matmul %19, %20, %cst_20 {dimension_numbers = #tpu.dot_dimension_numbers<[1], [0], [0], [1], [0, 0, 1, 1], [], []>} : vector<16x512xbf16>, vector<512x512xbf16>, vector<16x512xf32> -> vector<16x512xf32>
    %c0_21 = arith.constant 0 : index
    %c0_22 = arith.constant 0 : index
    %22 = vector.load %arg10[%c0_21, %c0_22] : memref<1x512xf32, #tpu.memory_space<vmem>>, vector<1x512xf32>
    %23 = vector.broadcast %22 : vector<1x512xf32> to vector<16x512xf32>
    %24 = arith.addf %21, %23 : vector<16x512xf32>
    %c0_23 = arith.constant 0 : index
    %c0_24 = arith.constant 0 : index
    %25 = vector.load %arg9[%c0_23, %c0_24] : memref<128x512xbf16, #tpu.memory_space<vmem>>, vector<128x512xbf16>
    %cst_25 = arith.constant 0.000000e+00 : f32
    %26 = vector.broadcast %cst_25 : f32 to vector<2x128xf32>
    %cst_26 = arith.constant 0.000000e+00 : f32
    %27 = vector.broadcast %cst_26 : f32 to vector<2x128xf32>
    %28 = vector.extract_strided_slice %24 {offsets = [0, 0], sizes = [2, 512], strides = [1, 1]} : vector<16x512xf32> to vector<2x512xf32>
    %29 = arith.truncf %26 : vector<2x128xf32> to vector<2x128xbf16>
    %cst_27 = arith.constant dense<0.000000e+00> : vector<2x512xf32>
    %30 = tpu.matmul %29, %25, %cst_27 {dimension_numbers = #tpu.dot_dimension_numbers<[1], [0], [0], [1], [0, 0, 1, 1], [], []>} : vector<2x128xbf16>, vector<128x512xbf16>, vector<2x512xf32> -> vector<2x512xf32>
    %31 = arith.addf %28, %30 : vector<2x512xf32>
    %32 = arith.negf %31 : vector<2x512xf32>
    %33 = math.exp %32 : vector<2x512xf32>
    %cst_28 = arith.constant 1.000000e+00 : f32
    %34 = vector.broadcast %cst_28 : f32 to vector<2x512xf32>
    %35 = arith.addf %34, %33 : vector<2x512xf32>
    %36 = arith.divf %34, %35 : vector<2x512xf32>
    %37 = vector.extract_strided_slice %31 {offsets = [0, 256], sizes = [2, 128], strides = [1, 1]} : vector<2x512xf32> to vector<2x128xf32>
    %38 = math.tanh %37 : vector<2x128xf32>
    %39 = vector.extract_strided_slice %36 {offsets = [0, 0], sizes = [2, 128], strides = [1, 1]} : vector<2x512xf32> to vector<2x128xf32>
    %40 = vector.extract_strided_slice %36 {offsets = [0, 128], sizes = [2, 128], strides = [1, 1]} : vector<2x512xf32> to vector<2x128xf32>
    %41 = vector.extract_strided_slice %36 {offsets = [0, 384], sizes = [2, 128], strides = [1, 1]} : vector<2x512xf32> to vector<2x128xf32>
    %42 = arith.mulf %40, %27 : vector<2x128xf32>
    %43 = arith.mulf %39, %38 : vector<2x128xf32>
    %44 = arith.addf %42, %43 : vector<2x128xf32>
    %45 = math.tanh %44 : vector<2x128xf32>
    %46 = arith.mulf %41, %45 : vector<2x128xf32>
    %47 = vector.extract_strided_slice %24 {offsets = [2, 0], sizes = [2, 512], strides = [1, 1]} : vector<16x512xf32> to vector<2x512xf32>
    %48 = arith.truncf %46 : vector<2x128xf32> to vector<2x128xbf16>
    %cst_29 = arith.constant dense<0.000000e+00> : vector<2x512xf32>
    %49 = tpu.matmul %48, %25, %cst_29 {dimension_numbers = #tpu.dot_dimension_numbers<[1], [0], [0], [1], [0, 0, 1, 1], [], []>} : vector<2x128xbf16>, vector<128x512xbf16>, vector<2x512xf32> -> vector<2x512xf32>
    %50 = arith.addf %47, %49 : vector<2x512xf32>
    %51 = arith.negf %50 : vector<2x512xf32>
    %52 = math.exp %51 : vector<2x512xf32>
    %cst_30 = arith.constant 1.000000e+00 : f32
    %53 = vector.broadcast %cst_30 : f32 to vector<2x512xf32>
    %54 = arith.addf %53, %52 : vector<2x512xf32>
    %55 = arith.divf %53, %54 : vector<2x512xf32>
    %56 = vector.extract_strided_slice %50 {offsets = [0, 256], sizes = [2, 128], strides = [1, 1]} : vector<2x512xf32> to vector<2x128xf32>
    %57 = math.tanh %56 : vector<2x128xf32>
    %58 = vector.extract_strided_slice %55 {offsets = [0, 0], sizes = [2, 128], strides = [1, 1]} : vector<2x512xf32> to vector<2x128xf32>
    %59 = vector.extract_strided_slice %55 {offsets = [0, 128], sizes = [2, 128], strides = [1, 1]} : vector<2x512xf32> to vector<2x128xf32>
    %60 = vector.extract_strided_slice %55 {offsets = [0, 384], sizes = [2, 128], strides = [1, 1]} : vector<2x512xf32> to vector<2x128xf32>
    %61 = arith.mulf %59, %44 : vector<2x128xf32>
    %62 = arith.mulf %58, %57 : vector<2x128xf32>
    %63 = arith.addf %61, %62 : vector<2x128xf32>
    %64 = math.tanh %63 : vector<2x128xf32>
    %65 = arith.mulf %60, %64 : vector<2x128xf32>
    %66 = vector.extract_strided_slice %24 {offsets = [4, 0], sizes = [2, 512], strides = [1, 1]} : vector<16x512xf32> to vector<2x512xf32>
    %67 = arith.truncf %65 : vector<2x128xf32> to vector<2x128xbf16>
    %cst_31 = arith.constant dense<0.000000e+00> : vector<2x512xf32>
    %68 = tpu.matmul %67, %25, %cst_31 {dimension_numbers = #tpu.dot_dimension_numbers<[1], [0], [0], [1], [0, 0, 1, 1], [], []>} : vector<2x128xbf16>, vector<128x512xbf16>, vector<2x512xf32> -> vector<2x512xf32>
    %69 = arith.addf %66, %68 : vector<2x512xf32>
    %70 = arith.negf %69 : vector<2x512xf32>
    %71 = math.exp %70 : vector<2x512xf32>
    %cst_32 = arith.constant 1.000000e+00 : f32
    %72 = vector.broadcast %cst_32 : f32 to vector<2x512xf32>
    %73 = arith.addf %72, %71 : vector<2x512xf32>
    %74 = arith.divf %72, %73 : vector<2x512xf32>
    %75 = vector.extract_strided_slice %69 {offsets = [0, 256], sizes = [2, 128], strides = [1, 1]} : vector<2x512xf32> to vector<2x128xf32>
    %76 = math.tanh %75 : vector<2x128xf32>
    %77 = vector.extract_strided_slice %74 {offsets = [0, 0], sizes = [2, 128], strides = [1, 1]} : vector<2x512xf32> to vector<2x128xf32>
    %78 = vector.extract_strided_slice %74 {offsets = [0, 128], sizes = [2, 128], strides = [1, 1]} : vector<2x512xf32> to vector<2x128xf32>
    %79 = vector.extract_strided_slice %74 {offsets = [0, 384], sizes = [2, 128], strides = [1, 1]} : vector<2x512xf32> to vector<2x128xf32>
    %80 = arith.mulf %78, %63 : vector<2x128xf32>
    %81 = arith.mulf %77, %76 : vector<2x128xf32>
    %82 = arith.addf %80, %81 : vector<2x128xf32>
    %83 = math.tanh %82 : vector<2x128xf32>
    %84 = arith.mulf %79, %83 : vector<2x128xf32>
    %85 = vector.extract_strided_slice %24 {offsets = [6, 0], sizes = [2, 512], strides = [1, 1]} : vector<16x512xf32> to vector<2x512xf32>
    %86 = arith.truncf %84 : vector<2x128xf32> to vector<2x128xbf16>
    %cst_33 = arith.constant dense<0.000000e+00> : vector<2x512xf32>
    %87 = tpu.matmul %86, %25, %cst_33 {dimension_numbers = #tpu.dot_dimension_numbers<[1], [0], [0], [1], [0, 0, 1, 1], [], []>} : vector<2x128xbf16>, vector<128x512xbf16>, vector<2x512xf32> -> vector<2x512xf32>
    %88 = arith.addf %85, %87 : vector<2x512xf32>
    %89 = arith.negf %88 : vector<2x512xf32>
    %90 = math.exp %89 : vector<2x512xf32>
    %cst_34 = arith.constant 1.000000e+00 : f32
    %91 = vector.broadcast %cst_34 : f32 to vector<2x512xf32>
    %92 = arith.addf %91, %90 : vector<2x512xf32>
    %93 = arith.divf %91, %92 : vector<2x512xf32>
    %94 = vector.extract_strided_slice %88 {offsets = [0, 256], sizes = [2, 128], strides = [1, 1]} : vector<2x512xf32> to vector<2x128xf32>
    %95 = math.tanh %94 : vector<2x128xf32>
    %96 = vector.extract_strided_slice %93 {offsets = [0, 0], sizes = [2, 128], strides = [1, 1]} : vector<2x512xf32> to vector<2x128xf32>
    %97 = vector.extract_strided_slice %93 {offsets = [0, 128], sizes = [2, 128], strides = [1, 1]} : vector<2x512xf32> to vector<2x128xf32>
    %98 = vector.extract_strided_slice %93 {offsets = [0, 384], sizes = [2, 128], strides = [1, 1]} : vector<2x512xf32> to vector<2x128xf32>
    %99 = arith.mulf %97, %82 : vector<2x128xf32>
    %100 = arith.mulf %96, %95 : vector<2x128xf32>
    %101 = arith.addf %99, %100 : vector<2x128xf32>
    %102 = math.tanh %101 : vector<2x128xf32>
    %103 = arith.mulf %98, %102 : vector<2x128xf32>
    %104 = vector.extract_strided_slice %24 {offsets = [8, 0], sizes = [2, 512], strides = [1, 1]} : vector<16x512xf32> to vector<2x512xf32>
    %105 = arith.truncf %103 : vector<2x128xf32> to vector<2x128xbf16>
    %cst_35 = arith.constant dense<0.000000e+00> : vector<2x512xf32>
    %106 = tpu.matmul %105, %25, %cst_35 {dimension_numbers = #tpu.dot_dimension_numbers<[1], [0], [0], [1], [0, 0, 1, 1], [], []>} : vector<2x128xbf16>, vector<128x512xbf16>, vector<2x512xf32> -> vector<2x512xf32>
    %107 = arith.addf %104, %106 : vector<2x512xf32>
    %108 = arith.negf %107 : vector<2x512xf32>
    %109 = math.exp %108 : vector<2x512xf32>
    %cst_36 = arith.constant 1.000000e+00 : f32
    %110 = vector.broadcast %cst_36 : f32 to vector<2x512xf32>
    %111 = arith.addf %110, %109 : vector<2x512xf32>
    %112 = arith.divf %110, %111 : vector<2x512xf32>
    %113 = vector.extract_strided_slice %107 {offsets = [0, 256], sizes = [2, 128], strides = [1, 1]} : vector<2x512xf32> to vector<2x128xf32>
    %114 = math.tanh %113 : vector<2x128xf32>
    %115 = vector.extract_strided_slice %112 {offsets = [0, 0], sizes = [2, 128], strides = [1, 1]} : vector<2x512xf32> to vector<2x128xf32>
    %116 = vector.extract_strided_slice %112 {offsets = [0, 128], sizes = [2, 128], strides = [1, 1]} : vector<2x512xf32> to vector<2x128xf32>
    %117 = vector.extract_strided_slice %112 {offsets = [0, 384], sizes = [2, 128], strides = [1, 1]} : vector<2x512xf32> to vector<2x128xf32>
    %118 = arith.mulf %116, %101 : vector<2x128xf32>
    %119 = arith.mulf %115, %114 : vector<2x128xf32>
    %120 = arith.addf %118, %119 : vector<2x128xf32>
    %121 = math.tanh %120 : vector<2x128xf32>
    %122 = arith.mulf %117, %121 : vector<2x128xf32>
    %123 = vector.extract_strided_slice %24 {offsets = [10, 0], sizes = [2, 512], strides = [1, 1]} : vector<16x512xf32> to vector<2x512xf32>
    %124 = arith.truncf %122 : vector<2x128xf32> to vector<2x128xbf16>
    %cst_37 = arith.constant dense<0.000000e+00> : vector<2x512xf32>
    %125 = tpu.matmul %124, %25, %cst_37 {dimension_numbers = #tpu.dot_dimension_numbers<[1], [0], [0], [1], [0, 0, 1, 1], [], []>} : vector<2x128xbf16>, vector<128x512xbf16>, vector<2x512xf32> -> vector<2x512xf32>
    %126 = arith.addf %123, %125 : vector<2x512xf32>
    %127 = arith.negf %126 : vector<2x512xf32>
    %128 = math.exp %127 : vector<2x512xf32>
    %cst_38 = arith.constant 1.000000e+00 : f32
    %129 = vector.broadcast %cst_38 : f32 to vector<2x512xf32>
    %130 = arith.addf %129, %128 : vector<2x512xf32>
    %131 = arith.divf %129, %130 : vector<2x512xf32>
    %132 = vector.extract_strided_slice %126 {offsets = [0, 256], sizes = [2, 128], strides = [1, 1]} : vector<2x512xf32> to vector<2x128xf32>
    %133 = math.tanh %132 : vector<2x128xf32>
    %134 = vector.extract_strided_slice %131 {offsets = [0, 0], sizes = [2, 128], strides = [1, 1]} : vector<2x512xf32> to vector<2x128xf32>
    %135 = vector.extract_strided_slice %131 {offsets = [0, 128], sizes = [2, 128], strides = [1, 1]} : vector<2x512xf32> to vector<2x128xf32>
    %136 = vector.extract_strided_slice %131 {offsets = [0, 384], sizes = [2, 128], strides = [1, 1]} : vector<2x512xf32> to vector<2x128xf32>
    %137 = arith.mulf %135, %120 : vector<2x128xf32>
    %138 = arith.mulf %134, %133 : vector<2x128xf32>
    %139 = arith.addf %137, %138 : vector<2x128xf32>
    %140 = math.tanh %139 : vector<2x128xf32>
    %141 = arith.mulf %136, %140 : vector<2x128xf32>
    %142 = vector.extract_strided_slice %24 {offsets = [12, 0], sizes = [2, 512], strides = [1, 1]} : vector<16x512xf32> to vector<2x512xf32>
    %143 = arith.truncf %141 : vector<2x128xf32> to vector<2x128xbf16>
    %cst_39 = arith.constant dense<0.000000e+00> : vector<2x512xf32>
    %144 = tpu.matmul %143, %25, %cst_39 {dimension_numbers = #tpu.dot_dimension_numbers<[1], [0], [0], [1], [0, 0, 1, 1], [], []>} : vector<2x128xbf16>, vector<128x512xbf16>, vector<2x512xf32> -> vector<2x512xf32>
    %145 = arith.addf %142, %144 : vector<2x512xf32>
    %146 = arith.negf %145 : vector<2x512xf32>
    %147 = math.exp %146 : vector<2x512xf32>
    %cst_40 = arith.constant 1.000000e+00 : f32
    %148 = vector.broadcast %cst_40 : f32 to vector<2x512xf32>
    %149 = arith.addf %148, %147 : vector<2x512xf32>
    %150 = arith.divf %148, %149 : vector<2x512xf32>
    %151 = vector.extract_strided_slice %145 {offsets = [0, 256], sizes = [2, 128], strides = [1, 1]} : vector<2x512xf32> to vector<2x128xf32>
    %152 = math.tanh %151 : vector<2x128xf32>
    %153 = vector.extract_strided_slice %150 {offsets = [0, 0], sizes = [2, 128], strides = [1, 1]} : vector<2x512xf32> to vector<2x128xf32>
    %154 = vector.extract_strided_slice %150 {offsets = [0, 128], sizes = [2, 128], strides = [1, 1]} : vector<2x512xf32> to vector<2x128xf32>
    %155 = vector.extract_strided_slice %150 {offsets = [0, 384], sizes = [2, 128], strides = [1, 1]} : vector<2x512xf32> to vector<2x128xf32>
    %156 = arith.mulf %154, %139 : vector<2x128xf32>
    %157 = arith.mulf %153, %152 : vector<2x128xf32>
    %158 = arith.addf %156, %157 : vector<2x128xf32>
    %159 = math.tanh %158 : vector<2x128xf32>
    %160 = arith.mulf %155, %159 : vector<2x128xf32>
    %161 = vector.extract_strided_slice %24 {offsets = [14, 0], sizes = [2, 512], strides = [1, 1]} : vector<16x512xf32> to vector<2x512xf32>
    %162 = arith.truncf %160 : vector<2x128xf32> to vector<2x128xbf16>
    %cst_41 = arith.constant dense<0.000000e+00> : vector<2x512xf32>
    %163 = tpu.matmul %162, %25, %cst_41 {dimension_numbers = #tpu.dot_dimension_numbers<[1], [0], [0], [1], [0, 0, 1, 1], [], []>} : vector<2x128xbf16>, vector<128x512xbf16>, vector<2x512xf32> -> vector<2x512xf32>
    %164 = arith.addf %161, %163 : vector<2x512xf32>
    %165 = arith.negf %164 : vector<2x512xf32>
    %166 = math.exp %165 : vector<2x512xf32>
    %cst_42 = arith.constant 1.000000e+00 : f32
    %167 = vector.broadcast %cst_42 : f32 to vector<2x512xf32>
    %168 = arith.addf %167, %166 : vector<2x512xf32>
    %169 = arith.divf %167, %168 : vector<2x512xf32>
    %170 = vector.extract_strided_slice %164 {offsets = [0, 256], sizes = [2, 128], strides = [1, 1]} : vector<2x512xf32> to vector<2x128xf32>
    %171 = math.tanh %170 : vector<2x128xf32>
    %172 = vector.extract_strided_slice %169 {offsets = [0, 0], sizes = [2, 128], strides = [1, 1]} : vector<2x512xf32> to vector<2x128xf32>
    %173 = vector.extract_strided_slice %169 {offsets = [0, 128], sizes = [2, 128], strides = [1, 1]} : vector<2x512xf32> to vector<2x128xf32>
    %174 = vector.extract_strided_slice %169 {offsets = [0, 384], sizes = [2, 128], strides = [1, 1]} : vector<2x512xf32> to vector<2x128xf32>
    %175 = arith.mulf %173, %158 : vector<2x128xf32>
    %176 = arith.mulf %172, %171 : vector<2x128xf32>
    %177 = arith.addf %175, %176 : vector<2x128xf32>
    %178 = math.tanh %177 : vector<2x128xf32>
    %179 = arith.mulf %174, %178 : vector<2x128xf32>
    %180 = tpu.concatenate %46, %65, %84, %103, %122, %141, %160, %179 in 0 : vector<2x128xf32>, vector<2x128xf32>, vector<2x128xf32>, vector<2x128xf32>, vector<2x128xf32>, vector<2x128xf32>, vector<2x128xf32>, vector<2x128xf32> -> vector<16x128xf32>
    %c0_43 = arith.constant 0 : index
    %c0_44 = arith.constant 0 : index
    %181 = vector.load %arg11[%c0_43, %c0_44] : memref<128x5xf32, #tpu.memory_space<vmem>>, vector<128x5xf32>
    %cst_45 = arith.constant dense<0.000000e+00> : vector<16x5xf32>
    %182 = tpu.matmul %180, %181, %cst_45 {dimension_numbers = #tpu.dot_dimension_numbers<[1], [0], [0], [1], [0, 0, 1, 1], [], []>} : vector<16x128xf32>, vector<128x5xf32>, vector<16x5xf32> -> vector<16x5xf32>
    %c0_46 = arith.constant 0 : index
    %c0_47 = arith.constant 0 : index
    %183 = vector.load %arg12[%c0_46, %c0_47] : memref<1x5xf32, #tpu.memory_space<vmem>>, vector<1x5xf32>
    %184 = vector.broadcast %183 : vector<1x5xf32> to vector<16x5xf32>
    %185 = arith.addf %182, %184 : vector<16x5xf32>
    %186 = arith.negf %185 : vector<16x5xf32>
    %187 = math.exp %186 : vector<16x5xf32>
    %cst_48 = arith.constant 1.000000e+00 : f32
    %188 = vector.broadcast %cst_48 : f32 to vector<16x5xf32>
    %189 = arith.addf %188, %187 : vector<16x5xf32>
    %190 = arith.divf %188, %189 : vector<16x5xf32>
    %191 = vector.extract_strided_slice %190 {offsets = [0, 0], sizes = [2, 5], strides = [1, 1]} : vector<16x5xf32> to vector<2x5xf32>
    %192 = vector.extract_strided_slice %190 {offsets = [2, 0], sizes = [2, 5], strides = [1, 1]} : vector<16x5xf32> to vector<2x5xf32>
    %193 = arith.addf %191, %192 : vector<2x5xf32>
    %194 = vector.extract_strided_slice %190 {offsets = [4, 0], sizes = [2, 5], strides = [1, 1]} : vector<16x5xf32> to vector<2x5xf32>
    %195 = arith.addf %193, %194 : vector<2x5xf32>
    %196 = vector.extract_strided_slice %190 {offsets = [6, 0], sizes = [2, 5], strides = [1, 1]} : vector<16x5xf32> to vector<2x5xf32>
    %197 = arith.addf %195, %196 : vector<2x5xf32>
    %198 = vector.extract_strided_slice %190 {offsets = [8, 0], sizes = [2, 5], strides = [1, 1]} : vector<16x5xf32> to vector<2x5xf32>
    %199 = arith.addf %197, %198 : vector<2x5xf32>
    %200 = vector.extract_strided_slice %190 {offsets = [10, 0], sizes = [2, 5], strides = [1, 1]} : vector<16x5xf32> to vector<2x5xf32>
    %201 = arith.addf %199, %200 : vector<2x5xf32>
    %202 = vector.extract_strided_slice %190 {offsets = [12, 0], sizes = [2, 5], strides = [1, 1]} : vector<16x5xf32> to vector<2x5xf32>
    %203 = arith.addf %201, %202 : vector<2x5xf32>
    %204 = vector.extract_strided_slice %190 {offsets = [14, 0], sizes = [2, 5], strides = [1, 1]} : vector<16x5xf32> to vector<2x5xf32>
    %205 = arith.addf %203, %204 : vector<2x5xf32>
    %cst_49 = arith.constant 1.250000e-01 : f32
    %206 = vector.broadcast %cst_49 : f32 to vector<2x5xf32>
    %207 = arith.mulf %205, %206 : vector<2x5xf32>
    %c0_50 = arith.constant 0 : index
    %c0_51 = arith.constant 0 : index
    %208 = vector.load %arg13[%c0_50, %c0_51] : memref<2x5xf32, #tpu.memory_space<vmem>>, vector<2x5xf32>
    tpu.vector_store %arg13[%c0_50, %c0_51], %207 {strides = array<i32>} : memref<2x5xf32, #tpu.memory_space<vmem>>, vector<2x5xf32>,
    return
  }
}

</mosaic_0001>

<llo_original>
// kernel: bio_model_lstm_forward.1
$region0: #{bio_model_lstm_forward.1}
  #allocation0 [shape = 'u32[]', space=smem, size = 0x4, offset = 0x4, fixed_abs, tag = 'smem constant byte address 0x4 - core index']
  #allocation1 [shape = 'u32[144,128]{1,0:T(1,128)}', space=vmem, size = 0x12000, scoped, tag = 'internal scratch']
  %s0 = inlined_call_operand.vmem [shape: bf16[16,1024], index: 0, kind: input, shape index: {}]
  %s1 = inlined_call_operand.vmem [shape: bf16[64,256], index: 1, kind: input, shape index: {}]
  %s2 = inlined_call_operand.vmem [shape: bf16[16,64], index: 2, kind: input, shape index: {}]
  %s3 = inlined_call_operand.vmem [shape: bf16[1024,512], index: 3, kind: input, shape index: {}]
  %s4 = inlined_call_operand.vmem [shape: f32[1,512], index: 4, kind: input, shape index: {}]
  %s5 = inlined_call_operand.vmem [shape: bf16[512,512], index: 5, kind: input, shape index: {}]
  %s6 = inlined_call_operand.vmem [shape: bf16[256,512], index: 6, kind: input, shape index: {}]
  %s7 = inlined_call_operand.vmem [shape: f32[1,512], index: 7, kind: input, shape index: {}]
  %s8 = inlined_call_operand.vmem [shape: bf16[512,512], index: 8, kind: input, shape index: {}]
  %s9 = inlined_call_operand.vmem [shape: bf16[128,512], index: 9, kind: input, shape index: {}]
  %s10 = inlined_call_operand.vmem [shape: f32[1,512], index: 10, kind: input, shape index: {}]
  %s11 = inlined_call_operand.vmem [shape: f32[128,5], index: 11, kind: input, shape index: {}]
  %s12 = inlined_call_operand.vmem [shape: f32[1,5], index: 12, kind: input, shape index: {}]
  %s13 = inlined_call_operand.hbm [shape: f32[2,5], index: 13, kind: output, shape index: {}]
  %s14 = sld [smem:[#allocation0]]
  $region62: #{bio_model_lstm_forward.1} parent=0
    _
  %s16 = ssub.s32 1, %s14
  %s17 = scalar_select 0, %s16, %s14
  $region1: #{bio_model_lstm_forward.1} parent=0
    #allocation2 [shape = 'u8[1024]{0}', space=vmem, size = 0x400, scoped, tag = 'output window, operand 0, single buffered']
    #allocation3 [shape = 's32[1]{0}', space=sflag, size = 0x4, scoped, tag = 'scoped memory for bio_model_lstm_forward.1']
    %18 = vsyncpa [#allocation3], 0
    // Predicated region
    $region2: #{bio_model_lstm_forward.1} parent=1 // pred_check
      _
    $region3: #{bio_model_lstm_forward.1} parent=1 // pred_check_branch
      %20 = sbr.rel (0) target = $region5
    $region4: #{bio_model_lstm_forward.1} parent=1 // pred_region
      _
    $region5: #{bio_model_lstm_forward.1} parent=1 // pred_fallthru
      _
    // Predicated region
    $region6: #{bio_model_lstm_forward.1} parent=1 // pred_check
      _
    $region7: #{bio_model_lstm_forward.1} parent=1 // pred_check_branch
      %22 = sbr.rel (0) target = $region9
    $region8: #{bio_model_lstm_forward.1} parent=1 // pred_region
      _
    $region9: #{bio_model_lstm_forward.1} parent=1 // pred_fallthru
      _
    // Predicated region
    $region10: #{bio_model_lstm_forward.1} parent=1 // pred_check
      _
    $region11: #{bio_model_lstm_forward.1} parent=1 // pred_check_branch
      %24 = sbr.rel (0) target = $region13
    $region12: #{bio_model_lstm_forward.1} parent=1 // pred_region
      _
    $region13: #{bio_model_lstm_forward.1} parent=1 // pred_fallthru
      _
    // Predicated region
    $region14: #{bio_model_lstm_forward.1} parent=1 // pred_check
      _
    $region15: #{bio_model_lstm_forward.1} parent=1 // pred_check_branch
      %26 = sbr.rel (0) target = $region17
    $region16: #{bio_model_lstm_forward.1} parent=1 // pred_region
      _
    $region17: #{bio_model_lstm_forward.1} parent=1 // pred_fallthru
      _
    // Predicated region
    $region18: #{bio_model_lstm_forward.1} parent=1 // pred_check
      _
    $region19: #{bio_model_lstm_forward.1} parent=1 // pred_check_branch
      %28 = sbr.rel (0) target = $region21
    $region20: #{bio_model_lstm_forward.1} parent=1 // pred_region
      _
    $region21: #{bio_model_lstm_forward.1} parent=1 // pred_fallthru
      _
    // Predicated region
    $region22: #{bio_model_lstm_forward.1} parent=1 // pred_check
      _
    $region23: #{bio_model_lstm_forward.1} parent=1 // pred_check_branch
      %30 = sbr.rel (0) target = $region25
    $region24: #{bio_model_lstm_forward.1} parent=1 // pred_region
      _
    $region25: #{bio_model_lstm_forward.1} parent=1 // pred_fallthru
      _
    // Predicated region
    $region26: #{bio_model_lstm_forward.1} parent=1 // pred_check
      _
    $region27: #{bio_model_lstm_forward.1} parent=1 // pred_check_branch
      %32 = sbr.rel (0) target = $region29
    $region28: #{bio_model_lstm_forward.1} parent=1 // pred_region
      _
    $region29: #{bio_model_lstm_forward.1} parent=1 // pred_fallthru
      _
    // Predicated region
    $region30: #{bio_model_lstm_forward.1} parent=1 // pred_check
      _
    $region31: #{bio_model_lstm_forward.1} parent=1 // pred_check_branch
      %34 = sbr.rel (0) target = $region33
    $region32: #{bio_model_lstm_forward.1} parent=1 // pred_region
      _
    $region33: #{bio_model_lstm_forward.1} parent=1 // pred_fallthru
      _
    // Predicated region
    $region34: #{bio_model_lstm_forward.1} parent=1 // pred_check
      _
    $region35: #{bio_model_lstm_forward.1} parent=1 // pred_check_branch
      %36 = sbr.rel (0) target = $region37
    $region36: #{bio_model_lstm_forward.1} parent=1 // pred_region
      _
    $region37: #{bio_model_lstm_forward.1} parent=1 // pred_fallthru
      _
    // Predicated region
    $region38: #{bio_model_lstm_forward.1} parent=1 // pred_check
      _
    $region39: #{bio_model_lstm_forward.1} parent=1 // pred_check_branch
      %38 = sbr.rel (0) target = $region41
    $region40: #{bio_model_lstm_forward.1} parent=1 // pred_region
      _
    $region41: #{bio_model_lstm_forward.1} parent=1 // pred_fallthru
      _
    // Predicated region
    $region42: #{bio_model_lstm_forward.1} parent=1 // pred_check
      _
    $region43: #{bio_model_lstm_forward.1} parent=1 // pred_check_branch
      %40 = sbr.rel (0) target = $region45
    $region44: #{bio_model_lstm_forward.1} parent=1 // pred_region
      _
    $region45: #{bio_model_lstm_forward.1} parent=1 // pred_fallthru
      _
    // Predicated region
    $region46: #{bio_model_lstm_forward.1} parent=1 // pred_check
      _
    $region47: #{bio_model_lstm_forward.1} parent=1 // pred_check_branch
      %42 = sbr.rel (0) target = $region49
    $region48: #{bio_model_lstm_forward.1} parent=1 // pred_region
      _
    $region49: #{bio_model_lstm_forward.1} parent=1 // pred_fallthru
      _
    // Predicated region
    $region50: #{bio_model_lstm_forward.1} parent=1 // pred_check
      _
    $region51: #{bio_model_lstm_forward.1} parent=1 // pred_check_branch
      %44 = sbr.rel (0) target = $region53
    $region52: #{bio_model_lstm_forward.1} parent=1 // pred_region
      _
    $region53: #{bio_model_lstm_forward.1} parent=1 // pred_fallthru
      _
    %v46 = vld [vmem:[%s0] sm:$0xff]
    %v47 = vld [vmem:[%s0 + $0x8] sm:$0xff]
    %v48 = vld [vmem:[%s0 + $0x10] sm:$0xff]
    %v49 = vld [vmem:[%s0 + $0x18] sm:$0xff]
    %v50 = vld [vmem:[%s0 + $0x20] sm:$0xff]
    %v51 = vld [vmem:[%s0 + $0x28] sm:$0xff]
    %v52 = vld [vmem:[%s0 + $0x30] sm:$0xff]
    %v53 = vld [vmem:[%s0 + $0x38] sm:$0xff]
    %v54 = vld [vmem:[%s3] sm:$0xff]
    %v55 = vld [vmem:[%s3 + $0x8] sm:$0xff]
    %v56 = vld [vmem:[%s3 + $0x10] sm:$0xff]
    %v57 = vld [vmem:[%s3 + $0x18] sm:$0xff]
    %v58 = vld [vmem:[%s3 + $0x20] sm:$0xff]
    %v59 = vld [vmem:[%s3 + $0x28] sm:$0xff]
    %v60 = vld [vmem:[%s3 + $0x30] sm:$0xff]
    %v61 = vld [vmem:[%s3 + $0x38] sm:$0xff]
    %v62 = vld [vmem:[%s3 + $0x40] sm:$0xff]
    %v63 = vld [vmem:[%s3 + $0x48] sm:$0xff]
    %v64 = vld [vmem:[%s3 + $0x50] sm:$0xff]
    %v65 = vld [vmem:[%s3 + $0x58] sm:$0xff]
    %v66 = vld [vmem:[%s3 + $0x60] sm:$0xff]
    %v67 = vld [vmem:[%s3 + $0x68] sm:$0xff]
    %v68 = vld [vmem:[%s3 + $0x70] sm:$0xff]
    %v69 = vld [vmem:[%s3 + $0x78] sm:$0xff]
    %v70 = vld [vmem:[%s3 + $0x80] sm:$0xff]
    %v71 = vld [vmem:[%s3 + $0x88] sm:$0xff]
    %v72 = vld [vmem:[%s3 + $0x90] sm:$0xff]
    %v73 = vld [vmem:[%s3 + $0x98] sm:$0xff]
    %v74 = vld [vmem:[%s3 + $0xa0] sm:$0xff]
    %v75 = vld [vmem:[%s3 + $0xa8] sm:$0xff]
    %v76 = vld [vmem:[%s3 + $0xb0] sm:$0xff]
    %v77 = vld [vmem:[%s3 + $0xb8] sm:$0xff]
    %v78 = vld [vmem:[%s3 + $0xc0] sm:$0xff]
    %v79 = vld [vmem:[%s3 + $0xc8] sm:$0xff]
    %v80 = vld [vmem:[%s3 + $0xd0] sm:$0xff]
    %v81 = vld [vmem:[%s3 + $0xd8] sm:$0xff]
    %v82 = vld [vmem:[%s3 + $0xe0] sm:$0xff]
    %v83 = vld [vmem:[%s3 + $0xe8] sm:$0xff]
    %v84 = vld [vmem:[%s3 + $0xf0] sm:$0xff]
    %v85 = vld [vmem:[%s3 + $0xf8] sm:$0xff]
    %v86 = vld [vmem:[%s3 + $0x100] sm:$0xff]
    %v87 = vld [vmem:[%s3 + $0x108] sm:$0xff]
    %v88 = vld [vmem:[%s3 + $0x110] sm:$0xff]
    %v89 = vld [vmem:[%s3 + $0x118] sm:$0xff]
    %v90 = vld [vmem:[%s3 + $0x120] sm:$0xff]
    %v91 = vld [vmem:[%s3 + $0x128] sm:$0xff]
    %v92 = vld [vmem:[%s3 + $0x130] sm:$0xff]
    %v93 = vld [vmem:[%s3 + $0x138] sm:$0xff]
    %v94 = vld [vmem:[%s3 + $0x140] sm:$0xff]
    %v95 = vld [vmem:[%s3 + $0x148] sm:$0xff]
    %v96 = vld [vmem:[%s3 + $0x150] sm:$0xff]
    %v97 = vld [vmem:[%s3 + $0x158] sm:$0xff]
    %v98 = vld [vmem:[%s3 + $0x160] sm:$0xff]
    %v99 = vld [vmem:[%s3 + $0x168] sm:$0xff]
    %v100 = vld [vmem:[%s3 + $0x170] sm:$0xff]
    %v101 = vld [vmem:[%s3 + $0x178] sm:$0xff]
    %v102 = vld [vmem:[%s3 + $0x180] sm:$0xff]
    %v103 = vld [vmem:[%s3 + $0x188] sm:$0xff]
    %v104 = vld [vmem:[%s3 + $0x190] sm:$0xff]
    %v105 = vld [vmem:[%s3 + $0x198] sm:$0xff]
    %v106 = vld [vmem:[%s3 + $0x1a0] sm:$0xff]
    %v107 = vld [vmem:[%s3 + $0x1a8] sm:$0xff]
    %v108 = vld [vmem:[%s3 + $0x1b0] sm:$0xff]
    %v109 = vld [vmem:[%s3 + $0x1b8] sm:$0xff]
    %v110 = vld [vmem:[%s3 + $0x1c0] sm:$0xff]
    %v111 = vld [vmem:[%s3 + $0x1c8] sm:$0xff]
    %v112 = vld [vmem:[%s3 + $0x1d0] sm:$0xff]
    %v113 = vld [vmem:[%s3 + $0x1d8] sm:$0xff]
    %v114 = vld [vmem:[%s3 + $0x1e0] sm:$0xff]
    %v115 = vld [vmem:[%s3 + $0x1e8] sm:$0xff]
    %v116 = vld [vmem:[%s3 + $0x1f0] sm:$0xff]
    %v117 = vld [vmem:[%s3 + $0x1f8] sm:$0xff]
    %v118 = vld [vmem:[%s3 + $0x200] sm:$0xff]
    %v119 = vld [vmem:[%s3 + $0x208] sm:$0xff]
    %v120 = vld [vmem:[%s3 + $0x210] sm:$0xff]
    %v121 = vld [vmem:[%s3 + $0x218] sm:$0xff]
    %v122 = vld [vmem:[%s3 + $0x220] sm:$0xff]
    %v123 = vld [vmem:[%s3 + $0x228] sm:$0xff]
    %v124 = vld [vmem:[%s3 + $0x230] sm:$0xff]
    %v125 = vld [vmem:[%s3 + $0x238] sm:$0xff]
    %v126 = vld [vmem:[%s3 + $0x240] sm:$0xff]
    %v127 = vld [vmem:[%s3 + $0x248] sm:$0xff]
    %v128 = vld [vmem:[%s3 + $0x250] sm:$0xff]
    %v129 = vld [vmem:[%s3 + $0x258] sm:$0xff]
    %v130 = vld [vmem:[%s3 + $0x260] sm:$0xff]
    %v131 = vld [vmem:[%s3 + $0x268] sm:$0xff]
    %v132 = vld [vmem:[%s3 + $0x270] sm:$0xff]
    %v133 = vld [vmem:[%s3 + $0x278] sm:$0xff]
    %v134 = vld [vmem:[%s3 + $0x280] sm:$0xff]
    %v135 = vld [vmem:[%s3 + $0x288] sm:$0xff]
    %v136 = vld [vmem:[%s3 + $0x290] sm:$0xff]
    %v137 = vld [vmem:[%s3 + $0x298] sm:$0xff]
    %v138 = vld [vmem:[%s3 + $0x2a0] sm:$0xff]
    %v139 = vld [vmem:[%s3 + $0x2a8] sm:$0xff]
    %v140 = vld [vmem:[%s3 + $0x2b0] sm:$0xff]
    %v141 = vld [vmem:[%s3 + $0x2b8] sm:$0xff]
    %v142 = vld [vmem:[%s3 + $0x2c0] sm:$0xff]
    %v143 = vld [vmem:[%s3 + $0x2c8] sm:$0xff]
    %v144 = vld [vmem:[%s3 + $0x2d0] sm:$0xff]
    %v145 = vld [vmem:[%s3 + $0x2d8] sm:$0xff]
    %v146 = vld [vmem:[%s3 + $0x2e0] sm:$0xff]
    %v147 = vld [vmem:[%s3 + $0x2e8] sm:$0xff]
    %v148 = vld [vmem:[%s3 + $0x2f0] sm:$0xff]
    %v149 = vld [vmem:[%s3 + $0x2f8] sm:$0xff]
    %v150 = vld [vmem:[%s3 + $0x300] sm:$0xff]
    %v151 = vld [vmem:[%s3 + $0x308] sm:$0xff]
    %v152 = vld [vmem:[%s3 + $0x310] sm:$0xff]
    %v153 = vld [vmem:[%s3 + $0x318] sm:$0xff]
    %v154 = vld [vmem:[%s3 + $0x320] sm:$0xff]
    %v155 = vld [vmem:[%s3 + $0x328] sm:$0xff]
    %v156 = vld [vmem:[%s3 + $0x330] sm:$0xff]
    %v157 = vld [vmem:[%s3 + $0x338] sm:$0xff]
    %v158 = vld [vmem:[%s3 + $0x340] sm:$0xff]
    %v159 = vld [vmem:[%s3 + $0x348] sm:$0xff]
    %v160 = vld [vmem:[%s3 + $0x350] sm:$0xff]
    %v161 = vld [vmem:[%s3 + $0x358] sm:$0xff]
    %v162 = vld [vmem:[%s3 + $0x360] sm:$0xff]
    %v163 = vld [vmem:[%s3 + $0x368] sm:$0xff]
    %v164 = vld [vmem:[%s3 + $0x370] sm:$0xff]
    %v165 = vld [vmem:[%s3 + $0x378] sm:$0xff]
    %v166 = vld [vmem:[%s3 + $0x380] sm:$0xff]
    %v167 = vld [vmem:[%s3 + $0x388] sm:$0xff]
    %v168 = vld [vmem:[%s3 + $0x390] sm:$0xff]
    %v169 = vld [vmem:[%s3 + $0x398] sm:$0xff]
    %v170 = vld [vmem:[%s3 + $0x3a0] sm:$0xff]
    %v171 = vld [vmem:[%s3 + $0x3a8] sm:$0xff]
    %v172 = vld [vmem:[%s3 + $0x3b0] sm:$0xff]
    %v173 = vld [vmem:[%s3 + $0x3b8] sm:$0xff]
    %v174 = vld [vmem:[%s3 + $0x3c0] sm:$0xff]
    %v175 = vld [vmem:[%s3 + $0x3c8] sm:$0xff]
    %v176 = vld [vmem:[%s3 + $0x3d0] sm:$0xff]
    %v177 = vld [vmem:[%s3 + $0x3d8] sm:$0xff]
    %v178 = vld [vmem:[%s3 + $0x3e0] sm:$0xff]
    %v179 = vld [vmem:[%s3 + $0x3e8] sm:$0xff]
    %v180 = vld [vmem:[%s3 + $0x3f0] sm:$0xff]
    %v181 = vld [vmem:[%s3 + $0x3f8] sm:$0xff]
    %v182 = vld [vmem:[%s3 + $0x400] sm:$0xff]
    %v183 = vld [vmem:[%s3 + $0x408] sm:$0xff]
    %v184 = vld [vmem:[%s3 + $0x410] sm:$0xff]
    %v185 = vld [vmem:[%s3 + $0x418] sm:$0xff]
    %v186 = vld [vmem:[%s3 + $0x420] sm:$0xff]
    %v187 = vld [vmem:[%s3 + $0x428] sm:$0xff]
    %v188 = vld [vmem:[%s3 + $0x430] sm:$0xff]
    %v189 = vld [vmem:[%s3 + $0x438] sm:$0xff]
    %v190 = vld [vmem:[%s3 + $0x440] sm:$0xff]
    %v191 = vld [vmem:[%s3 + $0x448] sm:$0xff]
    %v192 = vld [vmem:[%s3 + $0x450] sm:$0xff]
    %v193 = vld [vmem:[%s3 + $0x458] sm:$0xff]
    %v194 = vld [vmem:[%s3 + $0x460] sm:$0xff]
    %v195 = vld [vmem:[%s3 + $0x468] sm:$0xff]
    %v196 = vld [vmem:[%s3 + $0x470] sm:$0xff]
    %v197 = vld [vmem:[%s3 + $0x478] sm:$0xff]
    %v198 = vld [vmem:[%s3 + $0x480] sm:$0xff]
    %v199 = vld [vmem:[%s3 + $0x488] sm:$0xff]
    %v200 = vld [vmem:[%s3 + $0x490] sm:$0xff]
    %v201 = vld [vmem:[%s3 + $0x498] sm:$0xff]
    %v202 = vld [vmem:[%s3 + $0x4a0] sm:$0xff]
    %v203 = vld [vmem:[%s3 + $0x4a8] sm:$0xff]
    %v204 = vld [vmem:[%s3 + $0x4b0] sm:$0xff]
    %v205 = vld [vmem:[%s3 + $0x4b8] sm:$0xff]
    %v206 = vld [vmem:[%s3 + $0x4c0] sm:$0xff]
    %v207 = vld [vmem:[%s3 + $0x4c8] sm:$0xff]
    %v208 = vld [vmem:[%s3 + $0x4d0] sm:$0xff]
    %v209 = vld [vmem:[%s3 + $0x4d8] sm:$0xff]
    %v210 = vld [vmem:[%s3 + $0x4e0] sm:$0xff]
    %v211 = vld [vmem:[%s3 + $0x4e8] sm:$0xff]
    %v212 = vld [vmem:[%s3 + $0x4f0] sm:$0xff]
    %v213 = vld [vmem:[%s3 + $0x4f8] sm:$0xff]
    %v214 = vld [vmem:[%s3 + $0x500] sm:$0xff]
    %v215 = vld [vmem:[%s3 + $0x508] sm:$0xff]
    %v216 = vld [vmem:[%s3 + $0x510] sm:$0xff]
    %v217 = vld [vmem:[%s3 + $0x518] sm:$0xff]
    %v218 = vld [vmem:[%s3 + $0x520] sm:$0xff]
    %v219 = vld [vmem:[%s3 + $0x528] sm:$0xff]
    %v220 = vld [vmem:[%s3 + $0x530] sm:$0xff]
    %v221 = vld [vmem:[%s3 + $0x538] sm:$0xff]
    %v222 = vld [vmem:[%s3 + $0x540] sm:$0xff]
    %v223 = vld [vmem:[%s3 + $0x548] sm:$0xff]
    %v224 = vld [vmem:[%s3 + $0x550] sm:$0xff]
    %v225 = vld [vmem:[%s3 + $0x558] sm:$0xff]
    %v226 = vld [vmem:[%s3 + $0x560] sm:$0xff]
    %v227 = vld [vmem:[%s3 + $0x568] sm:$0xff]
    %v228 = vld [vmem:[%s3 + $0x570] sm:$0xff]
    %v229 = vld [vmem:[%s3 + $0x578] sm:$0xff]
    %v230 = vld [vmem:[%s3 + $0x580] sm:$0xff]
    %v231 = vld [vmem:[%s3 + $0x588] sm:$0xff]
    %v232 = vld [vmem:[%s3 + $0x590] sm:$0xff]
    %v233 = vld [vmem:[%s3 + $0x598] sm:$0xff]
    %v234 = vld [vmem:[%s3 + $0x5a0] sm:$0xff]
    %v235 = vld [vmem:[%s3 + $0x5a8] sm:$0xff]
    %v236 = vld [vmem:[%s3 + $0x5b0] sm:$0xff]
    %v237 = vld [vmem:[%s3 + $0x5b8] sm:$0xff]
    %v238 = vld [vmem:[%s3 + $0x5c0] sm:$0xff]
    %v239 = vld [vmem:[%s3 + $0x5c8] sm:$0xff]
    %v240 = vld [vmem:[%s3 + $0x5d0] sm:$0xff]
    %v241 = vld [vmem:[%s3 + $0x5d8] sm:$0xff]
    %v242 = vld [vmem:[%s3 + $0x5e0] sm:$0xff]
    %v243 = vld [vmem:[%s3 + $0x5e8] sm:$0xff]
    %v244 = vld [vmem:[%s3 + $0x5f0] sm:$0xff]
    %v245 = vld [vmem:[%s3 + $0x5f8] sm:$0xff]
    %v246 = vld [vmem:[%s3 + $0x600] sm:$0xff]
    %v247 = vld [vmem:[%s3 + $0x608] sm:$0xff]
    %v248 = vld [vmem:[%s3 + $0x610] sm:$0xff]
    %v249 = vld [vmem:[%s3 + $0x618] sm:$0xff]
    %v250 = vld [vmem:[%s3 + $0x620] sm:$0xff]
    %v251 = vld [vmem:[%s3 + $0x628] sm:$0xff]
    %v252 = vld [vmem:[%s3 + $0x630] sm:$0xff]
    %v253 = vld [vmem:[%s3 + $0x638] sm:$0xff]
    %v254 = vld [vmem:[%s3 + $0x640] sm:$0xff]
    %v255 = vld [vmem:[%s3 + $0x648] sm:$0xff]
    %v256 = vld [vmem:[%s3 + $0x650] sm:$0xff]
    %v257 = vld [vmem:[%s3 + $0x658] sm:$0xff]
    %v258 = vld [vmem:[%s3 + $0x660] sm:$0xff]
    %v259 = vld [vmem:[%s3 + $0x668] sm:$0xff]
    %v260 = vld [vmem:[%s3 + $0x670] sm:$0xff]
    %v261 = vld [vmem:[%s3 + $0x678] sm:$0xff]
    %v262 = vld [vmem:[%s3 + $0x680] sm:$0xff]
    %v263 = vld [vmem:[%s3 + $0x688] sm:$0xff]
    %v264 = vld [vmem:[%s3 + $0x690] sm:$0xff]
    %v265 = vld [vmem:[%s3 + $0x698] sm:$0xff]
    %v266 = vld [vmem:[%s3 + $0x6a0] sm:$0xff]
    %v267 = vld [vmem:[%s3 + $0x6a8] sm:$0xff]
    %v268 = vld [vmem:[%s3 + $0x6b0] sm:$0xff]
    %v269 = vld [vmem:[%s3 + $0x6b8] sm:$0xff]
    %v270 = vld [vmem:[%s3 + $0x6c0] sm:$0xff]
    %v271 = vld [vmem:[%s3 + $0x6c8] sm:$0xff]
    %v272 = vld [vmem:[%s3 + $0x6d0] sm:$0xff]
    %v273 = vld [vmem:[%s3 + $0x6d8] sm:$0xff]
    %v274 = vld [vmem:[%s3 + $0x6e0] sm:$0xff]
    %v275 = vld [vmem:[%s3 + $0x6e8] sm:$0xff]
    %v276 = vld [vmem:[%s3 + $0x6f0] sm:$0xff]
    %v277 = vld [vmem:[%s3 + $0x6f8] sm:$0xff]
    %v278 = vld [vmem:[%s3 + $0x700] sm:$0xff]
    %v279 = vld [vmem:[%s3 + $0x708] sm:$0xff]
    %v280 = vld [vmem:[%s3 + $0x710] sm:$0xff]
    %v281 = vld [vmem:[%s3 + $0x718] sm:$0xff]
    %v282 = vld [vmem:[%s3 + $0x720] sm:$0xff]
    %v283 = vld [vmem:[%s3 + $0x728] sm:$0xff]
    %v284 = vld [vmem:[%s3 + $0x730] sm:$0xff]
    %v285 = vld [vmem:[%s3 + $0x738] sm:$0xff]
    %v286 = vld [vmem:[%s3 + $0x740] sm:$0xff]
    %v287 = vld [vmem:[%s3 + $0x748] sm:$0xff]
    %v288 = vld [vmem:[%s3 + $0x750] sm:$0xff]
    %v289 = vld [vmem:[%s3 + $0x758] sm:$0xff]
    %v290 = vld [vmem:[%s3 + $0x760] sm:$0xff]
    %v291 = vld [vmem:[%s3 + $0x768] sm:$0xff]
    %v292 = vld [vmem:[%s3 + $0x770] sm:$0xff]
    %v293 = vld [vmem:[%s3 + $0x778] sm:$0xff]
    %v294 = vld [vmem:[%s3 + $0x780] sm:$0xff]
    %v295 = vld [vmem:[%s3 + $0x788] sm:$0xff]
    %v296 = vld [vmem:[%s3 + $0x790] sm:$0xff]
    %v297 = vld [vmem:[%s3 + $0x798] sm:$0xff]
    %v298 = vld [vmem:[%s3 + $0x7a0] sm:$0xff]
    %v299 = vld [vmem:[%s3 + $0x7a8] sm:$0xff]
    %v300 = vld [vmem:[%s3 + $0x7b0] sm:$0xff]
    %v301 = vld [vmem:[%s3 + $0x7b8] sm:$0xff]
    %v302 = vld [vmem:[%s3 + $0x7c0] sm:$0xff]
    %v303 = vld [vmem:[%s3 + $0x7c8] sm:$0xff]
    %v304 = vld [vmem:[%s3 + $0x7d0] sm:$0xff]
    %v305 = vld [vmem:[%s3 + $0x7d8] sm:$0xff]
    %v306 = vld [vmem:[%s3 + $0x7e0] sm:$0xff]
    %v307 = vld [vmem:[%s3 + $0x7e8] sm:$0xff]
    %v308 = vld [vmem:[%s3 + $0x7f0] sm:$0xff]
    %v309 = vld [vmem:[%s3 + $0x7f8] sm:$0xff]
    %v310 = vld [vmem:[%s4] sm:$0xf]
    %v312 = vlaneseq
    %v313 = vshrl.u32 %v312, 7
    %v314 = vsub.s32 0, %v313
    %v315 = vrot.slane %v310, %v314
    %v316 = vlaneseq
    %v317 = vshrl.u32 %v316, 7
    %v318 = vsub.s32 1, %v317
    %v319 = vrot.slane %v310, %v318
    %v320 = vlaneseq
    %v321 = vshrl.u32 %v320, 7
    %v322 = vsub.s32 2, %v321
    %v323 = vrot.slane %v310, %v322
    %v324 = vlaneseq
    %v325 = vshrl.u32 %v324, 7
    %v326 = vsub.s32 3, %v325
    %v327 = vrot.slane %v310, %v326
    %v340 = vunpack.c.l.b16 %v46
    %v341 = vunpack.c.h.b16 %v46
    %v342 = vunpack.c.l.b16 %v47
    %v343 = vunpack.c.h.b16 %v47
    %v344 = vunpack.c.l.b16 %v48
    %v345 = vunpack.c.h.b16 %v48
    %v346 = vunpack.c.l.b16 %v49
    %v347 = vunpack.c.h.b16 %v49
    %v348 = vunpack.c.l.b16 %v50
    %v349 = vunpack.c.h.b16 %v50
    %v350 = vunpack.c.l.b16 %v51
    %v351 = vunpack.c.h.b16 %v51
    %v352 = vunpack.c.l.b16 %v52
    %v353 = vunpack.c.h.b16 %v52
    %v354 = vunpack.c.l.b16 %v53
    %v355 = vunpack.c.h.b16 %v53
    %v356 = vpack.c.b16 %v348, %v340
    %v357 = vpack.c.b16 %v349, %v341
    %v358 = vpack.c.b16 %v350, %v342
    %v359 = vpack.c.b16 %v351, %v343
    %v360 = vpack.c.b16 %v352, %v344
    %v361 = vpack.c.b16 %v353, %v345
    %v362 = vpack.c.b16 %v354, %v346
    %v363 = vpack.c.b16 %v355, %v347
    %v628 = vunpack.c.l.b16 %v54
    %v629 = vunpack.c.h.b16 %v54
    %v630 = vunpack.c.l.b16 %v55
    %v631 = vunpack.c.h.b16 %v55
    %v632 = vunpack.c.l.b16 %v56
    %v633 = vunpack.c.h.b16 %v56
    %v634 = vunpack.c.l.b16 %v57
    %v635 = vunpack.c.h.b16 %v57
    %v636 = vunpack.c.l.b16 %v58
    %v637 = vunpack.c.h.b16 %v58
    %v638 = vunpack.c.l.b16 %v59
    %v639 = vunpack.c.h.b16 %v59
    %v640 = vunpack.c.l.b16 %v60
    %v641 = vunpack.c.h.b16 %v60
    %v642 = vunpack.c.l.b16 %v61
    %v643 = vunpack.c.h.b16 %v61
    %v644 = vunpack.c.l.b16 %v62
    %v645 = vunpack.c.h.b16 %v62
    %v646 = vunpack.c.l.b16 %v63
    %v647 = vunpack.c.h.b16 %v63
    %v648 = vunpack.c.l.b16 %v64
    %v649 = vunpack.c.h.b16 %v64
    %v650 = vunpack.c.l.b16 %v65
    %v651 = vunpack.c.h.b16 %v65
    %v652 = vunpack.c.l.b16 %v66
    %v653 = vunpack.c.h.b16 %v66
    %v654 = vunpack.c.l.b16 %v67
    %v655 = vunpack.c.h.b16 %v67
    %v656 = vunpack.c.l.b16 %v68
    %v657 = vunpack.c.h.b16 %v68
    %v658 = vunpack.c.l.b16 %v69
    %v659 = vunpack.c.h.b16 %v69
    %v660 = vunpack.c.l.b16 %v70
    %v661 = vunpack.c.h.b16 %v70
    %v662 = vunpack.c.l.b16 %v71
    %v663 = vunpack.c.h.b16 %v71
    %v664 = vunpack.c.l.b16 %v72
    %v665 = vunpack.c.h.b16 %v72
    %v666 = vunpack.c.l.b16 %v73
    %v667 = vunpack.c.h.b16 %v73
    %v668 = vunpack.c.l.b16 %v74
    %v669 = vunpack.c.h.b16 %v74
    %v670 = vunpack.c.l.b16 %v75
    %v671 = vunpack.c.h.b16 %v75
    %v672 = vunpack.c.l.b16 %v76
    %v673 = vunpack.c.h.b16 %v76
    %v674 = vunpack.c.l.b16 %v77
    %v675 = vunpack.c.h.b16 %v77
    %v676 = vunpack.c.l.b16 %v78
    %v677 = vunpack.c.h.b16 %v78
    %v678 = vunpack.c.l.b16 %v79
    %v679 = vunpack.c.h.b16 %v79
    %v680 = vunpack.c.l.b16 %v80
    %v681 = vunpack.c.h.b16 %v80
    %v682 = vunpack.c.l.b16 %v81
    %v683 = vunpack.c.h.b16 %v81
    %v684 = vunpack.c.l.b16 %v82
    %v685 = vunpack.c.h.b16 %v82
    %v686 = vunpack.c.l.b16 %v83
    %v687 = vunpack.c.h.b16 %v83
    %v688 = vunpack.c.l.b16 %v84
    %v689 = vunpack.c.h.b16 %v84
    %v690 = vunpack.c.l.b16 %v85
    %v691 = vunpack.c.h.b16 %v85
    %v692 = vunpack.c.l.b16 %v86
    %v693 = vunpack.c.h.b16 %v86
    %v694 = vunpack.c.l.b16 %v87
    %v695 = vunpack.c.h.b16 %v87
    %v696 = vunpack.c.l.b16 %v88
    %v697 = vunpack.c.h.b16 %v88
    %v698 = vunpack.c.l.b16 %v89
    %v699 = vunpack.c.h.b16 %v89
    %v700 = vunpack.c.l.b16 %v90
    %v701 = vunpack.c.h.b16 %v90
    %v702 = vunpack.c.l.b16 %v91
    %v703 = vunpack.c.h.b16 %v91
    %v704 = vunpack.c.l.b16 %v92
    %v705 = vunpack.c.h.b16 %v92
    %v706 = vunpack.c.l.b16 %v93
    %v707 = vunpack.c.h.b16 %v93
    %v708 = vunpack.c.l.b16 %v94
    %v709 = vunpack.c.h.b16 %v94
    %v710 = vunpack.c.l.b16 %v95
    %v711 = vunpack.c.h.b16 %v95
    %v712 = vunpack.c.l.b16 %v96
    %v713 = vunpack.c.h.b16 %v96
    %v714 = vunpack.c.l.b16 %v97
    %v715 = vunpack.c.h.b16 %v97
    %v716 = vunpack.c.l.b16 %v98
    %v717 = vunpack.c.h.b16 %v98
    %v718 = vunpack.c.l.b16 %v99
    %v719 = vunpack.c.h.b16 %v99
    %v720 = vunpack.c.l.b16 %v100
    %v721 = vunpack.c.h.b16 %v100
    %v722 = vunpack.c.l.b16 %v101
    %v723 = vunpack.c.h.b16 %v101
    %v724 = vunpack.c.l.b16 %v102
    %v725 = vunpack.c.h.b16 %v102
    %v726 = vunpack.c.l.b16 %v103
    %v727 = vunpack.c.h.b16 %v103
    %v728 = vunpack.c.l.b16 %v104
    %v729 = vunpack.c.h.b16 %v104
    %v730 = vunpack.c.l.b16 %v105
    %v731 = vunpack.c.h.b16 %v105
    %v732 = vunpack.c.l.b16 %v106
    %v733 = vunpack.c.h.b16 %v106
    %v734 = vunpack.c.l.b16 %v107
    %v735 = vunpack.c.h.b16 %v107
    %v736 = vunpack.c.l.b16 %v108
    %v737 = vunpack.c.h.b16 %v108
    %v738 = vunpack.c.l.b16 %v109
    %v739 = vunpack.c.h.b16 %v109
    %v740 = vunpack.c.l.b16 %v110
    %v741 = vunpack.c.h.b16 %v110
    %v742 = vunpack.c.l.b16 %v111
    %v743 = vunpack.c.h.b16 %v111
    %v744 = vunpack.c.l.b16 %v112
    %v745 = vunpack.c.h.b16 %v112
    %v746 = vunpack.c.l.b16 %v113
    %v747 = vunpack.c.h.b16 %v113
    %v748 = vunpack.c.l.b16 %v114
    %v749 = vunpack.c.h.b16 %v114
    %v750 = vunpack.c.l.b16 %v115
    %v751 = vunpack.c.h.b16 %v115
    %v752 = vunpack.c.l.b16 %v116
    %v753 = vunpack.c.h.b16 %v116
    %v754 = vunpack.c.l.b16 %v117
    %v755 = vunpack.c.h.b16 %v117
    %v756 = vunpack.c.l.b16 %v118
    %v757 = vunpack.c.h.b16 %v118
    %v758 = vunpack.c.l.b16 %v119
    %v759 = vunpack.c.h.b16 %v119
    %v760 = vunpack.c.l.b16 %v120
    %v761 = vunpack.c.h.b16 %v120
    %v762 = vunpack.c.l.b16 %v121
    %v763 = vunpack.c.h.b16 %v121
    %v764 = vunpack.c.l.b16 %v122
    %v765 = vunpack.c.h.b16 %v122
    %v766 = vunpack.c.l.b16 %v123
    %v767 = vunpack.c.h.b16 %v123
    %v768 = vunpack.c.l.b16 %v124
    %v769 = vunpack.c.h.b16 %v124
    %v770 = vunpack.c.l.b16 %v125
    %v771 = vunpack.c.h.b16 %v125
    %v772 = vunpack.c.l.b16 %v126
    %v773 = vunpack.c.h.b16 %v126
    %v774 = vunpack.c.l.b16 %v127
    %v775 = vunpack.c.h.b16 %v127
    %v776 = vunpack.c.l.b16 %v128
    %v777 = vunpack.c.h.b16 %v128
    %v778 = vunpack.c.l.b16 %v129
    %v779 = vunpack.c.h.b16 %v129
    %v780 = vunpack.c.l.b16 %v130
    %v781 = vunpack.c.h.b16 %v130
    %v782 = vunpack.c.l.b16 %v131
    %v783 = vunpack.c.h.b16 %v131
    %v784 = vunpack.c.l.b16 %v132
    %v785 = vunpack.c.h.b16 %v132
    %v786 = vunpack.c.l.b16 %v133
    %v787 = vunpack.c.h.b16 %v133
    %v788 = vunpack.c.l.b16 %v134
    %v789 = vunpack.c.h.b16 %v134
    %v790 = vunpack.c.l.b16 %v135
    %v791 = vunpack.c.h.b16 %v135
    %v792 = vunpack.c.l.b16 %v136
    %v793 = vunpack.c.h.b16 %v136
    %v794 = vunpack.c.l.b16 %v137
    %v795 = vunpack.c.h.b16 %v137
    %v796 = vunpack.c.l.b16 %v138
    %v797 = vunpack.c.h.b16 %v138
    %v798 = vunpack.c.l.b16 %v139
    %v799 = vunpack.c.h.b16 %v139
    %v800 = vunpack.c.l.b16 %v140
    %v801 = vunpack.c.h.b16 %v140
    %v802 = vunpack.c.l.b16 %v141
    %v803 = vunpack.c.h.b16 %v141
    %v804 = vunpack.c.l.b16 %v142
    %v805 = vunpack.c.h.b16 %v142
    %v806 = vunpack.c.l.b16 %v143
    %v807 = vunpack.c.h.b16 %v143
    %v808 = vunpack.c.l.b16 %v144
    %v809 = vunpack.c.h.b16 %v144
    %v810 = vunpack.c.l.b16 %v145
    %v811 = vunpack.c.h.b16 %v145
    %v812 = vunpack.c.l.b16 %v146
    %v813 = vunpack.c.h.b16 %v146
    %v814 = vunpack.c.l.b16 %v147
    %v815 = vunpack.c.h.b16 %v147
    %v816 = vunpack.c.l.b16 %v148
    %v817 = vunpack.c.h.b16 %v148
    %v818 = vunpack.c.l.b16 %v149
    %v819 = vunpack.c.h.b16 %v149
    %v820 = vunpack.c.l.b16 %v150
    %v821 = vunpack.c.h.b16 %v150
    %v822 = vunpack.c.l.b16 %v151
    %v823 = vunpack.c.h.b16 %v151
    %v824 = vunpack.c.l.b16 %v152
    %v825 = vunpack.c.h.b16 %v152
    %v826 = vunpack.c.l.b16 %v153
    %v827 = vunpack.c.h.b16 %v153
    %v828 = vunpack.c.l.b16 %v154
    %v829 = vunpack.c.h.b16 %v154
    %v830 = vunpack.c.l.b16 %v155
    %v831 = vunpack.c.h.b16 %v155
    %v832 = vunpack.c.l.b16 %v156
    %v833 = vunpack.c.h.b16 %v156
    %v834 = vunpack.c.l.b16 %v157
    %v835 = vunpack.c.h.b16 %v157
    %v836 = vunpack.c.l.b16 %v158
    %v837 = vunpack.c.h.b16 %v158
    %v838 = vunpack.c.l.b16 %v159
    %v839 = vunpack.c.h.b16 %v159
    %v840 = vunpack.c.l.b16 %v160
    %v841 = vunpack.c.h.b16 %v160
    %v842 = vunpack.c.l.b16 %v161
    %v843 = vunpack.c.h.b16 %v161
    %v844 = vunpack.c.l.b16 %v162
    %v845 = vunpack.c.h.b16 %v162
    %v846 = vunpack.c.l.b16 %v163
    %v847 = vunpack.c.h.b16 %v163
    %v848 = vunpack.c.l.b16 %v164
    %v849 = vunpack.c.h.b16 %v164
    %v850 = vunpack.c.l.b16 %v165
    %v851 = vunpack.c.h.b16 %v165
    %v852 = vunpack.c.l.b16 %v166
    %v853 = vunpack.c.h.b16 %v166
    %v854 = vunpack.c.l.b16 %v167
    %v855 = vunpack.c.h.b16 %v167
    %v856 = vunpack.c.l.b16 %v168
    %v857 = vunpack.c.h.b16 %v168
    %v858 = vunpack.c.l.b16 %v169
    %v859 = vunpack.c.h.b16 %v169
    %v860 = vunpack.c.l.b16 %v170
    %v861 = vunpack.c.h.b16 %v170
    %v862 = vunpack.c.l.b16 %v171
    %v863 = vunpack.c.h.b16 %v171
    %v864 = vunpack.c.l.b16 %v172
    %v865 = vunpack.c.h.b16 %v172
    %v866 = vunpack.c.l.b16 %v173
    %v867 = vunpack.c.h.b16 %v173
    %v868 = vunpack.c.l.b16 %v174
    %v869 = vunpack.c.h.b16 %v174
    %v870 = vunpack.c.l.b16 %v175
    %v871 = vunpack.c.h.b16 %v175
    %v872 = vunpack.c.l.b16 %v176
    %v873 = vunpack.c.h.b16 %v176
    %v874 = vunpack.c.l.b16 %v177
    %v875 = vunpack.c.h.b16 %v177
    %v876 = vunpack.c.l.b16 %v178
    %v877 = vunpack.c.h.b16 %v178
    %v878 = vunpack.c.l.b16 %v179
    %v879 = vunpack.c.h.b16 %v179
    %v880 = vunpack.c.l.b16 %v180
    %v881 = vunpack.c.h.b16 %v180
    %v882 = vunpack.c.l.b16 %v181
    %v883 = vunpack.c.h.b16 %v181
    %v884 = vunpack.c.l.b16 %v182
    %v885 = vunpack.c.h.b16 %v182
    %v886 = vunpack.c.l.b16 %v183
    %v887 = vunpack.c.h.b16 %v183
    %v888 = vunpack.c.l.b16 %v184
    %v889 = vunpack.c.h.b16 %v184
    %v890 = vunpack.c.l.b16 %v185
    %v891 = vunpack.c.h.b16 %v185
    %v892 = vunpack.c.l.b16 %v186
    %v893 = vunpack.c.h.b16 %v186
    %v894 = vunpack.c.l.b16 %v187
    %v895 = vunpack.c.h.b16 %v187
    %v896 = vunpack.c.l.b16 %v188
    %v897 = vunpack.c.h.b16 %v188
    %v898 = vunpack.c.l.b16 %v189
    %v899 = vunpack.c.h.b16 %v189
    %v900 = vunpack.c.l.b16 %v190
    %v901 = vunpack.c.h.b16 %v190
    %v902 = vunpack.c.l.b16 %v191
    %v903 = vunpack.c.h.b16 %v191
    %v904 = vunpack.c.l.b16 %v192
    %v905 = vunpack.c.h.b16 %v192
    %v906 = vunpack.c.l.b16 %v193
    %v907 = vunpack.c.h.b16 %v193
    %v908 = vunpack.c.l.b16 %v194
    %v909 = vunpack.c.h.b16 %v194
    %v910 = vunpack.c.l.b16 %v195
    %v911 = vunpack.c.h.b16 %v195
    %v912 = vunpack.c.l.b16 %v196
    %v913 = vunpack.c.h.b16 %v196
    %v914 = vunpack.c.l.b16 %v197
    %v915 = vunpack.c.h.b16 %v197
    %v916 = vunpack.c.l.b16 %v198
    %v917 = vunpack.c.h.b16 %v198
    %v918 = vunpack.c.l.b16 %v199
    %v919 = vunpack.c.h.b16 %v199
    %v920 = vunpack.c.l.b16 %v200
    %v921 = vunpack.c.h.b16 %v200
    %v922 = vunpack.c.l.b16 %v201
    %v923 = vunpack.c.h.b16 %v201
    %v924 = vunpack.c.l.b16 %v202
    %v925 = vunpack.c.h.b16 %v202
    %v926 = vunpack.c.l.b16 %v203
    %v927 = vunpack.c.h.b16 %v203
    %v928 = vunpack.c.l.b16 %v204
    %v929 = vunpack.c.h.b16 %v204
    %v930 = vunpack.c.l.b16 %v205
    %v931 = vunpack.c.h.b16 %v205
    %v932 = vunpack.c.l.b16 %v206
    %v933 = vunpack.c.h.b16 %v206
    %v934 = vunpack.c.l.b16 %v207
    %v935 = vunpack.c.h.b16 %v207
    %v936 = vunpack.c.l.b16 %v208
    %v937 = vunpack.c.h.b16 %v208
    %v938 = vunpack.c.l.b16 %v209
    %v939 = vunpack.c.h.b16 %v209
    %v940 = vunpack.c.l.b16 %v210
    %v941 = vunpack.c.h.b16 %v210
    %v942 = vunpack.c.l.b16 %v211
    %v943 = vunpack.c.h.b16 %v211
    %v944 = vunpack.c.l.b16 %v212
    %v945 = vunpack.c.h.b16 %v212
    %v946 = vunpack.c.l.b16 %v213
    %v947 = vunpack.c.h.b16 %v213
    %v948 = vunpack.c.l.b16 %v214
    %v949 = vunpack.c.h.b16 %v214
    %v950 = vunpack.c.l.b16 %v215
    %v951 = vunpack.c.h.b16 %v215
    %v952 = vunpack.c.l.b16 %v216
    %v953 = vunpack.c.h.b16 %v216
    %v954 = vunpack.c.l.b16 %v217
    %v955 = vunpack.c.h.b16 %v217
    %v956 = vunpack.c.l.b16 %v218
    %v957 = vunpack.c.h.b16 %v218
    %v958 = vunpack.c.l.b16 %v219
    %v959 = vunpack.c.h.b16 %v219
    %v960 = vunpack.c.l.b16 %v220
    %v961 = vunpack.c.h.b16 %v220
    %v962 = vunpack.c.l.b16 %v221
    %v963 = vunpack.c.h.b16 %v221
    %v964 = vunpack.c.l.b16 %v222
    %v965 = vunpack.c.h.b16 %v222
    %v966 = vunpack.c.l.b16 %v223
    %v967 = vunpack.c.h.b16 %v223
    %v968 = vunpack.c.l.b16 %v224
    %v969 = vunpack.c.h.b16 %v224
    %v970 = vunpack.c.l.b16 %v225
    %v971 = vunpack.c.h.b16 %v225
    %v972 = vunpack.c.l.b16 %v226
    %v973 = vunpack.c.h.b16 %v226
    %v974 = vunpack.c.l.b16 %v227
    %v975 = vunpack.c.h.b16 %v227
    %v976 = vunpack.c.l.b16 %v228
    %v977 = vunpack.c.h.b16 %v228
    %v978 = vunpack.c.l.b16 %v229
    %v979 = vunpack.c.h.b16 %v229
    %v980 = vunpack.c.l.b16 %v230
    %v981 = vunpack.c.h.b16 %v230
    %v982 = vunpack.c.l.b16 %v231
    %v983 = vunpack.c.h.b16 %v231
    %v984 = vunpack.c.l.b16 %v232
    %v985 = vunpack.c.h.b16 %v232
    %v986 = vunpack.c.l.b16 %v233
    %v987 = vunpack.c.h.b16 %v233
    %v988 = vunpack.c.l.b16 %v234
    %v989 = vunpack.c.h.b16 %v234
    %v990 = vunpack.c.l.b16 %v235
    %v991 = vunpack.c.h.b16 %v235
    %v992 = vunpack.c.l.b16 %v236
    %v993 = vunpack.c.h.b16 %v236
    %v994 = vunpack.c.l.b16 %v237
    %v995 = vunpack.c.h.b16 %v237
    %v996 = vunpack.c.l.b16 %v238
    %v997 = vunpack.c.h.b16 %v238
    %v998 = vunpack.c.l.b16 %v239
    %v999 = vunpack.c.h.b16 %v239
    %v1000 = vunpack.c.l.b16 %v240
    %v1001 = vunpack.c.h.b16 %v240
    %v1002 = vunpack.c.l.b16 %v241
    %v1003 = vunpack.c.h.b16 %v241
    %v1004 = vunpack.c.l.b16 %v242
    %v1005 = vunpack.c.h.b16 %v242
    %v1006 = vunpack.c.l.b16 %v243
    %v1007 = vunpack.c.h.b16 %v243
    %v1008 = vunpack.c.l.b16 %v244
    %v1009 = vunpack.c.h.b16 %v244
    %v1010 = vunpack.c.l.b16 %v245
    %v1011 = vunpack.c.h.b16 %v245
    %v1012 = vunpack.c.l.b16 %v246
    %v1013 = vunpack.c.h.b16 %v246
    %v1014 = vunpack.c.l.b16 %v247
    %v1015 = vunpack.c.h.b16 %v247
    %v1016 = vunpack.c.l.b16 %v248
    %v1017 = vunpack.c.h.b16 %v248
    %v1018 = vunpack.c.l.b16 %v249
    %v1019 = vunpack.c.h.b16 %v249
    %v1020 = vunpack.c.l.b16 %v250
    %v1021 = vunpack.c.h.b16 %v250
    %v1022 = vunpack.c.l.b16 %v251
    %v1023 = vunpack.c.h.b16 %v251
    %v1024 = vunpack.c.l.b16 %v252
    %v1025 = vunpack.c.h.b16 %v252
    %v1026 = vunpack.c.l.b16 %v253
    %v1027 = vunpack.c.h.b16 %v253
    %v1028 = vunpack.c.l.b16 %v254
    %v1029 = vunpack.c.h.b16 %v254
    %v1030 = vunpack.c.l.b16 %v255
    %v1031 = vunpack.c.h.b16 %v255
    %v1032 = vunpack.c.l.b16 %v256
    %v1033 = vunpack.c.h.b16 %v256
    %v1034 = vunpack.c.l.b16 %v257
    %v1035 = vunpack.c.h.b16 %v257
    %v1036 = vunpack.c.l.b16 %v258
    %v1037 = vunpack.c.h.b16 %v258
    %v1038 = vunpack.c.l.b16 %v259
    %v1039 = vunpack.c.h.b16 %v259
    %v1040 = vunpack.c.l.b16 %v260
    %v1041 = vunpack.c.h.b16 %v260
    %v1042 = vunpack.c.l.b16 %v261
    %v1043 = vunpack.c.h.b16 %v261
    %v1044 = vunpack.c.l.b16 %v262
    %v1045 = vunpack.c.h.b16 %v262
    %v1046 = vunpack.c.l.b16 %v263
    %v1047 = vunpack.c.h.b16 %v263
    %v1048 = vunpack.c.l.b16 %v264
    %v1049 = vunpack.c.h.b16 %v264
    %v1050 = vunpack.c.l.b16 %v265
    %v1051 = vunpack.c.h.b16 %v265
    %v1052 = vunpack.c.l.b16 %v266
    %v1053 = vunpack.c.h.b16 %v266
    %v1054 = vunpack.c.l.b16 %v267
    %v1055 = vunpack.c.h.b16 %v267
    %v1056 = vunpack.c.l.b16 %v268
    %v1057 = vunpack.c.h.b16 %v268
    %v1058 = vunpack.c.l.b16 %v269
    %v1059 = vunpack.c.h.b16 %v269
    %v1060 = vunpack.c.l.b16 %v270
    %v1061 = vunpack.c.h.b16 %v270
    %v1062 = vunpack.c.l.b16 %v271
    %v1063 = vunpack.c.h.b16 %v271
    %v1064 = vunpack.c.l.b16 %v272
    %v1065 = vunpack.c.h.b16 %v272
    %v1066 = vunpack.c.l.b16 %v273
    %v1067 = vunpack.c.h.b16 %v273
    %v1068 = vunpack.c.l.b16 %v274
    %v1069 = vunpack.c.h.b16 %v274
    %v1070 = vunpack.c.l.b16 %v275
    %v1071 = vunpack.c.h.b16 %v275
    %v1072 = vunpack.c.l.b16 %v276
    %v1073 = vunpack.c.h.b16 %v276
    %v1074 = vunpack.c.l.b16 %v277
    %v1075 = vunpack.c.h.b16 %v277
    %v1076 = vunpack.c.l.b16 %v278
    %v1077 = vunpack.c.h.b16 %v278
    %v1078 = vunpack.c.l.b16 %v279
    %v1079 = vunpack.c.h.b16 %v279
    %v1080 = vunpack.c.l.b16 %v280
    %v1081 = vunpack.c.h.b16 %v280
    %v1082 = vunpack.c.l.b16 %v281
    %v1083 = vunpack.c.h.b16 %v281
    %v1084 = vunpack.c.l.b16 %v282
    %v1085 = vunpack.c.h.b16 %v282
    %v1086 = vunpack.c.l.b16 %v283
    %v1087 = vunpack.c.h.b16 %v283
    %v1088 = vunpack.c.l.b16 %v284
    %v1089 = vunpack.c.h.b16 %v284
    %v1090 = vunpack.c.l.b16 %v285
    %v1091 = vunpack.c.h.b16 %v285
    %v1092 = vunpack.c.l.b16 %v286
    %v1093 = vunpack.c.h.b16 %v286
    %v1094 = vunpack.c.l.b16 %v287
    %v1095 = vunpack.c.h.b16 %v287
    %v1096 = vunpack.c.l.b16 %v288
    %v1097 = vunpack.c.h.b16 %v288
    %v1098 = vunpack.c.l.b16 %v289
    %v1099 = vunpack.c.h.b16 %v289
    %v1100 = vunpack.c.l.b16 %v290
    %v1101 = vunpack.c.h.b16 %v290
    %v1102 = vunpack.c.l.b16 %v291
    %v1103 = vunpack.c.h.b16 %v291
    %v1104 = vunpack.c.l.b16 %v292
    %v1105 = vunpack.c.h.b16 %v292
    %v1106 = vunpack.c.l.b16 %v293
    %v1107 = vunpack.c.h.b16 %v293
    %v1108 = vunpack.c.l.b16 %v294
    %v1109 = vunpack.c.h.b16 %v294
    %v1110 = vunpack.c.l.b16 %v295
    %v1111 = vunpack.c.h.b16 %v295
    %v1112 = vunpack.c.l.b16 %v296
    %v1113 = vunpack.c.h.b16 %v296
    %v1114 = vunpack.c.l.b16 %v297
    %v1115 = vunpack.c.h.b16 %v297
    %v1116 = vunpack.c.l.b16 %v298
    %v1117 = vunpack.c.h.b16 %v298
    %v1118 = vunpack.c.l.b16 %v299
    %v1119 = vunpack.c.h.b16 %v299
    %v1120 = vunpack.c.l.b16 %v300
    %v1121 = vunpack.c.h.b16 %v300
    %v1122 = vunpack.c.l.b16 %v301
    %v1123 = vunpack.c.h.b16 %v301
    %v1124 = vunpack.c.l.b16 %v302
    %v1125 = vunpack.c.h.b16 %v302
    %v1126 = vunpack.c.l.b16 %v303
    %v1127 = vunpack.c.h.b16 %v303
    %v1128 = vunpack.c.l.b16 %v304
    %v1129 = vunpack.c.h.b16 %v304
    %v1130 = vunpack.c.l.b16 %v305
    %v1131 = vunpack.c.h.b16 %v305
    %v1132 = vunpack.c.l.b16 %v306
    %v1133 = vunpack.c.h.b16 %v306
    %v1134 = vunpack.c.l.b16 %v307
    %v1135 = vunpack.c.h.b16 %v307
    %v1136 = vunpack.c.l.b16 %v308
    %v1137 = vunpack.c.h.b16 %v308
    %v1138 = vunpack.c.l.b16 %v309
    %v1139 = vunpack.c.h.b16 %v309
    %v1140 = vpack.c.b16 %v632, %v628
    %v1141 = vpack.c.b16 %v633, %v629
    %v1142 = vpack.c.b16 %v634, %v630
    %v1143 = vpack.c.b16 %v635, %v631
    %v1144 = vpack.c.b16 %v640, %v636
    %v1145 = vpack.c.b16 %v641, %v637
    %v1146 = vpack.c.b16 %v642, %v638
    %v1147 = vpack.c.b16 %v643, %v639
    %v1148 = vpack.c.b16 %v648, %v644
    %v1149 = vpack.c.b16 %v649, %v645
    %v1150 = vpack.c.b16 %v650, %v646
    %v1151 = vpack.c.b16 %v651, %v647
    %v1152 = vpack.c.b16 %v656, %v652
    %v1153 = vpack.c.b16 %v657, %v653
    %v1154 = vpack.c.b16 %v658, %v654
    %v1155 = vpack.c.b16 %v659, %v655
    %v1156 = vpack.c.b16 %v664, %v660
    %v1157 = vpack.c.b16 %v665, %v661
    %v1158 = vpack.c.b16 %v666, %v662
    %v1159 = vpack.c.b16 %v667, %v663
    %v1160 = vpack.c.b16 %v672, %v668
    %v1161 = vpack.c.b16 %v673, %v669
    %v1162 = vpack.c.b16 %v674, %v670
    %v1163 = vpack.c.b16 %v675, %v671
    %v1164 = vpack.c.b16 %v680, %v676
    %v1165 = vpack.c.b16 %v681, %v677
    %v1166 = vpack.c.b16 %v682, %v678
    %v1167 = vpack.c.b16 %v683, %v679
    %v1168 = vpack.c.b16 %v688, %v684
    %v1169 = vpack.c.b16 %v689, %v685
    %v1170 = vpack.c.b16 %v690, %v686
    %v1171 = vpack.c.b16 %v691, %v687
    %v1172 = vpack.c.b16 %v696, %v692
    %v1173 = vpack.c.b16 %v697, %v693
    %v1174 = vpack.c.b16 %v698, %v694
    %v1175 = vpack.c.b16 %v699, %v695
    %v1176 = vpack.c.b16 %v704, %v700
    %v1177 = vpack.c.b16 %v705, %v701
    %v1178 = vpack.c.b16 %v706, %v702
    %v1179 = vpack.c.b16 %v707, %v703
    %v1180 = vpack.c.b16 %v712, %v708
    %v1181 = vpack.c.b16 %v713, %v709
    %v1182 = vpack.c.b16 %v714, %v710
    %v1183 = vpack.c.b16 %v715, %v711
    %v1184 = vpack.c.b16 %v720, %v716
    %v1185 = vpack.c.b16 %v721, %v717
    %v1186 = vpack.c.b16 %v722, %v718
    %v1187 = vpack.c.b16 %v723, %v719
    %v1188 = vpack.c.b16 %v728, %v724
    %v1189 = vpack.c.b16 %v729, %v725
    %v1190 = vpack.c.b16 %v730, %v726
    %v1191 = vpack.c.b16 %v731, %v727
    %v1192 = vpack.c.b16 %v736, %v732
    %v1193 = vpack.c.b16 %v737, %v733
    %v1194 = vpack.c.b16 %v738, %v734
    %v1195 = vpack.c.b16 %v739, %v735
    %v1196 = vpack.c.b16 %v744, %v740
    %v1197 = vpack.c.b16 %v745, %v741
    %v1198 = vpack.c.b16 %v746, %v742
    %v1199 = vpack.c.b16 %v747, %v743
    %v1200 = vpack.c.b16 %v752, %v748
    %v1201 = vpack.c.b16 %v753, %v749
    %v1202 = vpack.c.b16 %v754, %v750
    %v1203 = vpack.c.b16 %v755, %v751
    %v1204 = vpack.c.b16 %v760, %v756
    %v1205 = vpack.c.b16 %v761, %v757
    %v1206 = vpack.c.b16 %v762, %v758
    %v1207 = vpack.c.b16 %v763, %v759
    %v1208 = vpack.c.b16 %v768, %v764
    %v1209 = vpack.c.b16 %v769, %v765
    %v1210 = vpack.c.b16 %v770, %v766
    %v1211 = vpack.c.b16 %v771, %v767
    %v1212 = vpack.c.b16 %v776, %v772
    %v1213 = vpack.c.b16 %v777, %v773
    %v1214 = vpack.c.b16 %v778, %v774
    %v1215 = vpack.c.b16 %v779, %v775
    %v1216 = vpack.c.b16 %v784, %v780
    %v1217 = vpack.c.b16 %v785, %v781
    %v1218 = vpack.c.b16 %v786, %v782
    %v1219 = vpack.c.b16 %v787, %v783
    %v1220 = vpack.c.b16 %v792, %v788
    %v1221 = vpack.c.b16 %v793, %v789
    %v1222 = vpack.c.b16 %v794, %v790
    %v1223 = vpack.c.b16 %v795, %v791
    %v1224 = vpack.c.b16 %v800, %v796
    %v1225 = vpack.c.b16 %v801, %v797
    %v1226 = vpack.c.b16 %v802, %v798
    %v1227 = vpack.c.b16 %v803, %v799
    %v1228 = vpack.c.b16 %v808, %v804
    %v1229 = vpack.c.b16 %v809, %v805
    %v1230 = vpack.c.b16 %v810, %v806
    %v1231 = vpack.c.b16 %v811, %v807
    %v1232 = vpack.c.b16 %v816, %v812
    %v1233 = vpack.c.b16 %v817, %v813
    %v1234 = vpack.c.b16 %v818, %v814
    %v1235 = vpack.c.b16 %v819, %v815
    %v1236 = vpack.c.b16 %v824, %v820
    %v1237 = vpack.c.b16 %v825, %v821
    %v1238 = vpack.c.b16 %v826, %v822
    %v1239 = vpack.c.b16 %v827, %v823
    %v1240 = vpack.c.b16 %v832, %v828
    %v1241 = vpack.c.b16 %v833, %v829
    %v1242 = vpack.c.b16 %v834, %v830
    %v1243 = vpack.c.b16 %v835, %v831
    %v1244 = vpack.c.b16 %v840, %v836
    %v1245 = vpack.c.b16 %v841, %v837
    %v1246 = vpack.c.b16 %v842, %v838
    %v1247 = vpack.c.b16 %v843, %v839
    %v1248 = vpack.c.b16 %v848, %v844
    %v1249 = vpack.c.b16 %v849, %v845
    %v1250 = vpack.c.b16 %v850, %v846
    %v1251 = vpack.c.b16 %v851, %v847
    %v1252 = vpack.c.b16 %v856, %v852
    %v1253 = vpack.c.b16 %v857, %v853
    %v1254 = vpack.c.b16 %v858, %v854
    %v1255 = vpack.c.b16 %v859, %v855
    %v1256 = vpack.c.b16 %v864, %v860
    %v1257 = vpack.c.b16 %v865, %v861
    %v1258 = vpack.c.b16 %v866, %v862
    %v1259 = vpack.c.b16 %v867, %v863
    %v1260 = vpack.c.b16 %v872, %v868
    %v1261 = vpack.c.b16 %v873, %v869
    %v1262 = vpack.c.b16 %v874, %v870
    %v1263 = vpack.c.b16 %v875, %v871
    %v1264 = vpack.c.b16 %v880, %v876
    %v1265 = vpack.c.b16 %v881, %v877
    %v1266 = vpack.c.b16 %v882, %v878
    %v1267 = vpack.c.b16 %v883, %v879
    %v1268 = vpack.c.b16 %v888, %v884
    %v1269 = vpack.c.b16 %v889, %v885
    %v1270 = vpack.c.b16 %v890, %v886
    %v1271 = vpack.c.b16 %v891, %v887
    %v1272 = vpack.c.b16 %v896, %v892
    %v1273 = vpack.c.b16 %v897, %v893
    %v1274 = vpack.c.b16 %v898, %v894
    %v1275 = vpack.c.b16 %v899, %v895
    %v1276 = vpack.c.b16 %v904, %v900
    %v1277 = vpack.c.b16 %v905, %v901
    %v1278 = vpack.c.b16 %v906, %v902
    %v1279 = vpack.c.b16 %v907, %v903
    %v1280 = vpack.c.b16 %v912, %v908
    %v1281 = vpack.c.b16 %v913, %v909
    %v1282 = vpack.c.b16 %v914, %v910
    %v1283 = vpack.c.b16 %v915, %v911
    %v1284 = vpack.c.b16 %v920, %v916
    %v1285 = vpack.c.b16 %v921, %v917
    %v1286 = vpack.c.b16 %v922, %v918
    %v1287 = vpack.c.b16 %v923, %v919
    %v1288 = vpack.c.b16 %v928, %v924
    %v1289 = vpack.c.b16 %v929, %v925
    %v1290 = vpack.c.b16 %v930, %v926
    %v1291 = vpack.c.b16 %v931, %v927
    %v1292 = vpack.c.b16 %v936, %v932
    %v1293 = vpack.c.b16 %v937, %v933
    %v1294 = vpack.c.b16 %v938, %v934
    %v1295 = vpack.c.b16 %v939, %v935
    %v1296 = vpack.c.b16 %v944, %v940
    %v1297 = vpack.c.b16 %v945, %v941
    %v1298 = vpack.c.b16 %v946, %v942
    %v1299 = vpack.c.b16 %v947, %v943
    %v1300 = vpack.c.b16 %v952, %v948
    %v1301 = vpack.c.b16 %v953, %v949
    %v1302 = vpack.c.b16 %v954, %v950
    %v1303 = vpack.c.b16 %v955, %v951
    %v1304 = vpack.c.b16 %v960, %v956
    %v1305 = vpack.c.b16 %v961, %v957
    %v1306 = vpack.c.b16 %v962, %v958
    %v1307 = vpack.c.b16 %v963, %v959
    %v1308 = vpack.c.b16 %v968, %v964
    %v1309 = vpack.c.b16 %v969, %v965
    %v1310 = vpack.c.b16 %v970, %v966
    %v1311 = vpack.c.b16 %v971, %v967
    %v1312 = vpack.c.b16 %v976, %v972
    %v1313 = vpack.c.b16 %v977, %v973
    %v1314 = vpack.c.b16 %v978, %v974
    %v1315 = vpack.c.b16 %v979, %v975
    %v1316 = vpack.c.b16 %v984, %v980
    %v1317 = vpack.c.b16 %v985, %v981
    %v1318 = vpack.c.b16 %v986, %v982
    %v1319 = vpack.c.b16 %v987, %v983
    %v1320 = vpack.c.b16 %v992, %v988
    %v1321 = vpack.c.b16 %v993, %v989
    %v1322 = vpack.c.b16 %v994, %v990
    %v1323 = vpack.c.b16 %v995, %v991
    %v1324 = vpack.c.b16 %v1000, %v996
    %v1325 = vpack.c.b16 %v1001, %v997
    %v1326 = vpack.c.b16 %v1002, %v998
    %v1327 = vpack.c.b16 %v1003, %v999
    %v1328 = vpack.c.b16 %v1008, %v1004
    %v1329 = vpack.c.b16 %v1009, %v1005
    %v1330 = vpack.c.b16 %v1010, %v1006
    %v1331 = vpack.c.b16 %v1011, %v1007
    %v1332 = vpack.c.b16 %v1016, %v1012
    %v1333 = vpack.c.b16 %v1017, %v1013
    %v1334 = vpack.c.b16 %v1018, %v1014
    %v1335 = vpack.c.b16 %v1019, %v1015
    %v1336 = vpack.c.b16 %v1024, %v1020
    %v1337 = vpack.c.b16 %v1025, %v1021
    %v1338 = vpack.c.b16 %v1026, %v1022
    %v1339 = vpack.c.b16 %v1027, %v1023
    %v1340 = vpack.c.b16 %v1032, %v1028
    %v1341 = vpack.c.b16 %v1033, %v1029
    %v1342 = vpack.c.b16 %v1034, %v1030
    %v1343 = vpack.c.b16 %v1035, %v1031
    %v1344 = vpack.c.b16 %v1040, %v1036
    %v1345 = vpack.c.b16 %v1041, %v1037
    %v1346 = vpack.c.b16 %v1042, %v1038
    %v1347 = vpack.c.b16 %v1043, %v1039
    %v1348 = vpack.c.b16 %v1048, %v1044
    %v1349 = vpack.c.b16 %v1049, %v1045
    %v1350 = vpack.c.b16 %v1050, %v1046
    %v1351 = vpack.c.b16 %v1051, %v1047
    %v1352 = vpack.c.b16 %v1056, %v1052
    %v1353 = vpack.c.b16 %v1057, %v1053
    %v1354 = vpack.c.b16 %v1058, %v1054
    %v1355 = vpack.c.b16 %v1059, %v1055
    %v1356 = vpack.c.b16 %v1064, %v1060
    %v1357 = vpack.c.b16 %v1065, %v1061
    %v1358 = vpack.c.b16 %v1066, %v1062
    %v1359 = vpack.c.b16 %v1067, %v1063
    %v1360 = vpack.c.b16 %v1072, %v1068
    %v1361 = vpack.c.b16 %v1073, %v1069
    %v1362 = vpack.c.b16 %v1074, %v1070
    %v1363 = vpack.c.b16 %v1075, %v1071
    %v1364 = vpack.c.b16 %v1080, %v1076
    %v1365 = vpack.c.b16 %v1081, %v1077
    %v1366 = vpack.c.b16 %v1082, %v1078
    %v1367 = vpack.c.b16 %v1083, %v1079
    %v1368 = vpack.c.b16 %v1088, %v1084
    %v1369 = vpack.c.b16 %v1089, %v1085
    %v1370 = vpack.c.b16 %v1090, %v1086
    %v1371 = vpack.c.b16 %v1091, %v1087
    %v1372 = vpack.c.b16 %v1096, %v1092
    %v1373 = vpack.c.b16 %v1097, %v1093
    %v1374 = vpack.c.b16 %v1098, %v1094
    %v1375 = vpack.c.b16 %v1099, %v1095
    %v1376 = vpack.c.b16 %v1104, %v1100
    %v1377 = vpack.c.b16 %v1105, %v1101
    %v1378 = vpack.c.b16 %v1106, %v1102
    %v1379 = vpack.c.b16 %v1107, %v1103
    %v1380 = vpack.c.b16 %v1112, %v1108
    %v1381 = vpack.c.b16 %v1113, %v1109
    %v1382 = vpack.c.b16 %v1114, %v1110
    %v1383 = vpack.c.b16 %v1115, %v1111
    %v1384 = vpack.c.b16 %v1120, %v1116
    %v1385 = vpack.c.b16 %v1121, %v1117
    %v1386 = vpack.c.b16 %v1122, %v1118
    %v1387 = vpack.c.b16 %v1123, %v1119
    %v1388 = vpack.c.b16 %v1128, %v1124
    %v1389 = vpack.c.b16 %v1129, %v1125
    %v1390 = vpack.c.b16 %v1130, %v1126
    %v1391 = vpack.c.b16 %v1131, %v1127
    %v1392 = vpack.c.b16 %v1136, %v1132
    %v1393 = vpack.c.b16 %v1137, %v1133
    %v1394 = vpack.c.b16 %v1138, %v1134
    %v1395 = vpack.c.b16 %v1139, %v1135
    %1652 = vmatprep.subr.bf16.mxu0 %v1141
    %1653 = vmatpush1.bf16.msra.mxu0 %v1140
    %1654 = vmatprep.subr.bf16.mxu0 %v1145
    %1655 = vmatpush1.bf16.msra.mxu0 %v1144
    %1656 = vmatprep.subr.bf16.mxu0 %v1149
    %1657 = vmatpush1.bf16.msra.mxu0 %v1148
    %1658 = vmatprep.subr.bf16.mxu0 %v1153
    %1659 = vmatpush1.bf16.msra.mxu0 %v1152
    %1660 = vmatprep.subr.bf16.mxu0 %v1157
    %1661 = vmatpush1.bf16.msra.mxu0 %v1156
    %1662 = vmatprep.subr.bf16.mxu0 %v1161
    %1663 = vmatpush1.bf16.msra.mxu0 %v1160
    %1664 = vmatprep.subr.bf16.mxu0 %v1165
    %1665 = vmatpush1.bf16.msra.mxu0 %v1164
    %1666 = vmatprep.subr.bf16.mxu0 %v1169
    %1667 = vmatpush1.bf16.msra.mxu0 %v1168
    %1668 = vmatprep.subr.bf16.mxu0 %v1173
    %1669 = vmatpush1.bf16.msra.mxu0 %v1172
    %1670 = vmatprep.subr.bf16.mxu0 %v1177
    %1671 = vmatpush1.bf16.msra.mxu0 %v1176
    %1672 = vmatprep.subr.bf16.mxu0 %v1181
    %1673 = vmatpush1.bf16.msra.mxu0 %v1180
    %1674 = vmatprep.subr.bf16.mxu0 %v1185
    %1675 = vmatpush1.bf16.msra.mxu0 %v1184
    %1676 = vmatprep.subr.bf16.mxu0 %v1189
    %1677 = vmatpush1.bf16.msra.mxu0 %v1188
    %1678 = vmatprep.subr.bf16.mxu0 %v1193
    %1679 = vmatpush1.bf16.msra.mxu0 %v1192
    %1680 = vmatprep.subr.bf16.mxu0 %v1197
    %1681 = vmatpush1.bf16.msra.mxu0 %v1196
    %1682 = vmatprep.subr.bf16.mxu0 %v1201
    %1683 = vmatpush1.bf16.msra.mxu0 %v1200
    %1684 = vmatprep.mubr.bf16.mxu0 %v357
    %1685 = vmatmul.mubr.bf16.gmra.mrb[0].mxu0 %v356
    %v1686 = vpop.f32.mrb[0].mxu0
    %v1687 = vadd.f32 %v315, %v1686
    %v1688 = vpop.f32.mrb[0].mxu0
    %v1689 = vadd.f32 %v319, %v1688
    %v1690 = vpop.f32.mrb[0].mxu0
    %v1691 = vadd.f32 %v315, %v1690
    %v1692 = vpop.f32.mrb[0].mxu0
    %v1693 = vadd.f32 %v319, %v1692
    %1694 = vdwg.mxu0
    %1695 = vmatprep.subr.bf16.mxu0 %v1205
    %1696 = vmatpush1.bf16.msra.mxu0 %v1204
    %1697 = vmatprep.subr.bf16.mxu0 %v1209
    %1698 = vmatpush1.bf16.msra.mxu0 %v1208
    %1699 = vmatprep.subr.bf16.mxu0 %v1213
    %1700 = vmatpush1.bf16.msra.mxu0 %v1212
    %1701 = vmatprep.subr.bf16.mxu0 %v1217
    %1702 = vmatpush1.bf16.msra.mxu0 %v1216
    %1703 = vmatprep.subr.bf16.mxu0 %v1221
    %1704 = vmatpush1.bf16.msra.mxu0 %v1220
    %1705 = vmatprep.subr.bf16.mxu0 %v1225
    %1706 = vmatpush1.bf16.msra.mxu0 %v1224
    %1707 = vmatprep.subr.bf16.mxu0 %v1229
    %1708 = vmatpush1.bf16.msra.mxu0 %v1228
    %1709 = vmatprep.subr.bf16.mxu0 %v1233
    %1710 = vmatpush1.bf16.msra.mxu0 %v1232
    %1711 = vmatprep.subr.bf16.mxu0 %v1237
    %1712 = vmatpush1.bf16.msra.mxu0 %v1236
    %1713 = vmatprep.subr.bf16.mxu0 %v1241
    %1714 = vmatpush1.bf16.msra.mxu0 %v1240
    %1715 = vmatprep.subr.bf16.mxu0 %v1245
    %1716 = vmatpush1.bf16.msra.mxu0 %v1244
    %1717 = vmatprep.subr.bf16.mxu0 %v1249
    %1718 = vmatpush1.bf16.msra.mxu0 %v1248
    %1719 = vmatprep.subr.bf16.mxu0 %v1253
    %1720 = vmatpush1.bf16.msra.mxu0 %v1252
    %1721 = vmatprep.subr.bf16.mxu0 %v1257
    %1722 = vmatpush1.bf16.msra.mxu0 %v1256
    %1723 = vmatprep.subr.bf16.mxu0 %v1261
    %1724 = vmatpush1.bf16.msra.mxu0 %v1260
    %1725 = vmatprep.subr.bf16.mxu0 %v1265
    %1726 = vmatpush1.bf16.msra.mxu0 %v1264
    %1727 = vmatprep.mubr.bf16.mxu0 %v359
    %1728 = vmatmul.mubr.bf16.gmra.mrb[0].mxu0 %v358
    %v1729 = vpop.f32.mrb[0].mxu0
    %v1730 = vadd.f32 %v1687, %v1729
    %v1731 = vpop.f32.mrb[0].mxu0
    %v1732 = vadd.f32 %v1689, %v1731
    %v1733 = vpop.f32.mrb[0].mxu0
    %v1734 = vadd.f32 %v1691, %v1733
    %v1735 = vpop.f32.mrb[0].mxu0
    %v1736 = vadd.f32 %v1693, %v1735
    %1737 = vdwg.mxu0
    %1738 = vmatprep.subr.bf16.mxu0 %v1269
    %1739 = vmatpush1.bf16.msra.mxu0 %v1268
    %1740 = vmatprep.subr.bf16.mxu0 %v1273
    %1741 = vmatpush1.bf16.msra.mxu0 %v1272
    %1742 = vmatprep.subr.bf16.mxu0 %v1277
    %1743 = vmatpush1.bf16.msra.mxu0 %v1276
    %1744 = vmatprep.subr.bf16.mxu0 %v1281
    %1745 = vmatpush1.bf16.msra.mxu0 %v1280
    %1746 = vmatprep.subr.bf16.mxu0 %v1285
    %1747 = vmatpush1.bf16.msra.mxu0 %v1284
    %1748 = vmatprep.subr.bf16.mxu0 %v1289
    %1749 = vmatpush1.bf16.msra.mxu0 %v1288
    %1750 = vmatprep.subr.bf16.mxu0 %v1293
    %1751 = vmatpush1.bf16.msra.mxu0 %v1292
    %1752 = vmatprep.subr.bf16.mxu0 %v1297
    %1753 = vmatpush1.bf16.msra.mxu0 %v1296
    %1754 = vmatprep.subr.bf16.mxu0 %v1301
    %1755 = vmatpush1.bf16.msra.mxu0 %v1300
    %1756 = vmatprep.subr.bf16.mxu0 %v1305
    %1757 = vmatpush1.bf16.msra.mxu0 %v1304
    %1758 = vmatprep.subr.bf16.mxu0 %v1309
    %1759 = vmatpush1.bf16.msra.mxu0 %v1308
    %1760 = vmatprep.subr.bf16.mxu0 %v1313
    %1761 = vmatpush1.bf16.msra.mxu0 %v1312
    %1762 = vmatprep.subr.bf16.mxu0 %v1317
    %1763 = vmatpush1.bf16.msra.mxu0 %v1316
    %1764 = vmatprep.subr.bf16.mxu0 %v1321
    %1765 = vmatpush1.bf16.msra.mxu0 %v1320
    %1766 = vmatprep.subr.bf16.mxu0 %v1325
    %1767 = vmatpush1.bf16.msra.mxu0 %v1324
    %1768 = vmatprep.subr.bf16.mxu0 %v1329
    %1769 = vmatpush1.bf16.msra.mxu0 %v1328
    %1770 = vmatprep.mubr.bf16.mxu0 %v361
    %1771 = vmatmul.mubr.bf16.gmra.mrb[0].mxu0 %v360
    %v1772 = vpop.f32.mrb[0].mxu0
    %v1773 = vadd.f32 %v1730, %v1772
    %v1774 = vpop.f32.mrb[0].mxu0
    %v1775 = vadd.f32 %v1732, %v1774
    %v1776 = vpop.f32.mrb[0].mxu0
    %v1777 = vadd.f32 %v1734, %v1776
    %v1778 = vpop.f32.mrb[0].mxu0
    %v1779 = vadd.f32 %v1736, %v1778
    %1780 = vdwg.mxu0
    %1781 = vmatprep.subr.bf16.mxu0 %v1333
    %1782 = vmatpush1.bf16.msra.mxu0 %v1332
    %1783 = vmatprep.subr.bf16.mxu0 %v1337
    %1784 = vmatpush1.bf16.msra.mxu0 %v1336
    %1785 = vmatprep.subr.bf16.mxu0 %v1341
    %1786 = vmatpush1.bf16.msra.mxu0 %v1340
    %1787 = vmatprep.subr.bf16.mxu0 %v1345
    %1788 = vmatpush1.bf16.msra.mxu0 %v1344
    %1789 = vmatprep.subr.bf16.mxu0 %v1349
    %1790 = vmatpush1.bf16.msra.mxu0 %v1348
    %1791 = vmatprep.subr.bf16.mxu0 %v1353
    %1792 = vmatpush1.bf16.msra.mxu0 %v1352
    %1793 = vmatprep.subr.bf16.mxu0 %v1357
    %1794 = vmatpush1.bf16.msra.mxu0 %v1356
    %1795 = vmatprep.subr.bf16.mxu0 %v1361
    %1796 = vmatpush1.bf16.msra.mxu0 %v1360
    %1797 = vmatprep.subr.bf16.mxu0 %v1365
    %1798 = vmatpush1.bf16.msra.mxu0 %v1364
    %1799 = vmatprep.subr.bf16.mxu0 %v1369
    %1800 = vmatpush1.bf16.msra.mxu0 %v1368
    %1801 = vmatprep.subr.bf16.mxu0 %v1373
    %1802 = vmatpush1.bf16.msra.mxu0 %v1372
    %1803 = vmatprep.subr.bf16.mxu0 %v1377
    %1804 = vmatpush1.bf16.msra.mxu0 %v1376
    %1805 = vmatprep.subr.bf16.mxu0 %v1381
    %1806 = vmatpush1.bf16.msra.mxu0 %v1380
    %1807 = vmatprep.subr.bf16.mxu0 %v1385
    %1808 = vmatpush1.bf16.msra.mxu0 %v1384
    %1809 = vmatprep.subr.bf16.mxu0 %v1389
    %1810 = vmatpush1.bf16.msra.mxu0 %v1388
    %1811 = vmatprep.subr.bf16.mxu0 %v1393
    %1812 = vmatpush1.bf16.msra.mxu0 %v1392
    %1813 = vmatprep.mubr.bf16.mxu0 %v363
    %1814 = vmatmul.mubr.bf16.gmra.mrb[0].mxu0 %v362
    %v1815 = vpop.f32.mrb[0].mxu0
    %v1816 = vadd.f32 %v1773, %v1815
    %v1817 = vpop.f32.mrb[0].mxu0
    %v1818 = vadd.f32 %v1775, %v1817
    %v1819 = vpop.f32.mrb[0].mxu0
    %v1820 = vadd.f32 %v1777, %v1819
    %v1821 = vpop.f32.mrb[0].mxu0
    %v1822 = vadd.f32 %v1779, %v1821
    %1823 = vdwg.mxu0
    %1824 = vmatprep.subr.bf16.mxu0 %v1143
    %1825 = vmatpush1.bf16.msra.mxu0 %v1142
    %1826 = vmatprep.subr.bf16.mxu0 %v1147
    %1827 = vmatpush1.bf16.msra.mxu0 %v1146
    %1828 = vmatprep.subr.bf16.mxu0 %v1151
    %1829 = vmatpush1.bf16.msra.mxu0 %v1150
    %1830 = vmatprep.subr.bf16.mxu0 %v1155
    %1831 = vmatpush1.bf16.msra.mxu0 %v1154
    %1832 = vmatprep.subr.bf16.mxu0 %v1159
    %1833 = vmatpush1.bf16.msra.mxu0 %v1158
    %1834 = vmatprep.subr.bf16.mxu0 %v1163
    %1835 = vmatpush1.bf16.msra.mxu0 %v1162
    %1836 = vmatprep.subr.bf16.mxu0 %v1167
    %1837 = vmatpush1.bf16.msra.mxu0 %v1166
    %1838 = vmatprep.subr.bf16.mxu0 %v1171
    %1839 = vmatpush1.bf16.msra.mxu0 %v1170
    %1840 = vmatprep.subr.bf16.mxu0 %v1175
    %1841 = vmatpush1.bf16.msra.mxu0 %v1174
    %1842 = vmatprep.subr.bf16.mxu0 %v1179
    %1843 = vmatpush1.bf16.msra.mxu0 %v1178
    %1844 = vmatprep.subr.bf16.mxu0 %v1183
    %1845 = vmatpush1.bf16.msra.mxu0 %v1182
    %1846 = vmatprep.subr.bf16.mxu0 %v1187
    %1847 = vmatpush1.bf16.msra.mxu0 %v1186
    %1848 = vmatprep.subr.bf16.mxu0 %v1191
    %1849 = vmatpush1.bf16.msra.mxu0 %v1190
    %1850 = vmatprep.subr.bf16.mxu0 %v1195
    %1851 = vmatpush1.bf16.msra.mxu0 %v1194
    %1852 = vmatprep.subr.bf16.mxu0 %v1199
    %1853 = vmatpush1.bf16.msra.mxu0 %v1198
    %1854 = vmatprep.subr.bf16.mxu0 %v1203
    %1855 = vmatpush1.bf16.msra.mxu0 %v1202
    %1856 = vmatprep.mubr.bf16.mxu0 %v357
    %1857 = vmatmul.mubr.bf16.gmra.mrb[0].mxu0 %v356
    %v1858 = vpop.f32.mrb[0].mxu0
    %v1859 = vadd.f32 %v323, %v1858
    %v1860 = vpop.f32.mrb[0].mxu0
    %v1861 = vadd.f32 %v327, %v1860
    %v1862 = vpop.f32.mrb[0].mxu0
    %v1863 = vadd.f32 %v323, %v1862
    %v1864 = vpop.f32.mrb[0].mxu0
    %v1865 = vadd.f32 %v327, %v1864
    %1866 = vdwg.mxu0
    %1867 = vmatprep.subr.bf16.mxu0 %v1207
    %1868 = vmatpush1.bf16.msra.mxu0 %v1206
    %1869 = vmatprep.subr.bf16.mxu0 %v1211
    %1870 = vmatpush1.bf16.msra.mxu0 %v1210
    %1871 = vmatprep.subr.bf16.mxu0 %v1215
    %1872 = vmatpush1.bf16.msra.mxu0 %v1214
    %1873 = vmatprep.subr.bf16.mxu0 %v1219
    %1874 = vmatpush1.bf16.msra.mxu0 %v1218
    %1875 = vmatprep.subr.bf16.mxu0 %v1223
    %1876 = vmatpush1.bf16.msra.mxu0 %v1222
    %1877 = vmatprep.subr.bf16.mxu0 %v1227
    %1878 = vmatpush1.bf16.msra.mxu0 %v1226
    %1879 = vmatprep.subr.bf16.mxu0 %v1231
    %1880 = vmatpush1.bf16.msra.mxu0 %v1230
    %1881 = vmatprep.subr.bf16.mxu0 %v1235
    %1882 = vmatpush1.bf16.msra.mxu0 %v1234
    %1883 = vmatprep.subr.bf16.mxu0 %v1239
    %1884 = vmatpush1.bf16.msra.mxu0 %v1238
    %1885 = vmatprep.subr.bf16.mxu0 %v1243
    %1886 = vmatpush1.bf16.msra.mxu0 %v1242
    %1887 = vmatprep.subr.bf16.mxu0 %v1247
    %1888 = vmatpush1.bf16.msra.mxu0 %v1246
    %1889 = vmatprep.subr.bf16.mxu0 %v1251
    %1890 = vmatpush1.bf16.msra.mxu0 %v1250
    %1891 = vmatprep.subr.bf16.mxu0 %v1255
    %1892 = vmatpush1.bf16.msra.mxu0 %v1254
    %1893 = vmatprep.subr.bf16.mxu0 %v1259
    %1894 = vmatpush1.bf16.msra.mxu0 %v1258
    %1895 = vmatprep.subr.bf16.mxu0 %v1263
    %1896 = vmatpush1.bf16.msra.mxu0 %v1262
    %1897 = vmatprep.subr.bf16.mxu0 %v1267
    %1898 = vmatpush1.bf16.msra.mxu0 %v1266
    %1899 = vmatprep.mubr.bf16.mxu0 %v359
    %1900 = vmatmul.mubr.bf16.gmra.mrb[0].mxu0 %v358
    %v1901 = vpop.f32.mrb[0].mxu0
    %v1902 = vadd.f32 %v1859, %v1901
    %v1903 = vpop.f32.mrb[0].mxu0
    %v1904 = vadd.f32 %v1861, %v1903
    %v1905 = vpop.f32.mrb[0].mxu0
    %v1906 = vadd.f32 %v1863, %v1905
    %v1907 = vpop.f32.mrb[0].mxu0
    %v1908 = vadd.f32 %v1865, %v1907
    %1909 = vdwg.mxu0
    %1910 = vmatprep.subr.bf16.mxu0 %v1271
    %1911 = vmatpush1.bf16.msra.mxu0 %v1270
    %1912 = vmatprep.subr.bf16.mxu0 %v1275
    %1913 = vmatpush1.bf16.msra.mxu0 %v1274
    %1914 = vmatprep.subr.bf16.mxu0 %v1279
    %1915 = vmatpush1.bf16.msra.mxu0 %v1278
    %1916 = vmatprep.subr.bf16.mxu0 %v1283
    %1917 = vmatpush1.bf16.msra.mxu0 %v1282
    %1918 = vmatprep.subr.bf16.mxu0 %v1287
    %1919 = vmatpush1.bf16.msra.mxu0 %v1286
    %1920 = vmatprep.subr.bf16.mxu0 %v1291
    %1921 = vmatpush1.bf16.msra.mxu0 %v1290
    %1922 = vmatprep.subr.bf16.mxu0 %v1295
    %1923 = vmatpush1.bf16.msra.mxu0 %v1294
    %1924 = vmatprep.subr.bf16.mxu0 %v1299
    %1925 = vmatpush1.bf16.msra.mxu0 %v1298
    %1926 = vmatprep.subr.bf16.mxu0 %v1303
    %1927 = vmatpush1.bf16.msra.mxu0 %v1302
    %1928 = vmatprep.subr.bf16.mxu0 %v1307
    %1929 = vmatpush1.bf16.msra.mxu0 %v1306
    %1930 = vmatprep.subr.bf16.mxu0 %v1311
    %1931 = vmatpush1.bf16.msra.mxu0 %v1310
    %1932 = vmatprep.subr.bf16.mxu0 %v1315
    %1933 = vmatpush1.bf16.msra.mxu0 %v1314
    %1934 = vmatprep.subr.bf16.mxu0 %v1319
    %1935 = vmatpush1.bf16.msra.mxu0 %v1318
    %1936 = vmatprep.subr.bf16.mxu0 %v1323
    %1937 = vmatpush1.bf16.msra.mxu0 %v1322
    %1938 = vmatprep.subr.bf16.mxu0 %v1327
    %1939 = vmatpush1.bf16.msra.mxu0 %v1326
    %1940 = vmatprep.subr.bf16.mxu0 %v1331
    %1941 = vmatpush1.bf16.msra.mxu0 %v1330
    %1942 = vmatprep.mubr.bf16.mxu0 %v361
    %1943 = vmatmul.mubr.bf16.gmra.mrb[0].mxu0 %v360
    %v1944 = vpop.f32.mrb[0].mxu0
    %v1945 = vadd.f32 %v1902, %v1944
    %v1946 = vpop.f32.mrb[0].mxu0
    %v1947 = vadd.f32 %v1904, %v1946
    %v1948 = vpop.f32.mrb[0].mxu0
    %v1949 = vadd.f32 %v1906, %v1948
    %v1950 = vpop.f32.mrb[0].mxu0
    %v1951 = vadd.f32 %v1908, %v1950
    %1952 = vdwg.mxu0
    %1953 = vmatprep.subr.bf16.mxu0 %v1335
    %1954 = vmatpush1.bf16.msra.mxu0 %v1334
    %1955 = vmatprep.subr.bf16.mxu0 %v1339
    %1956 = vmatpush1.bf16.msra.mxu0 %v1338
    %1957 = vmatprep.subr.bf16.mxu0 %v1343
    %1958 = vmatpush1.bf16.msra.mxu0 %v1342
    %1959 = vmatprep.subr.bf16.mxu0 %v1347
    %1960 = vmatpush1.bf16.msra.mxu0 %v1346
    %1961 = vmatprep.subr.bf16.mxu0 %v1351
    %1962 = vmatpush1.bf16.msra.mxu0 %v1350
    %1963 = vmatprep.subr.bf16.mxu0 %v1355
    %1964 = vmatpush1.bf16.msra.mxu0 %v1354
    %1965 = vmatprep.subr.bf16.mxu0 %v1359
    %1966 = vmatpush1.bf16.msra.mxu0 %v1358
    %1967 = vmatprep.subr.bf16.mxu0 %v1363
    %1968 = vmatpush1.bf16.msra.mxu0 %v1362
    %1969 = vmatprep.subr.bf16.mxu0 %v1367
    %1970 = vmatpush1.bf16.msra.mxu0 %v1366
    %1971 = vmatprep.subr.bf16.mxu0 %v1371
    %1972 = vmatpush1.bf16.msra.mxu0 %v1370
    %1973 = vmatprep.subr.bf16.mxu0 %v1375
    %1974 = vmatpush1.bf16.msra.mxu0 %v1374
    %1975 = vmatprep.subr.bf16.mxu0 %v1379
    %1976 = vmatpush1.bf16.msra.mxu0 %v1378
    %1977 = vmatprep.subr.bf16.mxu0 %v1383
    %1978 = vmatpush1.bf16.msra.mxu0 %v1382
    %1979 = vmatprep.subr.bf16.mxu0 %v1387
    %1980 = vmatpush1.bf16.msra.mxu0 %v1386
    %1981 = vmatprep.subr.bf16.mxu0 %v1391
    %1982 = vmatpush1.bf16.msra.mxu0 %v1390
    %1983 = vmatprep.subr.bf16.mxu0 %v1395
    %1984 = vmatpush1.bf16.msra.mxu0 %v1394
    %1985 = vmatprep.mubr.bf16.mxu0 %v363
    %1986 = vmatmul.mubr.bf16.gmra.mrb[0].mxu0 %v362
    %v1987 = vpop.f32.mrb[0].mxu0
    %v1988 = vadd.f32 %v1945, %v1987
    %v1989 = vpop.f32.mrb[0].mxu0
    %v1990 = vadd.f32 %v1947, %v1989
    %v1991 = vpop.f32.mrb[0].mxu0
    %v1992 = vadd.f32 %v1949, %v1991
    %v1993 = vpop.f32.mrb[0].mxu0
    %v1994 = vadd.f32 %v1951, %v1993
    %1995 = vdwg.mxu0
    %v1996 = vld [vmem:[%s2] sm:$0xf]
    %v1997 = vld [vmem:[%s2 + $0x4] sm:$0xf]
    %v1998 = vld [vmem:[%s1] sm:$0xff]
    %v1999 = vld [vmem:[%s1 + $0x8] sm:$0xff]
    %v2000 = vld [vmem:[%s1 + $0x10] sm:$0xff]
    %v2001 = vld [vmem:[%s1 + $0x18] sm:$0xff]
    %v2002 = vld [vmem:[%s1 + $0x20] sm:$0xff]
    %v2003 = vld [vmem:[%s1 + $0x28] sm:$0xff]
    %v2004 = vld [vmem:[%s1 + $0x30] sm:$0xff]
    %v2005 = vld [vmem:[%s1 + $0x38] sm:$0xff]
    %v2008 = vunpack.c.l.b16 %v1996
    %v2009 = vunpack.c.l.b16 %v1997
    %v2010 = vpack.c.b16 %v2009, %v2008
    %v2019 = vunpack.c.l.b16 %v1998
    %v2020 = vunpack.c.h.b16 %v1998
    %v2021 = vunpack.c.l.b16 %v1999
    %v2022 = vunpack.c.h.b16 %v1999
    %v2023 = vunpack.c.l.b16 %v2000
    %v2024 = vunpack.c.h.b16 %v2000
    %v2025 = vunpack.c.l.b16 %v2001
    %v2026 = vunpack.c.h.b16 %v2001
    %v2027 = vunpack.c.l.b16 %v2002
    %v2028 = vunpack.c.h.b16 %v2002
    %v2029 = vunpack.c.l.b16 %v2003
    %v2030 = vunpack.c.h.b16 %v2003
    %v2031 = vunpack.c.l.b16 %v2004
    %v2032 = vunpack.c.h.b16 %v2004
    %v2033 = vunpack.c.l.b16 %v2005
    %v2034 = vunpack.c.h.b16 %v2005
    %v2035 = vpack.c.b16 %v2021, %v2019
    %v2036 = vpack.c.b16 %v2022, %v2020
    %v2037 = vpack.c.b16 %v2025, %v2023
    %v2038 = vpack.c.b16 %v2026, %v2024
    %v2039 = vpack.c.b16 %v2029, %v2027
    %v2040 = vpack.c.b16 %v2030, %v2028
    %v2041 = vpack.c.b16 %v2033, %v2031
    %v2042 = vpack.c.b16 %v2034, %v2032
    %vm2051 = vcmask 523264
    %v2053 = vsel %vm2051, %v2010, 0
    %2055 = vmatprep.subr.bf16.mxu0 %v2036
    %2056 = vmatpush1.bf16.msra.mxu0 %v2035
    %2057 = vmatprep.subr.bf16.mxu0 %v2038
    %2058 = vmatpush1.bf16.msra.mxu0 %v2037
    %2059 = vmatprep.subr.bf16.mxu0 %v2040
    %2060 = vmatpush1.bf16.msra.mxu0 %v2039
    %2061 = vmatprep.subr.bf16.mxu0 %v2042
    %2062 = vmatpush1.bf16.msra.mxu0 %v2041
    %2063 = vmatprep.subr.bf16.mxu0 0
    %2064 = vmatpush1.bf16.msra.mxu0 0
    %2065 = vmatprep.subr.bf16.mxu0 0
    %2066 = vmatpush1.bf16.msra.mxu0 0
    %2067 = vmatprep.subr.bf16.mxu0 0
    %2068 = vmatpush1.bf16.msra.mxu0 0
    %2069 = vmatprep.subr.bf16.mxu0 0
    %2070 = vmatpush1.bf16.msra.mxu0 0
    %2071 = vmatprep.subr.bf16.mxu0 0
    %2072 = vmatpush1.bf16.msra.mxu0 0
    %2073 = vmatprep.subr.bf16.mxu0 0
    %2074 = vmatpush1.bf16.msra.mxu0 0
    %2075 = vmatprep.subr.bf16.mxu0 0
    %2076 = vmatpush1.bf16.msra.mxu0 0
    %2077 = vmatprep.subr.bf16.mxu0 0
    %2078 = vmatpush1.bf16.msra.mxu0 0
    %2079 = vmatprep.subr.bf16.mxu0 0
    %2080 = vmatpush1.bf16.msra.mxu0 0
    %2081 = vmatprep.subr.bf16.mxu0 0
    %2082 = vmatpush1.bf16.msra.mxu0 0
    %2083 = vmatprep.subr.bf16.mxu0 0
    %2084 = vmatpush1.bf16.msra.mxu0 0
    %2085 = vmatprep.subr.bf16.mxu0 0
    %2086 = vmatpush1.bf16.msra.mxu0 0
    %2087 = vmatprep.mubr.bf16.mxu0 0
    %2088 = vmatmul.mubr.bf16.gmra.mrb[0].mxu0 %v2053
    %v2089 = vpop.f32.mrb[0].mxu0
    %v2090 = vadd.f32 0.0, %v2089
    %v2091 = vpop.f32.mrb[0].mxu0
    %v2092 = vadd.f32 0.0, %v2091
    %v2093 = vpop.f32.mrb[0].mxu0
    %v2094 = vadd.f32 0.0, %v2093
    %v2095 = vpop.f32.mrb[0].mxu0
    %v2096 = vadd.f32 0.0, %v2095
    %2097 = vdwg.mxu0
    %v2098 = vpack.c.bf16 %v1820, %v1816
    %v2099 = vpack.c.bf16 %v1822, %v1818
    %v2100 = vpack.c.bf16 %v1992, %v1988
    %v2101 = vpack.c.bf16 %v1994, %v1990
    %v2102 = vld [vmem:[%s5] sm:$0xff]
    %v2103 = vld [vmem:[%s5 + $0x8] sm:$0xff]
    %v2104 = vld [vmem:[%s5 + $0x10] sm:$0xff]
    %v2105 = vld [vmem:[%s5 + $0x18] sm:$0xff]
    %v2106 = vld [vmem:[%s5 + $0x20] sm:$0xff]
    %v2107 = vld [vmem:[%s5 + $0x28] sm:$0xff]
    %v2108 = vld [vmem:[%s5 + $0x30] sm:$0xff]
    %v2109 = vld [vmem:[%s5 + $0x38] sm:$0xff]
    %v2110 = vld [vmem:[%s5 + $0x40] sm:$0xff]
    %v2111 = vld [vmem:[%s5 + $0x48] sm:$0xff]
    %v2112 = vld [vmem:[%s5 + $0x50] sm:$0xff]
    %v2113 = vld [vmem:[%s5 + $0x58] sm:$0xff]
    %v2114 = vld [vmem:[%s5 + $0x60] sm:$0xff]
    %v2115 = vld [vmem:[%s5 + $0x68] sm:$0xff]
    %v2116 = vld [vmem:[%s5 + $0x70] sm:$0xff]
    %v2117 = vld [vmem:[%s5 + $0x78] sm:$0xff]
    %v2118 = vld [vmem:[%s5 + $0x80] sm:$0xff]
    %v2119 = vld [vmem:[%s5 + $0x88] sm:$0xff]
    %v2120 = vld [vmem:[%s5 + $0x90] sm:$0xff]
    %v2121 = vld [vmem:[%s5 + $0x98] sm:$0xff]
    %v2122 = vld [vmem:[%s5 + $0xa0] sm:$0xff]
    %v2123 = vld [vmem:[%s5 + $0xa8] sm:$0xff]
    %v2124 = vld [vmem:[%s5 + $0xb0] sm:$0xff]
    %v2125 = vld [vmem:[%s5 + $0xb8] sm:$0xff]
    %v2126 = vld [vmem:[%s5 + $0xc0] sm:$0xff]
    %v2127 = vld [vmem:[%s5 + $0xc8] sm:$0xff]
    %v2128 = vld [vmem:[%s5 + $0xd0] sm:$0xff]
    %v2129 = vld [vmem:[%s5 + $0xd8] sm:$0xff]
    %v2130 = vld [vmem:[%s5 + $0xe0] sm:$0xff]
    %v2131 = vld [vmem:[%s5 + $0xe8] sm:$0xff]
    %v2132 = vld [vmem:[%s5 + $0xf0] sm:$0xff]
    %v2133 = vld [vmem:[%s5 + $0xf8] sm:$0xff]
    %v2134 = vld [vmem:[%s5 + $0x100] sm:$0xff]
    %v2135 = vld [vmem:[%s5 + $0x108] sm:$0xff]
    %v2136 = vld [vmem:[%s5 + $0x110] sm:$0xff]
    %v2137 = vld [vmem:[%s5 + $0x118] sm:$0xff]
    %v2138 = vld [vmem:[%s5 + $0x120] sm:$0xff]
    %v2139 = vld [vmem:[%s5 + $0x128] sm:$0xff]
    %v2140 = vld [vmem:[%s5 + $0x130] sm:$0xff]
    %v2141 = vld [vmem:[%s5 + $0x138] sm:$0xff]
    %v2142 = vld [vmem:[%s5 + $0x140] sm:$0xff]
    %v2143 = vld [vmem:[%s5 + $0x148] sm:$0xff]
    %v2144 = vld [vmem:[%s5 + $0x150] sm:$0xff]
    %v2145 = vld [vmem:[%s5 + $0x158] sm:$0xff]
    %v2146 = vld [vmem:[%s5 + $0x160] sm:$0xff]
    %v2147 = vld [vmem:[%s5 + $0x168] sm:$0xff]
    %v2148 = vld [vmem:[%s5 + $0x170] sm:$0xff]
    %v2149 = vld [vmem:[%s5 + $0x178] sm:$0xff]
    %v2150 = vld [vmem:[%s5 + $0x180] sm:$0xff]
    %v2151 = vld [vmem:[%s5 + $0x188] sm:$0xff]
    %v2152 = vld [vmem:[%s5 + $0x190] sm:$0xff]
    %v2153 = vld [vmem:[%s5 + $0x198] sm:$0xff]
    %v2154 = vld [vmem:[%s5 + $0x1a0] sm:$0xff]
    %v2155 = vld [vmem:[%s5 + $0x1a8] sm:$0xff]
    %v2156 = vld [vmem:[%s5 + $0x1b0] sm:$0xff]
    %v2157 = vld [vmem:[%s5 + $0x1b8] sm:$0xff]
    %v2158 = vld [vmem:[%s5 + $0x1c0] sm:$0xff]
    %v2159 = vld [vmem:[%s5 + $0x1c8] sm:$0xff]
    %v2160 = vld [vmem:[%s5 + $0x1d0] sm:$0xff]
    %v2161 = vld [vmem:[%s5 + $0x1d8] sm:$0xff]
    %v2162 = vld [vmem:[%s5 + $0x1e0] sm:$0xff]
    %v2163 = vld [vmem:[%s5 + $0x1e8] sm:$0xff]
    %v2164 = vld [vmem:[%s5 + $0x1f0] sm:$0xff]
    %v2165 = vld [vmem:[%s5 + $0x1f8] sm:$0xff]
    %v2166 = vld [vmem:[%s5 + $0x200] sm:$0xff]
    %v2167 = vld [vmem:[%s5 + $0x208] sm:$0xff]
    %v2168 = vld [vmem:[%s5 + $0x210] sm:$0xff]
    %v2169 = vld [vmem:[%s5 + $0x218] sm:$0xff]
    %v2170 = vld [vmem:[%s5 + $0x220] sm:$0xff]
    %v2171 = vld [vmem:[%s5 + $0x228] sm:$0xff]
    %v2172 = vld [vmem:[%s5 + $0x230] sm:$0xff]
    %v2173 = vld [vmem:[%s5 + $0x238] sm:$0xff]
    %v2174 = vld [vmem:[%s5 + $0x240] sm:$0xff]
    %v2175 = vld [vmem:[%s5 + $0x248] sm:$0xff]
    %v2176 = vld [vmem:[%s5 + $0x250] sm:$0xff]
    %v2177 = vld [vmem:[%s5 + $0x258] sm:$0xff]
    %v2178 = vld [vmem:[%s5 + $0x260] sm:$0xff]
    %v2179 = vld [vmem:[%s5 + $0x268] sm:$0xff]
    %v2180 = vld [vmem:[%s5 + $0x270] sm:$0xff]
    %v2181 = vld [vmem:[%s5 + $0x278] sm:$0xff]
    %v2182 = vld [vmem:[%s5 + $0x280] sm:$0xff]
    %v2183 = vld [vmem:[%s5 + $0x288] sm:$0xff]
    %v2184 = vld [vmem:[%s5 + $0x290] sm:$0xff]
    %v2185 = vld [vmem:[%s5 + $0x298] sm:$0xff]
    %v2186 = vld [vmem:[%s5 + $0x2a0] sm:$0xff]
    %v2187 = vld [vmem:[%s5 + $0x2a8] sm:$0xff]
    %v2188 = vld [vmem:[%s5 + $0x2b0] sm:$0xff]
    %v2189 = vld [vmem:[%s5 + $0x2b8] sm:$0xff]
    %v2190 = vld [vmem:[%s5 + $0x2c0] sm:$0xff]
    %v2191 = vld [vmem:[%s5 + $0x2c8] sm:$0xff]
    %v2192 = vld [vmem:[%s5 + $0x2d0] sm:$0xff]
    %v2193 = vld [vmem:[%s5 + $0x2d8] sm:$0xff]
    %v2194 = vld [vmem:[%s5 + $0x2e0] sm:$0xff]
    %v2195 = vld [vmem:[%s5 + $0x2e8] sm:$0xff]
    %v2196 = vld [vmem:[%s5 + $0x2f0] sm:$0xff]
    %v2197 = vld [vmem:[%s5 + $0x2f8] sm:$0xff]
    %v2198 = vld [vmem:[%s5 + $0x300] sm:$0xff]
    %v2199 = vld [vmem:[%s5 + $0x308] sm:$0xff]
    %v2200 = vld [vmem:[%s5 + $0x310] sm:$0xff]
    %v2201 = vld [vmem:[%s5 + $0x318] sm:$0xff]
    %v2202 = vld [vmem:[%s5 + $0x320] sm:$0xff]
    %v2203 = vld [vmem:[%s5 + $0x328] sm:$0xff]
    %v2204 = vld [vmem:[%s5 + $0x330] sm:$0xff]
    %v2205 = vld [vmem:[%s5 + $0x338] sm:$0xff]
    %v2206 = vld [vmem:[%s5 + $0x340] sm:$0xff]
    %v2207 = vld [vmem:[%s5 + $0x348] sm:$0xff]
    %v2208 = vld [vmem:[%s5 + $0x350] sm:$0xff]
    %v2209 = vld [vmem:[%s5 + $0x358] sm:$0xff]
    %v2210 = vld [vmem:[%s5 + $0x360] sm:$0xff]
    %v2211 = vld [vmem:[%s5 + $0x368] sm:$0xff]
    %v2212 = vld [vmem:[%s5 + $0x370] sm:$0xff]
    %v2213 = vld [vmem:[%s5 + $0x378] sm:$0xff]
    %v2214 = vld [vmem:[%s5 + $0x380] sm:$0xff]
    %v2215 = vld [vmem:[%s5 + $0x388] sm:$0xff]
    %v2216 = vld [vmem:[%s5 + $0x390] sm:$0xff]
    %v2217 = vld [vmem:[%s5 + $0x398] sm:$0xff]
    %v2218 = vld [vmem:[%s5 + $0x3a0] sm:$0xff]
    %v2219 = vld [vmem:[%s5 + $0x3a8] sm:$0xff]
    %v2220 = vld [vmem:[%s5 + $0x3b0] sm:$0xff]
    %v2221 = vld [vmem:[%s5 + $0x3b8] sm:$0xff]
    %v2222 = vld [vmem:[%s5 + $0x3c0] sm:$0xff]
    %v2223 = vld [vmem:[%s5 + $0x3c8] sm:$0xff]
    %v2224 = vld [vmem:[%s5 + $0x3d0] sm:$0xff]
    %v2225 = vld [vmem:[%s5 + $0x3d8] sm:$0xff]
    %v2226 = vld [vmem:[%s5 + $0x3e0] sm:$0xff]
    %v2227 = vld [vmem:[%s5 + $0x3e8] sm:$0xff]
    %v2228 = vld [vmem:[%s5 + $0x3f0] sm:$0xff]
    %v2229 = vld [vmem:[%s5 + $0x3f8] sm:$0xff]
    %v2230 = vpack.c.bf16 %v2094, %v2090
    %v2231 = vpack.c.bf16 %v2096, %v2092
    %v2232 = vld [vmem:[%s6] sm:$0xff]
    %v2233 = vld [vmem:[%s6 + $0x8] sm:$0xff]
    %v2234 = vld [vmem:[%s6 + $0x10] sm:$0xff]
    %v2235 = vld [vmem:[%s6 + $0x18] sm:$0xff]
    %v2236 = vld [vmem:[%s6 + $0x20] sm:$0xff]
    %v2237 = vld [vmem:[%s6 + $0x28] sm:$0xff]
    %v2238 = vld [vmem:[%s6 + $0x30] sm:$0xff]
    %v2239 = vld [vmem:[%s6 + $0x38] sm:$0xff]
    %v2240 = vld [vmem:[%s6 + $0x40] sm:$0xff]
    %v2241 = vld [vmem:[%s6 + $0x48] sm:$0xff]
    %v2242 = vld [vmem:[%s6 + $0x50] sm:$0xff]
    %v2243 = vld [vmem:[%s6 + $0x58] sm:$0xff]
    %v2244 = vld [vmem:[%s6 + $0x60] sm:$0xff]
    %v2245 = vld [vmem:[%s6 + $0x68] sm:$0xff]
    %v2246 = vld [vmem:[%s6 + $0x70] sm:$0xff]
    %v2247 = vld [vmem:[%s6 + $0x78] sm:$0xff]
    %v2248 = vld [vmem:[%s6 + $0x80] sm:$0xff]
    %v2249 = vld [vmem:[%s6 + $0x88] sm:$0xff]
    %v2250 = vld [vmem:[%s6 + $0x90] sm:$0xff]
    %v2251 = vld [vmem:[%s6 + $0x98] sm:$0xff]
    %v2252 = vld [vmem:[%s6 + $0xa0] sm:$0xff]
    %v2253 = vld [vmem:[%s6 + $0xa8] sm:$0xff]
    %v2254 = vld [vmem:[%s6 + $0xb0] sm:$0xff]
    %v2255 = vld [vmem:[%s6 + $0xb8] sm:$0xff]
    %v2256 = vld [vmem:[%s6 + $0xc0] sm:$0xff]
    %v2257 = vld [vmem:[%s6 + $0xc8] sm:$0xff]
    %v2258 = vld [vmem:[%s6 + $0xd0] sm:$0xff]
    %v2259 = vld [vmem:[%s6 + $0xd8] sm:$0xff]
    %v2260 = vld [vmem:[%s6 + $0xe0] sm:$0xff]
    %v2261 = vld [vmem:[%s6 + $0xe8] sm:$0xff]
    %v2262 = vld [vmem:[%s6 + $0xf0] sm:$0xff]
    %v2263 = vld [vmem:[%s6 + $0xf8] sm:$0xff]
    %v2264 = vld [vmem:[%s6 + $0x100] sm:$0xff]
    %v2265 = vld [vmem:[%s6 + $0x108] sm:$0xff]
    %v2266 = vld [vmem:[%s6 + $0x110] sm:$0xff]
    %v2267 = vld [vmem:[%s6 + $0x118] sm:$0xff]
    %v2268 = vld [vmem:[%s6 + $0x120] sm:$0xff]
    %v2269 = vld [vmem:[%s6 + $0x128] sm:$0xff]
    %v2270 = vld [vmem:[%s6 + $0x130] sm:$0xff]
    %v2271 = vld [vmem:[%s6 + $0x138] sm:$0xff]
    %v2272 = vld [vmem:[%s6 + $0x140] sm:$0xff]
    %v2273 = vld [vmem:[%s6 + $0x148] sm:$0xff]
    %v2274 = vld [vmem:[%s6 + $0x150] sm:$0xff]
    %v2275 = vld [vmem:[%s6 + $0x158] sm:$0xff]
    %v2276 = vld [vmem:[%s6 + $0x160] sm:$0xff]
    %v2277 = vld [vmem:[%s6 + $0x168] sm:$0xff]
    %v2278 = vld [vmem:[%s6 + $0x170] sm:$0xff]
    %v2279 = vld [vmem:[%s6 + $0x178] sm:$0xff]
    %v2280 = vld [vmem:[%s6 + $0x180] sm:$0xff]
    %v2281 = vld [vmem:[%s6 + $0x188] sm:$0xff]
    %v2282 = vld [vmem:[%s6 + $0x190] sm:$0xff]
    %v2283 = vld [vmem:[%s6 + $0x198] sm:$0xff]
    %v2284 = vld [vmem:[%s6 + $0x1a0] sm:$0xff]
    %v2285 = vld [vmem:[%s6 + $0x1a8] sm:$0xff]
    %v2286 = vld [vmem:[%s6 + $0x1b0] sm:$0xff]
    %v2287 = vld [vmem:[%s6 + $0x1b8] sm:$0xff]
    %v2288 = vld [vmem:[%s6 + $0x1c0] sm:$0xff]
    %v2289 = vld [vmem:[%s6 + $0x1c8] sm:$0xff]
    %v2290 = vld [vmem:[%s6 + $0x1d0] sm:$0xff]
    %v2291 = vld [vmem:[%s6 + $0x1d8] sm:$0xff]
    %v2292 = vld [vmem:[%s6 + $0x1e0] sm:$0xff]
    %v2293 = vld [vmem:[%s6 + $0x1e8] sm:$0xff]
    %v2294 = vld [vmem:[%s6 + $0x1f0] sm:$0xff]
    %v2295 = vld [vmem:[%s6 + $0x1f8] sm:$0xff]
    %v2360 = vunpack.c.l.b16 %v2232
    %v2361 = vunpack.c.h.b16 %v2232
    %v2362 = vunpack.c.l.b16 %v2233
    %v2363 = vunpack.c.h.b16 %v2233
    %v2364 = vunpack.c.l.b16 %v2234
    %v2365 = vunpack.c.h.b16 %v2234
    %v2366 = vunpack.c.l.b16 %v2235
    %v2367 = vunpack.c.h.b16 %v2235
    %v2368 = vunpack.c.l.b16 %v2236
    %v2369 = vunpack.c.h.b16 %v2236
    %v2370 = vunpack.c.l.b16 %v2237
    %v2371 = vunpack.c.h.b16 %v2237
    %v2372 = vunpack.c.l.b16 %v2238
    %v2373 = vunpack.c.h.b16 %v2238
    %v2374 = vunpack.c.l.b16 %v2239
    %v2375 = vunpack.c.h.b16 %v2239
    %v2376 = vunpack.c.l.b16 %v2240
    %v2377 = vunpack.c.h.b16 %v2240
    %v2378 = vunpack.c.l.b16 %v2241
    %v2379 = vunpack.c.h.b16 %v2241
    %v2380 = vunpack.c.l.b16 %v2242
    %v2381 = vunpack.c.h.b16 %v2242
    %v2382 = vunpack.c.l.b16 %v2243
    %v2383 = vunpack.c.h.b16 %v2243
    %v2384 = vunpack.c.l.b16 %v2244
    %v2385 = vunpack.c.h.b16 %v2244
    %v2386 = vunpack.c.l.b16 %v2245
    %v2387 = vunpack.c.h.b16 %v2245
    %v2388 = vunpack.c.l.b16 %v2246
    %v2389 = vunpack.c.h.b16 %v2246
    %v2390 = vunpack.c.l.b16 %v2247
    %v2391 = vunpack.c.h.b16 %v2247
    %v2392 = vunpack.c.l.b16 %v2248
    %v2393 = vunpack.c.h.b16 %v2248
    %v2394 = vunpack.c.l.b16 %v2249
    %v2395 = vunpack.c.h.b16 %v2249
    %v2396 = vunpack.c.l.b16 %v2250
    %v2397 = vunpack.c.h.b16 %v2250
    %v2398 = vunpack.c.l.b16 %v2251
    %v2399 = vunpack.c.h.b16 %v2251
    %v2400 = vunpack.c.l.b16 %v2252
    %v2401 = vunpack.c.h.b16 %v2252
    %v2402 = vunpack.c.l.b16 %v2253
    %v2403 = vunpack.c.h.b16 %v2253
    %v2404 = vunpack.c.l.b16 %v2254
    %v2405 = vunpack.c.h.b16 %v2254
    %v2406 = vunpack.c.l.b16 %v2255
    %v2407 = vunpack.c.h.b16 %v2255
    %v2408 = vunpack.c.l.b16 %v2256
    %v2409 = vunpack.c.h.b16 %v2256
    %v2410 = vunpack.c.l.b16 %v2257
    %v2411 = vunpack.c.h.b16 %v2257
    %v2412 = vunpack.c.l.b16 %v2258
    %v2413 = vunpack.c.h.b16 %v2258
    %v2414 = vunpack.c.l.b16 %v2259
    %v2415 = vunpack.c.h.b16 %v2259
    %v2416 = vunpack.c.l.b16 %v2260
    %v2417 = vunpack.c.h.b16 %v2260
    %v2418 = vunpack.c.l.b16 %v2261
    %v2419 = vunpack.c.h.b16 %v2261
    %v2420 = vunpack.c.l.b16 %v2262
    %v2421 = vunpack.c.h.b16 %v2262
    %v2422 = vunpack.c.l.b16 %v2263
    %v2423 = vunpack.c.h.b16 %v2263
    %v2424 = vunpack.c.l.b16 %v2264
    %v2425 = vunpack.c.h.b16 %v2264
    %v2426 = vunpack.c.l.b16 %v2265
    %v2427 = vunpack.c.h.b16 %v2265
    %v2428 = vunpack.c.l.b16 %v2266
    %v2429 = vunpack.c.h.b16 %v2266
    %v2430 = vunpack.c.l.b16 %v2267
    %v2431 = vunpack.c.h.b16 %v2267
    %v2432 = vunpack.c.l.b16 %v2268
    %v2433 = vunpack.c.h.b16 %v2268
    %v2434 = vunpack.c.l.b16 %v2269
    %v2435 = vunpack.c.h.b16 %v2269
    %v2436 = vunpack.c.l.b16 %v2270
    %v2437 = vunpack.c.h.b16 %v2270
    %v2438 = vunpack.c.l.b16 %v2271
    %v2439 = vunpack.c.h.b16 %v2271
    %v2440 = vunpack.c.l.b16 %v2272
    %v2441 = vunpack.c.h.b16 %v2272
    %v2442 = vunpack.c.l.b16 %v2273
    %v2443 = vunpack.c.h.b16 %v2273
    %v2444 = vunpack.c.l.b16 %v2274
    %v2445 = vunpack.c.h.b16 %v2274
    %v2446 = vunpack.c.l.b16 %v2275
    %v2447 = vunpack.c.h.b16 %v2275
    %v2448 = vunpack.c.l.b16 %v2276
    %v2449 = vunpack.c.h.b16 %v2276
    %v2450 = vunpack.c.l.b16 %v2277
    %v2451 = vunpack.c.h.b16 %v2277
    %v2452 = vunpack.c.l.b16 %v2278
    %v2453 = vunpack.c.h.b16 %v2278
    %v2454 = vunpack.c.l.b16 %v2279
    %v2455 = vunpack.c.h.b16 %v2279
    %v2456 = vunpack.c.l.b16 %v2280
    %v2457 = vunpack.c.h.b16 %v2280
    %v2458 = vunpack.c.l.b16 %v2281
    %v2459 = vunpack.c.h.b16 %v2281
    %v2460 = vunpack.c.l.b16 %v2282
    %v2461 = vunpack.c.h.b16 %v2282
    %v2462 = vunpack.c.l.b16 %v2283
    %v2463 = vunpack.c.h.b16 %v2283
    %v2464 = vunpack.c.l.b16 %v2284
    %v2465 = vunpack.c.h.b16 %v2284
    %v2466 = vunpack.c.l.b16 %v2285
    %v2467 = vunpack.c.h.b16 %v2285
    %v2468 = vunpack.c.l.b16 %v2286
    %v2469 = vunpack.c.h.b16 %v2286
    %v2470 = vunpack.c.l.b16 %v2287
    %v2471 = vunpack.c.h.b16 %v2287
    %v2472 = vunpack.c.l.b16 %v2288
    %v2473 = vunpack.c.h.b16 %v2288
    %v2474 = vunpack.c.l.b16 %v2289
    %v2475 = vunpack.c.h.b16 %v2289
    %v2476 = vunpack.c.l.b16 %v2290
    %v2477 = vunpack.c.h.b16 %v2290
    %v2478 = vunpack.c.l.b16 %v2291
    %v2479 = vunpack.c.h.b16 %v2291
    %v2480 = vunpack.c.l.b16 %v2292
    %v2481 = vunpack.c.h.b16 %v2292
    %v2482 = vunpack.c.l.b16 %v2293
    %v2483 = vunpack.c.h.b16 %v2293
    %v2484 = vunpack.c.l.b16 %v2294
    %v2485 = vunpack.c.h.b16 %v2294
    %v2486 = vunpack.c.l.b16 %v2295
    %v2487 = vunpack.c.h.b16 %v2295
    %v2488 = vpack.c.b16 %v2364, %v2360
    %v2489 = vpack.c.b16 %v2365, %v2361
    %v2490 = vpack.c.b16 %v2366, %v2362
    %v2491 = vpack.c.b16 %v2367, %v2363
    %v2492 = vpack.c.b16 %v2372, %v2368
    %v2493 = vpack.c.b16 %v2373, %v2369
    %v2494 = vpack.c.b16 %v2374, %v2370
    %v2495 = vpack.c.b16 %v2375, %v2371
    %v2496 = vpack.c.b16 %v2380, %v2376
    %v2497 = vpack.c.b16 %v2381, %v2377
    %v2498 = vpack.c.b16 %v2382, %v2378
    %v2499 = vpack.c.b16 %v2383, %v2379
    %v2500 = vpack.c.b16 %v2388, %v2384
    %v2501 = vpack.c.b16 %v2389, %v2385
    %v2502 = vpack.c.b16 %v2390, %v2386
    %v2503 = vpack.c.b16 %v2391, %v2387
    %v2504 = vpack.c.b16 %v2396, %v2392
    %v2505 = vpack.c.b16 %v2397, %v2393
    %v2506 = vpack.c.b16 %v2398, %v2394
    %v2507 = vpack.c.b16 %v2399, %v2395
    %v2508 = vpack.c.b16 %v2404, %v2400
    %v2509 = vpack.c.b16 %v2405, %v2401
    %v2510 = vpack.c.b16 %v2406, %v2402
    %v2511 = vpack.c.b16 %v2407, %v2403
    %v2512 = vpack.c.b16 %v2412, %v2408
    %v2513 = vpack.c.b16 %v2413, %v2409
    %v2514 = vpack.c.b16 %v2414, %v2410
    %v2515 = vpack.c.b16 %v2415, %v2411
    %v2516 = vpack.c.b16 %v2420, %v2416
    %v2517 = vpack.c.b16 %v2421, %v2417
    %v2518 = vpack.c.b16 %v2422, %v2418
    %v2519 = vpack.c.b16 %v2423, %v2419
    %v2520 = vpack.c.b16 %v2428, %v2424
    %v2521 = vpack.c.b16 %v2429, %v2425
    %v2522 = vpack.c.b16 %v2430, %v2426
    %v2523 = vpack.c.b16 %v2431, %v2427
    %v2524 = vpack.c.b16 %v2436, %v2432
    %v2525 = vpack.c.b16 %v2437, %v2433
    %v2526 = vpack.c.b16 %v2438, %v2434
    %v2527 = vpack.c.b16 %v2439, %v2435
    %v2528 = vpack.c.b16 %v2444, %v2440
    %v2529 = vpack.c.b16 %v2445, %v2441
    %v2530 = vpack.c.b16 %v2446, %v2442
    %v2531 = vpack.c.b16 %v2447, %v2443
    %v2532 = vpack.c.b16 %v2452, %v2448
    %v2533 = vpack.c.b16 %v2453, %v2449
    %v2534 = vpack.c.b16 %v2454, %v2450
    %v2535 = vpack.c.b16 %v2455, %v2451
    %v2536 = vpack.c.b16 %v2460, %v2456
    %v2537 = vpack.c.b16 %v2461, %v2457
    %v2538 = vpack.c.b16 %v2462, %v2458
    %v2539 = vpack.c.b16 %v2463, %v2459
    %v2540 = vpack.c.b16 %v2468, %v2464
    %v2541 = vpack.c.b16 %v2469, %v2465
    %v2542 = vpack.c.b16 %v2470, %v2466
    %v2543 = vpack.c.b16 %v2471, %v2467
    %v2544 = vpack.c.b16 %v2476, %v2472
    %v2545 = vpack.c.b16 %v2477, %v2473
    %v2546 = vpack.c.b16 %v2478, %v2474
    %v2547 = vpack.c.b16 %v2479, %v2475
    %v2548 = vpack.c.b16 %v2484, %v2480
    %v2549 = vpack.c.b16 %v2485, %v2481
    %v2550 = vpack.c.b16 %v2486, %v2482
    %v2551 = vpack.c.b16 %v2487, %v2483
    %2616 = vmatprep.subr.bf16.mxu0 %v2489
    %2617 = vmatpush1.bf16.msra.mxu0 %v2488
    %2618 = vmatprep.subr.bf16.mxu0 %v2493
    %2619 = vmatpush1.bf16.msra.mxu0 %v2492
    %2620 = vmatprep.subr.bf16.mxu0 %v2497
    %2621 = vmatpush1.bf16.msra.mxu0 %v2496
    %2622 = vmatprep.subr.bf16.mxu0 %v2501
    %2623 = vmatpush1.bf16.msra.mxu0 %v2500
    %2624 = vmatprep.subr.bf16.mxu0 %v2505
    %2625 = vmatpush1.bf16.msra.mxu0 %v2504
    %2626 = vmatprep.subr.bf16.mxu0 %v2509
    %2627 = vmatpush1.bf16.msra.mxu0 %v2508
    %2628 = vmatprep.subr.bf16.mxu0 %v2513
    %2629 = vmatpush1.bf16.msra.mxu0 %v2512
    %2630 = vmatprep.subr.bf16.mxu0 %v2517
    %2631 = vmatpush1.bf16.msra.mxu0 %v2516
    %2632 = vmatprep.subr.bf16.mxu0 %v2521
    %2633 = vmatpush1.bf16.msra.mxu0 %v2520
    %2634 = vmatprep.subr.bf16.mxu0 %v2525
    %2635 = vmatpush1.bf16.msra.mxu0 %v2524
    %2636 = vmatprep.subr.bf16.mxu0 %v2529
    %2637 = vmatpush1.bf16.msra.mxu0 %v2528
    %2638 = vmatprep.subr.bf16.mxu0 %v2533
    %2639 = vmatpush1.bf16.msra.mxu0 %v2532
    %2640 = vmatprep.subr.bf16.mxu0 %v2537
    %2641 = vmatpush1.bf16.msra.mxu0 %v2536
    %2642 = vmatprep.subr.bf16.mxu0 %v2541
    %2643 = vmatpush1.bf16.msra.mxu0 %v2540
    %2644 = vmatprep.subr.bf16.mxu0 %v2545
    %2645 = vmatpush1.bf16.msra.mxu0 %v2544
    %2646 = vmatprep.subr.bf16.mxu0 %v2549
    %2647 = vmatpush1.bf16.msra.mxu0 %v2548
    %2648 = vmatprep.mubr.bf16.mxu0 %v2231
    %2649 = vmatmul.mubr.bf16.gmra.mrb[0].mxu0 %v2230
    %v2650 = vpop.f32.mrb[0].mxu0
    %v2651 = vadd.f32 0.0, %v2650
    %v2652 = vpop.f32.mrb[0].mxu0
    %v2653 = vadd.f32 0.0, %v2652
    %v2654 = vpop.f32.mrb[0].mxu0
    %v2655 = vadd.f32 0.0, %v2654
    %v2656 = vpop.f32.mrb[0].mxu0
    %v2657 = vadd.f32 0.0, %v2656
    %2658 = vdwg.mxu0
    %2659 = vmatprep.subr.bf16.mxu0 %v2491
    %2660 = vmatpush1.bf16.msra.mxu0 %v2490
    %2661 = vmatprep.subr.bf16.mxu0 %v2495
    %2662 = vmatpush1.bf16.msra.mxu0 %v2494
    %2663 = vmatprep.subr.bf16.mxu0 %v2499
    %2664 = vmatpush1.bf16.msra.mxu0 %v2498
    %2665 = vmatprep.subr.bf16.mxu0 %v2503
    %2666 = vmatpush1.bf16.msra.mxu0 %v2502
    %2667 = vmatprep.subr.bf16.mxu0 %v2507
    %2668 = vmatpush1.bf16.msra.mxu0 %v2506
    %2669 = vmatprep.subr.bf16.mxu0 %v2511
    %2670 = vmatpush1.bf16.msra.mxu0 %v2510
    %2671 = vmatprep.subr.bf16.mxu0 %v2515
    %2672 = vmatpush1.bf16.msra.mxu0 %v2514
    %2673 = vmatprep.subr.bf16.mxu0 %v2519
    %2674 = vmatpush1.bf16.msra.mxu0 %v2518
    %2675 = vmatprep.subr.bf16.mxu0 %v2523
    %2676 = vmatpush1.bf16.msra.mxu0 %v2522
    %2677 = vmatprep.subr.bf16.mxu0 %v2527
    %2678 = vmatpush1.bf16.msra.mxu0 %v2526
    %2679 = vmatprep.subr.bf16.mxu0 %v2531
    %2680 = vmatpush1.bf16.msra.mxu0 %v2530
    %2681 = vmatprep.subr.bf16.mxu0 %v2535
    %2682 = vmatpush1.bf16.msra.mxu0 %v2534
    %2683 = vmatprep.subr.bf16.mxu0 %v2539
    %2684 = vmatpush1.bf16.msra.mxu0 %v2538
    %2685 = vmatprep.subr.bf16.mxu0 %v2543
    %2686 = vmatpush1.bf16.msra.mxu0 %v2542
    %2687 = vmatprep.subr.bf16.mxu0 %v2547
    %2688 = vmatpush1.bf16.msra.mxu0 %v2546
    %2689 = vmatprep.subr.bf16.mxu0 %v2551
    %2690 = vmatpush1.bf16.msra.mxu0 %v2550
    %2691 = vmatprep.mubr.bf16.mxu0 %v2231
    %2692 = vmatmul.mubr.bf16.gmra.mrb[0].mxu0 %v2230
    %v2693 = vpop.f32.mrb[0].mxu0
    %v2694 = vadd.f32 0.0, %v2693
    %v2695 = vpop.f32.mrb[0].mxu0
    %v2696 = vadd.f32 0.0, %v2695
    %v2697 = vpop.f32.mrb[0].mxu0
    %v2698 = vadd.f32 0.0, %v2697
    %v2699 = vpop.f32.mrb[0].mxu0
    %v2700 = vadd.f32 0.0, %v2699
    %2701 = vdwg.mxu0
    %v2830 = vunpack.c.l.b16 %v2102
    %v2831 = vunpack.c.h.b16 %v2102
    %v2832 = vunpack.c.l.b16 %v2103
    %v2833 = vunpack.c.h.b16 %v2103
    %v2834 = vunpack.c.l.b16 %v2104
    %v2835 = vunpack.c.h.b16 %v2104
    %v2836 = vunpack.c.l.b16 %v2105
    %v2837 = vunpack.c.h.b16 %v2105
    %v2838 = vunpack.c.l.b16 %v2106
    %v2839 = vunpack.c.h.b16 %v2106
    %v2840 = vunpack.c.l.b16 %v2107
    %v2841 = vunpack.c.h.b16 %v2107
    %v2842 = vunpack.c.l.b16 %v2108
    %v2843 = vunpack.c.h.b16 %v2108
    %v2844 = vunpack.c.l.b16 %v2109
    %v2845 = vunpack.c.h.b16 %v2109
    %v2846 = vunpack.c.l.b16 %v2110
    %v2847 = vunpack.c.h.b16 %v2110
    %v2848 = vunpack.c.l.b16 %v2111
    %v2849 = vunpack.c.h.b16 %v2111
    %v2850 = vunpack.c.l.b16 %v2112
    %v2851 = vunpack.c.h.b16 %v2112
    %v2852 = vunpack.c.l.b16 %v2113
    %v2853 = vunpack.c.h.b16 %v2113
    %v2854 = vunpack.c.l.b16 %v2114
    %v2855 = vunpack.c.h.b16 %v2114
    %v2856 = vunpack.c.l.b16 %v2115
    %v2857 = vunpack.c.h.b16 %v2115
    %v2858 = vunpack.c.l.b16 %v2116
    %v2859 = vunpack.c.h.b16 %v2116
    %v2860 = vunpack.c.l.b16 %v2117
    %v2861 = vunpack.c.h.b16 %v2117
    %v2862 = vunpack.c.l.b16 %v2118
    %v2863 = vunpack.c.h.b16 %v2118
    %v2864 = vunpack.c.l.b16 %v2119
    %v2865 = vunpack.c.h.b16 %v2119
    %v2866 = vunpack.c.l.b16 %v2120
    %v2867 = vunpack.c.h.b16 %v2120
    %v2868 = vunpack.c.l.b16 %v2121
    %v2869 = vunpack.c.h.b16 %v2121
    %v2870 = vunpack.c.l.b16 %v2122
    %v2871 = vunpack.c.h.b16 %v2122
    %v2872 = vunpack.c.l.b16 %v2123
    %v2873 = vunpack.c.h.b16 %v2123
    %v2874 = vunpack.c.l.b16 %v2124
    %v2875 = vunpack.c.h.b16 %v2124
    %v2876 = vunpack.c.l.b16 %v2125
    %v2877 = vunpack.c.h.b16 %v2125
    %v2878 = vunpack.c.l.b16 %v2126
    %v2879 = vunpack.c.h.b16 %v2126
    %v2880 = vunpack.c.l.b16 %v2127
    %v2881 = vunpack.c.h.b16 %v2127
    %v2882 = vunpack.c.l.b16 %v2128
    %v2883 = vunpack.c.h.b16 %v2128
    %v2884 = vunpack.c.l.b16 %v2129
    %v2885 = vunpack.c.h.b16 %v2129
    %v2886 = vunpack.c.l.b16 %v2130
    %v2887 = vunpack.c.h.b16 %v2130
    %v2888 = vunpack.c.l.b16 %v2131
    %v2889 = vunpack.c.h.b16 %v2131
    %v2890 = vunpack.c.l.b16 %v2132
    %v2891 = vunpack.c.h.b16 %v2132
    %v2892 = vunpack.c.l.b16 %v2133
    %v2893 = vunpack.c.h.b16 %v2133
    %v2894 = vunpack.c.l.b16 %v2134
    %v2895 = vunpack.c.h.b16 %v2134
    %v2896 = vunpack.c.l.b16 %v2135
    %v2897 = vunpack.c.h.b16 %v2135
    %v2898 = vunpack.c.l.b16 %v2136
    %v2899 = vunpack.c.h.b16 %v2136
    %v2900 = vunpack.c.l.b16 %v2137
    %v2901 = vunpack.c.h.b16 %v2137
    %v2902 = vunpack.c.l.b16 %v2138
    %v2903 = vunpack.c.h.b16 %v2138
    %v2904 = vunpack.c.l.b16 %v2139
    %v2905 = vunpack.c.h.b16 %v2139
    %v2906 = vunpack.c.l.b16 %v2140
    %v2907 = vunpack.c.h.b16 %v2140
    %v2908 = vunpack.c.l.b16 %v2141
    %v2909 = vunpack.c.h.b16 %v2141
    %v2910 = vunpack.c.l.b16 %v2142
    %v2911 = vunpack.c.h.b16 %v2142
    %v2912 = vunpack.c.l.b16 %v2143
    %v2913 = vunpack.c.h.b16 %v2143
    %v2914 = vunpack.c.l.b16 %v2144
    %v2915 = vunpack.c.h.b16 %v2144
    %v2916 = vunpack.c.l.b16 %v2145
    %v2917 = vunpack.c.h.b16 %v2145
    %v2918 = vunpack.c.l.b16 %v2146
    %v2919 = vunpack.c.h.b16 %v2146
    %v2920 = vunpack.c.l.b16 %v2147
    %v2921 = vunpack.c.h.b16 %v2147
    %v2922 = vunpack.c.l.b16 %v2148
    %v2923 = vunpack.c.h.b16 %v2148
    %v2924 = vunpack.c.l.b16 %v2149
    %v2925 = vunpack.c.h.b16 %v2149
    %v2926 = vunpack.c.l.b16 %v2150
    %v2927 = vunpack.c.h.b16 %v2150
    %v2928 = vunpack.c.l.b16 %v2151
    %v2929 = vunpack.c.h.b16 %v2151
    %v2930 = vunpack.c.l.b16 %v2152
    %v2931 = vunpack.c.h.b16 %v2152
    %v2932 = vunpack.c.l.b16 %v2153
    %v2933 = vunpack.c.h.b16 %v2153
    %v2934 = vunpack.c.l.b16 %v2154
    %v2935 = vunpack.c.h.b16 %v2154
    %v2936 = vunpack.c.l.b16 %v2155
    %v2937 = vunpack.c.h.b16 %v2155
    %v2938 = vunpack.c.l.b16 %v2156
    %v2939 = vunpack.c.h.b16 %v2156
    %v2940 = vunpack.c.l.b16 %v2157
    %v2941 = vunpack.c.h.b16 %v2157
    %v2942 = vunpack.c.l.b16 %v2158
    %v2943 = vunpack.c.h.b16 %v2158
    %v2944 = vunpack.c.l.b16 %v2159
    %v2945 = vunpack.c.h.b16 %v2159
    %v2946 = vunpack.c.l.b16 %v2160
    %v2947 = vunpack.c.h.b16 %v2160
    %v2948 = vunpack.c.l.b16 %v2161
    %v2949 = vunpack.c.h.b16 %v2161
    %v2950 = vunpack.c.l.b16 %v2162
    %v2951 = vunpack.c.h.b16 %v2162
    %v2952 = vunpack.c.l.b16 %v2163
    %v2953 = vunpack.c.h.b16 %v2163
    %v2954 = vunpack.c.l.b16 %v2164
    %v2955 = vunpack.c.h.b16 %v2164
    %v2956 = vunpack.c.l.b16 %v2165
    %v2957 = vunpack.c.h.b16 %v2165
    %v2958 = vunpack.c.l.b16 %v2166
    %v2959 = vunpack.c.h.b16 %v2166
    %v2960 = vunpack.c.l.b16 %v2167
    %v2961 = vunpack.c.h.b16 %v2167
    %v2962 = vunpack.c.l.b16 %v2168
    %v2963 = vunpack.c.h.b16 %v2168
    %v2964 = vunpack.c.l.b16 %v2169
    %v2965 = vunpack.c.h.b16 %v2169
    %v2966 = vunpack.c.l.b16 %v2170
    %v2967 = vunpack.c.h.b16 %v2170
    %v2968 = vunpack.c.l.b16 %v2171
    %v2969 = vunpack.c.h.b16 %v2171
    %v2970 = vunpack.c.l.b16 %v2172
    %v2971 = vunpack.c.h.b16 %v2172
    %v2972 = vunpack.c.l.b16 %v2173
    %v2973 = vunpack.c.h.b16 %v2173
    %v2974 = vunpack.c.l.b16 %v2174
    %v2975 = vunpack.c.h.b16 %v2174
    %v2976 = vunpack.c.l.b16 %v2175
    %v2977 = vunpack.c.h.b16 %v2175
    %v2978 = vunpack.c.l.b16 %v2176
    %v2979 = vunpack.c.h.b16 %v2176
    %v2980 = vunpack.c.l.b16 %v2177
    %v2981 = vunpack.c.h.b16 %v2177
    %v2982 = vunpack.c.l.b16 %v2178
    %v2983 = vunpack.c.h.b16 %v2178
    %v2984 = vunpack.c.l.b16 %v2179
    %v2985 = vunpack.c.h.b16 %v2179
    %v2986 = vunpack.c.l.b16 %v2180
    %v2987 = vunpack.c.h.b16 %v2180
    %v2988 = vunpack.c.l.b16 %v2181
    %v2989 = vunpack.c.h.b16 %v2181
    %v2990 = vunpack.c.l.b16 %v2182
    %v2991 = vunpack.c.h.b16 %v2182
    %v2992 = vunpack.c.l.b16 %v2183
    %v2993 = vunpack.c.h.b16 %v2183
    %v2994 = vunpack.c.l.b16 %v2184
    %v2995 = vunpack.c.h.b16 %v2184
    %v2996 = vunpack.c.l.b16 %v2185
    %v2997 = vunpack.c.h.b16 %v2185
    %v2998 = vunpack.c.l.b16 %v2186
    %v2999 = vunpack.c.h.b16 %v2186
    %v3000 = vunpack.c.l.b16 %v2187
    %v3001 = vunpack.c.h.b16 %v2187
    %v3002 = vunpack.c.l.b16 %v2188
    %v3003 = vunpack.c.h.b16 %v2188
    %v3004 = vunpack.c.l.b16 %v2189
    %v3005 = vunpack.c.h.b16 %v2189
    %v3006 = vunpack.c.l.b16 %v2190
    %v3007 = vunpack.c.h.b16 %v2190
    %v3008 = vunpack.c.l.b16 %v2191
    %v3009 = vunpack.c.h.b16 %v2191
    %v3010 = vunpack.c.l.b16 %v2192
    %v3011 = vunpack.c.h.b16 %v2192
    %v3012 = vunpack.c.l.b16 %v2193
    %v3013 = vunpack.c.h.b16 %v2193
    %v3014 = vunpack.c.l.b16 %v2194
    %v3015 = vunpack.c.h.b16 %v2194
    %v3016 = vunpack.c.l.b16 %v2195
    %v3017 = vunpack.c.h.b16 %v2195
    %v3018 = vunpack.c.l.b16 %v2196
    %v3019 = vunpack.c.h.b16 %v2196
    %v3020 = vunpack.c.l.b16 %v2197
    %v3021 = vunpack.c.h.b16 %v2197
    %v3022 = vunpack.c.l.b16 %v2198
    %v3023 = vunpack.c.h.b16 %v2198
    %v3024 = vunpack.c.l.b16 %v2199
    %v3025 = vunpack.c.h.b16 %v2199
    %v3026 = vunpack.c.l.b16 %v2200
    %v3027 = vunpack.c.h.b16 %v2200
    %v3028 = vunpack.c.l.b16 %v2201
    %v3029 = vunpack.c.h.b16 %v2201
    %v3030 = vunpack.c.l.b16 %v2202
    %v3031 = vunpack.c.h.b16 %v2202
    %v3032 = vunpack.c.l.b16 %v2203
    %v3033 = vunpack.c.h.b16 %v2203
    %v3034 = vunpack.c.l.b16 %v2204
    %v3035 = vunpack.c.h.b16 %v2204
    %v3036 = vunpack.c.l.b16 %v2205
    %v3037 = vunpack.c.h.b16 %v2205
    %v3038 = vunpack.c.l.b16 %v2206
    %v3039 = vunpack.c.h.b16 %v2206
    %v3040 = vunpack.c.l.b16 %v2207
    %v3041 = vunpack.c.h.b16 %v2207
    %v3042 = vunpack.c.l.b16 %v2208
    %v3043 = vunpack.c.h.b16 %v2208
    %v3044 = vunpack.c.l.b16 %v2209
    %v3045 = vunpack.c.h.b16 %v2209
    %v3046 = vunpack.c.l.b16 %v2210
    %v3047 = vunpack.c.h.b16 %v2210
    %v3048 = vunpack.c.l.b16 %v2211
    %v3049 = vunpack.c.h.b16 %v2211
    %v3050 = vunpack.c.l.b16 %v2212
    %v3051 = vunpack.c.h.b16 %v2212
    %v3052 = vunpack.c.l.b16 %v2213
    %v3053 = vunpack.c.h.b16 %v2213
    %v3054 = vunpack.c.l.b16 %v2214
    %v3055 = vunpack.c.h.b16 %v2214
    %v3056 = vunpack.c.l.b16 %v2215
    %v3057 = vunpack.c.h.b16 %v2215
    %v3058 = vunpack.c.l.b16 %v2216
    %v3059 = vunpack.c.h.b16 %v2216
    %v3060 = vunpack.c.l.b16 %v2217
    %v3061 = vunpack.c.h.b16 %v2217
    %v3062 = vunpack.c.l.b16 %v2218
    %v3063 = vunpack.c.h.b16 %v2218
    %v3064 = vunpack.c.l.b16 %v2219
    %v3065 = vunpack.c.h.b16 %v2219
    %v3066 = vunpack.c.l.b16 %v2220
    %v3067 = vunpack.c.h.b16 %v2220
    %v3068 = vunpack.c.l.b16 %v2221
    %v3069 = vunpack.c.h.b16 %v2221
    %v3070 = vunpack.c.l.b16 %v2222
    %v3071 = vunpack.c.h.b16 %v2222
    %v3072 = vunpack.c.l.b16 %v2223
    %v3073 = vunpack.c.h.b16 %v2223
    %v3074 = vunpack.c.l.b16 %v2224
    %v3075 = vunpack.c.h.b16 %v2224
    %v3076 = vunpack.c.l.b16 %v2225
    %v3077 = vunpack.c.h.b16 %v2225
    %v3078 = vunpack.c.l.b16 %v2226
    %v3079 = vunpack.c.h.b16 %v2226
    %v3080 = vunpack.c.l.b16 %v2227
    %v3081 = vunpack.c.h.b16 %v2227
    %v3082 = vunpack.c.l.b16 %v2228
    %v3083 = vunpack.c.h.b16 %v2228
    %v3084 = vunpack.c.l.b16 %v2229
    %v3085 = vunpack.c.h.b16 %v2229
    %v3086 = vpack.c.b16 %v2834, %v2830
    %v3087 = vpack.c.b16 %v2835, %v2831
    %v3088 = vpack.c.b16 %v2836, %v2832
    %v3089 = vpack.c.b16 %v2837, %v2833
    %v3090 = vpack.c.b16 %v2842, %v2838
    %v3091 = vpack.c.b16 %v2843, %v2839
    %v3092 = vpack.c.b16 %v2844, %v2840
    %v3093 = vpack.c.b16 %v2845, %v2841
    %v3094 = vpack.c.b16 %v2850, %v2846
    %v3095 = vpack.c.b16 %v2851, %v2847
    %v3096 = vpack.c.b16 %v2852, %v2848
    %v3097 = vpack.c.b16 %v2853, %v2849
    %v3098 = vpack.c.b16 %v2858, %v2854
    %v3099 = vpack.c.b16 %v2859, %v2855
    %v3100 = vpack.c.b16 %v2860, %v2856
    %v3101 = vpack.c.b16 %v2861, %v2857
    %v3102 = vpack.c.b16 %v2866, %v2862
    %v3103 = vpack.c.b16 %v2867, %v2863
    %v3104 = vpack.c.b16 %v2868, %v2864
    %v3105 = vpack.c.b16 %v2869, %v2865
    %v3106 = vpack.c.b16 %v2874, %v2870
    %v3107 = vpack.c.b16 %v2875, %v2871
    %v3108 = vpack.c.b16 %v2876, %v2872
    %v3109 = vpack.c.b16 %v2877, %v2873
    %v3110 = vpack.c.b16 %v2882, %v2878
    %v3111 = vpack.c.b16 %v2883, %v2879
    %v3112 = vpack.c.b16 %v2884, %v2880
    %v3113 = vpack.c.b16 %v2885, %v2881
    %v3114 = vpack.c.b16 %v2890, %v2886
    %v3115 = vpack.c.b16 %v2891, %v2887
    %v3116 = vpack.c.b16 %v2892, %v2888
    %v3117 = vpack.c.b16 %v2893, %v2889
    %v3118 = vpack.c.b16 %v2898, %v2894
    %v3119 = vpack.c.b16 %v2899, %v2895
    %v3120 = vpack.c.b16 %v2900, %v2896
    %v3121 = vpack.c.b16 %v2901, %v2897
    %v3122 = vpack.c.b16 %v2906, %v2902
    %v3123 = vpack.c.b16 %v2907, %v2903
    %v3124 = vpack.c.b16 %v2908, %v2904
    %v3125 = vpack.c.b16 %v2909, %v2905
    %v3126 = vpack.c.b16 %v2914, %v2910
    %v3127 = vpack.c.b16 %v2915, %v2911
    %v3128 = vpack.c.b16 %v2916, %v2912
    %v3129 = vpack.c.b16 %v2917, %v2913
    %v3130 = vpack.c.b16 %v2922, %v2918
    %v3131 = vpack.c.b16 %v2923, %v2919
    %v3132 = vpack.c.b16 %v2924, %v2920
    %v3133 = vpack.c.b16 %v2925, %v2921
    %v3134 = vpack.c.b16 %v2930, %v2926
    %v3135 = vpack.c.b16 %v2931, %v2927
    %v3136 = vpack.c.b16 %v2932, %v2928
    %v3137 = vpack.c.b16 %v2933, %v2929
    %v3138 = vpack.c.b16 %v2938, %v2934
    %v3139 = vpack.c.b16 %v2939, %v2935
    %v3140 = vpack.c.b16 %v2940, %v2936
    %v3141 = vpack.c.b16 %v2941, %v2937
    %v3142 = vpack.c.b16 %v2946, %v2942
    %v3143 = vpack.c.b16 %v2947, %v2943
    %v3144 = vpack.c.b16 %v2948, %v2944
    %v3145 = vpack.c.b16 %v2949, %v2945
    %v3146 = vpack.c.b16 %v2954, %v2950
    %v3147 = vpack.c.b16 %v2955, %v2951
    %v3148 = vpack.c.b16 %v2956, %v2952
    %v3149 = vpack.c.b16 %v2957, %v2953
    %v3150 = vpack.c.b16 %v2962, %v2958
    %v3151 = vpack.c.b16 %v2963, %v2959
    %v3152 = vpack.c.b16 %v2964, %v2960
    %v3153 = vpack.c.b16 %v2965, %v2961
    %v3154 = vpack.c.b16 %v2970, %v2966
    %v3155 = vpack.c.b16 %v2971, %v2967
    %v3156 = vpack.c.b16 %v2972, %v2968
    %v3157 = vpack.c.b16 %v2973, %v2969
    %v3158 = vpack.c.b16 %v2978, %v2974
    %v3159 = vpack.c.b16 %v2979, %v2975
    %v3160 = vpack.c.b16 %v2980, %v2976
    %v3161 = vpack.c.b16 %v2981, %v2977
    %v3162 = vpack.c.b16 %v2986, %v2982
    %v3163 = vpack.c.b16 %v2987, %v2983
    %v3164 = vpack.c.b16 %v2988, %v2984
    %v3165 = vpack.c.b16 %v2989, %v2985
    %v3166 = vpack.c.b16 %v2994, %v2990
    %v3167 = vpack.c.b16 %v2995, %v2991
    %v3168 = vpack.c.b16 %v2996, %v2992
    %v3169 = vpack.c.b16 %v2997, %v2993
    %v3170 = vpack.c.b16 %v3002, %v2998
    %v3171 = vpack.c.b16 %v3003, %v2999
    %v3172 = vpack.c.b16 %v3004, %v3000
    %v3173 = vpack.c.b16 %v3005, %v3001
    %v3174 = vpack.c.b16 %v3010, %v3006
    %v3175 = vpack.c.b16 %v3011, %v3007
    %v3176 = vpack.c.b16 %v3012, %v3008
    %v3177 = vpack.c.b16 %v3013, %v3009
    %v3178 = vpack.c.b16 %v3018, %v3014
    %v3179 = vpack.c.b16 %v3019, %v3015
    %v3180 = vpack.c.b16 %v3020, %v3016
    %v3181 = vpack.c.b16 %v3021, %v3017
    %v3182 = vpack.c.b16 %v3026, %v3022
    %v3183 = vpack.c.b16 %v3027, %v3023
    %v3184 = vpack.c.b16 %v3028, %v3024
    %v3185 = vpack.c.b16 %v3029, %v3025
    %v3186 = vpack.c.b16 %v3034, %v3030
    %v3187 = vpack.c.b16 %v3035, %v3031
    %v3188 = vpack.c.b16 %v3036, %v3032
    %v3189 = vpack.c.b16 %v3037, %v3033
    %v3190 = vpack.c.b16 %v3042, %v3038
    %v3191 = vpack.c.b16 %v3043, %v3039
    %v3192 = vpack.c.b16 %v3044, %v3040
    %v3193 = vpack.c.b16 %v3045, %v3041
    %v3194 = vpack.c.b16 %v3050, %v3046
    %v3195 = vpack.c.b16 %v3051, %v3047
    %v3196 = vpack.c.b16 %v3052, %v3048
    %v3197 = vpack.c.b16 %v3053, %v3049
    %v3198 = vpack.c.b16 %v3058, %v3054
    %v3199 = vpack.c.b16 %v3059, %v3055
    %v3200 = vpack.c.b16 %v3060, %v3056
    %v3201 = vpack.c.b16 %v3061, %v3057
    %v3202 = vpack.c.b16 %v3066, %v3062
    %v3203 = vpack.c.b16 %v3067, %v3063
    %v3204 = vpack.c.b16 %v3068, %v3064
    %v3205 = vpack.c.b16 %v3069, %v3065
    %v3206 = vpack.c.b16 %v3074, %v3070
    %v3207 = vpack.c.b16 %v3075, %v3071
    %v3208 = vpack.c.b16 %v3076, %v3072
    %v3209 = vpack.c.b16 %v3077, %v3073
    %v3210 = vpack.c.b16 %v3082, %v3078
    %v3211 = vpack.c.b16 %v3083, %v3079
    %v3212 = vpack.c.b16 %v3084, %v3080
    %v3213 = vpack.c.b16 %v3085, %v3081
    %3342 = vmatprep.subr.bf16.mxu0 %v3087
    %3343 = vmatpush1.bf16.msra.mxu0 %v3086
    %3344 = vmatprep.subr.bf16.mxu0 %v3091
    %3345 = vmatpush1.bf16.msra.mxu0 %v3090
    %3346 = vmatprep.subr.bf16.mxu0 %v3095
    %3347 = vmatpush1.bf16.msra.mxu0 %v3094
    %3348 = vmatprep.subr.bf16.mxu0 %v3099
    %3349 = vmatpush1.bf16.msra.mxu0 %v3098
    %3350 = vmatprep.subr.bf16.mxu0 %v3103
    %3351 = vmatpush1.bf16.msra.mxu0 %v3102
    %3352 = vmatprep.subr.bf16.mxu0 %v3107
    %3353 = vmatpush1.bf16.msra.mxu0 %v3106
    %3354 = vmatprep.subr.bf16.mxu0 %v3111
    %3355 = vmatpush1.bf16.msra.mxu0 %v3110
    %3356 = vmatprep.subr.bf16.mxu0 %v3115
    %3357 = vmatpush1.bf16.msra.mxu0 %v3114
    %3358 = vmatprep.subr.bf16.mxu0 %v3119
    %3359 = vmatpush1.bf16.msra.mxu0 %v3118
    %3360 = vmatprep.subr.bf16.mxu0 %v3123
    %3361 = vmatpush1.bf16.msra.mxu0 %v3122
    %3362 = vmatprep.subr.bf16.mxu0 %v3127
    %3363 = vmatpush1.bf16.msra.mxu0 %v3126
    %3364 = vmatprep.subr.bf16.mxu0 %v3131
    %3365 = vmatpush1.bf16.msra.mxu0 %v3130
    %3366 = vmatprep.subr.bf16.mxu0 %v3135
    %3367 = vmatpush1.bf16.msra.mxu0 %v3134
    %3368 = vmatprep.subr.bf16.mxu0 %v3139
    %3369 = vmatpush1.bf16.msra.mxu0 %v3138
    %3370 = vmatprep.subr.bf16.mxu0 %v3143
    %3371 = vmatpush1.bf16.msra.mxu0 %v3142
    %3372 = vmatprep.subr.bf16.mxu0 %v3147
    %3373 = vmatpush1.bf16.msra.mxu0 %v3146
    %3374 = vmatprep.mubr.bf16.mxu0 %v2099
    %3375 = vmatmul.mubr.bf16.gmra.mrb[0].mxu0 %v2098
    %v3376 = vpop.f32.mrb[0].mxu0
    %v3377 = vadd.f32 %v2651, %v3376
    %v3378 = vpop.f32.mrb[0].mxu0
    %v3379 = vadd.f32 %v2653, %v3378
    %v3380 = vpop.f32.mrb[0].mxu0
    %v3381 = vadd.f32 %v2655, %v3380
    %v3382 = vpop.f32.mrb[0].mxu0
    %v3383 = vadd.f32 %v2657, %v3382
    %3384 = vdwg.mxu0
    %3385 = vmatprep.subr.bf16.mxu0 %v3151
    %3386 = vmatpush1.bf16.msra.mxu0 %v3150
    %3387 = vmatprep.subr.bf16.mxu0 %v3155
    %3388 = vmatpush1.bf16.msra.mxu0 %v3154
    %3389 = vmatprep.subr.bf16.mxu0 %v3159
    %3390 = vmatpush1.bf16.msra.mxu0 %v3158
    %3391 = vmatprep.subr.bf16.mxu0 %v3163
    %3392 = vmatpush1.bf16.msra.mxu0 %v3162
    %3393 = vmatprep.subr.bf16.mxu0 %v3167
    %3394 = vmatpush1.bf16.msra.mxu0 %v3166
    %3395 = vmatprep.subr.bf16.mxu0 %v3171
    %3396 = vmatpush1.bf16.msra.mxu0 %v3170
    %3397 = vmatprep.subr.bf16.mxu0 %v3175
    %3398 = vmatpush1.bf16.msra.mxu0 %v3174
    %3399 = vmatprep.subr.bf16.mxu0 %v3179
    %3400 = vmatpush1.bf16.msra.mxu0 %v3178
    %3401 = vmatprep.subr.bf16.mxu0 %v3183
    %3402 = vmatpush1.bf16.msra.mxu0 %v3182
    %3403 = vmatprep.subr.bf16.mxu0 %v3187
    %3404 = vmatpush1.bf16.msra.mxu0 %v3186
    %3405 = vmatprep.subr.bf16.mxu0 %v3191
    %3406 = vmatpush1.bf16.msra.mxu0 %v3190
    %3407 = vmatprep.subr.bf16.mxu0 %v3195
    %3408 = vmatpush1.bf16.msra.mxu0 %v3194
    %3409 = vmatprep.subr.bf16.mxu0 %v3199
    %3410 = vmatpush1.bf16.msra.mxu0 %v3198
    %3411 = vmatprep.subr.bf16.mxu0 %v3203
    %3412 = vmatpush1.bf16.msra.mxu0 %v3202
    %3413 = vmatprep.subr.bf16.mxu0 %v3207
    %3414 = vmatpush1.bf16.msra.mxu0 %v3206
    %3415 = vmatprep.subr.bf16.mxu0 %v3211
    %3416 = vmatpush1.bf16.msra.mxu0 %v3210
    %3417 = vmatprep.mubr.bf16.mxu0 %v2101
    %3418 = vmatmul.mubr.bf16.gmra.mrb[0].mxu0 %v2100
    %v3419 = vpop.f32.mrb[0].mxu0
    %v3420 = vadd.f32 %v3377, %v3419
    %v3421 = vpop.f32.mrb[0].mxu0
    %v3422 = vadd.f32 %v3379, %v3421
    %v3423 = vpop.f32.mrb[0].mxu0
    %v3424 = vadd.f32 %v3381, %v3423
    %v3425 = vpop.f32.mrb[0].mxu0
    %v3426 = vadd.f32 %v3383, %v3425
    %3427 = vdwg.mxu0
    %3428 = vmatprep.subr.bf16.mxu0 %v3089
    %3429 = vmatpush1.bf16.msra.mxu0 %v3088
    %3430 = vmatprep.subr.bf16.mxu0 %v3093
    %3431 = vmatpush1.bf16.msra.mxu0 %v3092
    %3432 = vmatprep.subr.bf16.mxu0 %v3097
    %3433 = vmatpush1.bf16.msra.mxu0 %v3096
    %3434 = vmatprep.subr.bf16.mxu0 %v3101
    %3435 = vmatpush1.bf16.msra.mxu0 %v3100
    %3436 = vmatprep.subr.bf16.mxu0 %v3105
    %3437 = vmatpush1.bf16.msra.mxu0 %v3104
    %3438 = vmatprep.subr.bf16.mxu0 %v3109
    %3439 = vmatpush1.bf16.msra.mxu0 %v3108
    %3440 = vmatprep.subr.bf16.mxu0 %v3113
    %3441 = vmatpush1.bf16.msra.mxu0 %v3112
    %3442 = vmatprep.subr.bf16.mxu0 %v3117
    %3443 = vmatpush1.bf16.msra.mxu0 %v3116
    %3444 = vmatprep.subr.bf16.mxu0 %v3121
    %3445 = vmatpush1.bf16.msra.mxu0 %v3120
    %3446 = vmatprep.subr.bf16.mxu0 %v3125
    %3447 = vmatpush1.bf16.msra.mxu0 %v3124
    %3448 = vmatprep.subr.bf16.mxu0 %v3129
    %3449 = vmatpush1.bf16.msra.mxu0 %v3128
    %3450 = vmatprep.subr.bf16.mxu0 %v3133
    %3451 = vmatpush1.bf16.msra.mxu0 %v3132
    %3452 = vmatprep.subr.bf16.mxu0 %v3137
    %3453 = vmatpush1.bf16.msra.mxu0 %v3136
    %3454 = vmatprep.subr.bf16.mxu0 %v3141
    %3455 = vmatpush1.bf16.msra.mxu0 %v3140
    %3456 = vmatprep.subr.bf16.mxu0 %v3145
    %3457 = vmatpush1.bf16.msra.mxu0 %v3144
    %3458 = vmatprep.subr.bf16.mxu0 %v3149
    %3459 = vmatpush1.bf16.msra.mxu0 %v3148
    %3460 = vmatprep.mubr.bf16.mxu0 %v2099
    %3461 = vmatmul.mubr.bf16.gmra.mrb[0].mxu0 %v2098
    %v3462 = vpop.f32.mrb[0].mxu0
    %v3463 = vadd.f32 %v2694, %v3462
    %v3464 = vpop.f32.mrb[0].mxu0
    %v3465 = vadd.f32 %v2696, %v3464
    %v3466 = vpop.f32.mrb[0].mxu0
    %v3467 = vadd.f32 %v2698, %v3466
    %v3468 = vpop.f32.mrb[0].mxu0
    %v3469 = vadd.f32 %v2700, %v3468
    %3470 = vdwg.mxu0
    %3471 = vmatprep.subr.bf16.mxu0 %v3153
    %3472 = vmatpush1.bf16.msra.mxu0 %v3152
    %3473 = vmatprep.subr.bf16.mxu0 %v3157
    %3474 = vmatpush1.bf16.msra.mxu0 %v3156
    %3475 = vmatprep.subr.bf16.mxu0 %v3161
    %3476 = vmatpush1.bf16.msra.mxu0 %v3160
    %3477 = vmatprep.subr.bf16.mxu0 %v3165
    %3478 = vmatpush1.bf16.msra.mxu0 %v3164
    %3479 = vmatprep.subr.bf16.mxu0 %v3169
    %3480 = vmatpush1.bf16.msra.mxu0 %v3168
    %3481 = vmatprep.subr.bf16.mxu0 %v3173
    %3482 = vmatpush1.bf16.msra.mxu0 %v3172
    %3483 = vmatprep.subr.bf16.mxu0 %v3177
    %3484 = vmatpush1.bf16.msra.mxu0 %v3176
    %3485 = vmatprep.subr.bf16.mxu0 %v3181
    %3486 = vmatpush1.bf16.msra.mxu0 %v3180
    %3487 = vmatprep.subr.bf16.mxu0 %v3185
    %3488 = vmatpush1.bf16.msra.mxu0 %v3184
    %3489 = vmatprep.subr.bf16.mxu0 %v3189
    %3490 = vmatpush1.bf16.msra.mxu0 %v3188
    %3491 = vmatprep.subr.bf16.mxu0 %v3193
    %3492 = vmatpush1.bf16.msra.mxu0 %v3192
    %3493 = vmatprep.subr.bf16.mxu0 %v3197
    %3494 = vmatpush1.bf16.msra.mxu0 %v3196
    %3495 = vmatprep.subr.bf16.mxu0 %v3201
    %3496 = vmatpush1.bf16.msra.mxu0 %v3200
    %3497 = vmatprep.subr.bf16.mxu0 %v3205
    %3498 = vmatpush1.bf16.msra.mxu0 %v3204
    %3499 = vmatprep.subr.bf16.mxu0 %v3209
    %3500 = vmatpush1.bf16.msra.mxu0 %v3208
    %3501 = vmatprep.subr.bf16.mxu0 %v3213
    %3502 = vmatpush1.bf16.msra.mxu0 %v3212
    %3503 = vmatprep.mubr.bf16.mxu0 %v2101
    %3504 = vmatmul.mubr.bf16.gmra.mrb[0].mxu0 %v2100
    %v3505 = vpop.f32.mrb[0].mxu0
    %v3506 = vadd.f32 %v3463, %v3505
    %v3507 = vpop.f32.mrb[0].mxu0
    %v3508 = vadd.f32 %v3465, %v3507
    %v3509 = vpop.f32.mrb[0].mxu0
    %v3510 = vadd.f32 %v3467, %v3509
    %v3511 = vpop.f32.mrb[0].mxu0
    %v3512 = vadd.f32 %v3469, %v3511
    %3513 = vdwg.mxu0
    %v3514 = vld [vmem:[%s7] sm:$0xf]
    %v3516 = vlaneseq
    %v3517 = vshrl.u32 %v3516, 7
    %v3518 = vsub.s32 0, %v3517
    %v3519 = vrot.slane %v3514, %v3518
    %v3520 = vlaneseq
    %v3521 = vshrl.u32 %v3520, 7
    %v3522 = vsub.s32 1, %v3521
    %v3523 = vrot.slane %v3514, %v3522
    %v3524 = vlaneseq
    %v3525 = vshrl.u32 %v3524, 7
    %v3526 = vsub.s32 2, %v3525
    %v3527 = vrot.slane %v3514, %v3526
    %v3528 = vlaneseq
    %v3529 = vshrl.u32 %v3528, 7
    %v3530 = vsub.s32 3, %v3529
    %v3531 = vrot.slane %v3514, %v3530
    %v3536 = vadd.f32 %v3420, %v3519
    %v3537 = vadd.f32 %v3422, %v3523
    %v3538 = vadd.f32 %v3506, %v3527
    %v3539 = vadd.f32 %v3508, %v3531
    %v3540 = vadd.f32 %v3424, %v3519
    %v3541 = vadd.f32 %v3426, %v3523
    %v3542 = vadd.f32 %v3510, %v3527
    %v3543 = vadd.f32 %v3512, %v3531
    %v3544 = vpack.c.bf16 %v3540, %v3536
    %v3545 = vpack.c.bf16 %v3541, %v3537
    %v3546 = vpack.c.bf16 %v3542, %v3538
    %v3547 = vpack.c.bf16 %v3543, %v3539
    %v3548 = vld [vmem:[%s8] sm:$0xff]
    %v3549 = vld [vmem:[%s8 + $0x8] sm:$0xff]
    %v3550 = vld [vmem:[%s8 + $0x10] sm:$0xff]
    %v3551 = vld [vmem:[%s8 + $0x18] sm:$0xff]
    %v3552 = vld [vmem:[%s8 + $0x20] sm:$0xff]
    %v3553 = vld [vmem:[%s8 + $0x28] sm:$0xff]
    %v3554 = vld [vmem:[%s8 + $0x30] sm:$0xff]
    %v3555 = vld [vmem:[%s8 + $0x38] sm:$0xff]
    %v3556 = vld [vmem:[%s8 + $0x40] sm:$0xff]
    %v3557 = vld [vmem:[%s8 + $0x48] sm:$0xff]
    %v3558 = vld [vmem:[%s8 + $0x50] sm:$0xff]
    %v3559 = vld [vmem:[%s8 + $0x58] sm:$0xff]
    %v3560 = vld [vmem:[%s8 + $0x60] sm:$0xff]
    %v3561 = vld [vmem:[%s8 + $0x68] sm:$0xff]
    %v3562 = vld [vmem:[%s8 + $0x70] sm:$0xff]
    %v3563 = vld [vmem:[%s8 + $0x78] sm:$0xff]
    %v3564 = vld [vmem:[%s8 + $0x80] sm:$0xff]
    %v3565 = vld [vmem:[%s8 + $0x88] sm:$0xff]
    %v3566 = vld [vmem:[%s8 + $0x90] sm:$0xff]
    %v3567 = vld [vmem:[%s8 + $0x98] sm:$0xff]
    %v3568 = vld [vmem:[%s8 + $0xa0] sm:$0xff]
    %v3569 = vld [vmem:[%s8 + $0xa8] sm:$0xff]
    %v3570 = vld [vmem:[%s8 + $0xb0] sm:$0xff]
    %v3571 = vld [vmem:[%s8 + $0xb8] sm:$0xff]
    %v3572 = vld [vmem:[%s8 + $0xc0] sm:$0xff]
    %v3573 = vld [vmem:[%s8 + $0xc8] sm:$0xff]
    %v3574 = vld [vmem:[%s8 + $0xd0] sm:$0xff]
    %v3575 = vld [vmem:[%s8 + $0xd8] sm:$0xff]
    %v3576 = vld [vmem:[%s8 + $0xe0] sm:$0xff]
    %v3577 = vld [vmem:[%s8 + $0xe8] sm:$0xff]
    %v3578 = vld [vmem:[%s8 + $0xf0] sm:$0xff]
    %v3579 = vld [vmem:[%s8 + $0xf8] sm:$0xff]
    %v3580 = vld [vmem:[%s8 + $0x100] sm:$0xff]
    %v3581 = vld [vmem:[%s8 + $0x108] sm:$0xff]
    %v3582 = vld [vmem:[%s8 + $0x110] sm:$0xff]
    %v3583 = vld [vmem:[%s8 + $0x118] sm:$0xff]
    %v3584 = vld [vmem:[%s8 + $0x120] sm:$0xff]
    %v3585 = vld [vmem:[%s8 + $0x128] sm:$0xff]
    %v3586 = vld [vmem:[%s8 + $0x130] sm:$0xff]
    %v3587 = vld [vmem:[%s8 + $0x138] sm:$0xff]
    %v3588 = vld [vmem:[%s8 + $0x140] sm:$0xff]
    %v3589 = vld [vmem:[%s8 + $0x148] sm:$0xff]
    %v3590 = vld [vmem:[%s8 + $0x150] sm:$0xff]
    %v3591 = vld [vmem:[%s8 + $0x158] sm:$0xff]
    %v3592 = vld [vmem:[%s8 + $0x160] sm:$0xff]
    %v3593 = vld [vmem:[%s8 + $0x168] sm:$0xff]
    %v3594 = vld [vmem:[%s8 + $0x170] sm:$0xff]
    %v3595 = vld [vmem:[%s8 + $0x178] sm:$0xff]
    %v3596 = vld [vmem:[%s8 + $0x180] sm:$0xff]
    %v3597 = vld [vmem:[%s8 + $0x188] sm:$0xff]
    %v3598 = vld [vmem:[%s8 + $0x190] sm:$0xff]
    %v3599 = vld [vmem:[%s8 + $0x198] sm:$0xff]
    %v3600 = vld [vmem:[%s8 + $0x1a0] sm:$0xff]
    %v3601 = vld [vmem:[%s8 + $0x1a8] sm:$0xff]
    %v3602 = vld [vmem:[%s8 + $0x1b0] sm:$0xff]
    %v3603 = vld [vmem:[%s8 + $0x1b8] sm:$0xff]
    %v3604 = vld [vmem:[%s8 + $0x1c0] sm:$0xff]
    %v3605 = vld [vmem:[%s8 + $0x1c8] sm:$0xff]
    %v3606 = vld [vmem:[%s8 + $0x1d0] sm:$0xff]
    %v3607 = vld [vmem:[%s8 + $0x1d8] sm:$0xff]
    %v3608 = vld [vmem:[%s8 + $0x1e0] sm:$0xff]
    %v3609 = vld [vmem:[%s8 + $0x1e8] sm:$0xff]
    %v3610 = vld [vmem:[%s8 + $0x1f0] sm:$0xff]
    %v3611 = vld [vmem:[%s8 + $0x1f8] sm:$0xff]
    %v3612 = vld [vmem:[%s8 + $0x200] sm:$0xff]
    %v3613 = vld [vmem:[%s8 + $0x208] sm:$0xff]
    %v3614 = vld [vmem:[%s8 + $0x210] sm:$0xff]
    %v3615 = vld [vmem:[%s8 + $0x218] sm:$0xff]
    %v3616 = vld [vmem:[%s8 + $0x220] sm:$0xff]
    %v3617 = vld [vmem:[%s8 + $0x228] sm:$0xff]
    %v3618 = vld [vmem:[%s8 + $0x230] sm:$0xff]
    %v3619 = vld [vmem:[%s8 + $0x238] sm:$0xff]
    %v3620 = vld [vmem:[%s8 + $0x240] sm:$0xff]
    %v3621 = vld [vmem:[%s8 + $0x248] sm:$0xff]
    %v3622 = vld [vmem:[%s8 + $0x250] sm:$0xff]
    %v3623 = vld [vmem:[%s8 + $0x258] sm:$0xff]
    %v3624 = vld [vmem:[%s8 + $0x260] sm:$0xff]
    %v3625 = vld [vmem:[%s8 + $0x268] sm:$0xff]
    %v3626 = vld [vmem:[%s8 + $0x270] sm:$0xff]
    %v3627 = vld [vmem:[%s8 + $0x278] sm:$0xff]
    %v3628 = vld [vmem:[%s8 + $0x280] sm:$0xff]
    %v3629 = vld [vmem:[%s8 + $0x288] sm:$0xff]
    %v3630 = vld [vmem:[%s8 + $0x290] sm:$0xff]
    %v3631 = vld [vmem:[%s8 + $0x298] sm:$0xff]
    %v3632 = vld [vmem:[%s8 + $0x2a0] sm:$0xff]
    %v3633 = vld [vmem:[%s8 + $0x2a8] sm:$0xff]
    %v3634 = vld [vmem:[%s8 + $0x2b0] sm:$0xff]
    %v3635 = vld [vmem:[%s8 + $0x2b8] sm:$0xff]
    %v3636 = vld [vmem:[%s8 + $0x2c0] sm:$0xff]
    %v3637 = vld [vmem:[%s8 + $0x2c8] sm:$0xff]
    %v3638 = vld [vmem:[%s8 + $0x2d0] sm:$0xff]
    %v3639 = vld [vmem:[%s8 + $0x2d8] sm:$0xff]
    %v3640 = vld [vmem:[%s8 + $0x2e0] sm:$0xff]
    %v3641 = vld [vmem:[%s8 + $0x2e8] sm:$0xff]
    %v3642 = vld [vmem:[%s8 + $0x2f0] sm:$0xff]
    %v3643 = vld [vmem:[%s8 + $0x2f8] sm:$0xff]
    %v3644 = vld [vmem:[%s8 + $0x300] sm:$0xff]
    %v3645 = vld [vmem:[%s8 + $0x308] sm:$0xff]
    %v3646 = vld [vmem:[%s8 + $0x310] sm:$0xff]
    %v3647 = vld [vmem:[%s8 + $0x318] sm:$0xff]
    %v3648 = vld [vmem:[%s8 + $0x320] sm:$0xff]
    %v3649 = vld [vmem:[%s8 + $0x328] sm:$0xff]
    %v3650 = vld [vmem:[%s8 + $0x330] sm:$0xff]
    %v3651 = vld [vmem:[%s8 + $0x338] sm:$0xff]
    %v3652 = vld [vmem:[%s8 + $0x340] sm:$0xff]
    %v3653 = vld [vmem:[%s8 + $0x348] sm:$0xff]
    %v3654 = vld [vmem:[%s8 + $0x350] sm:$0xff]
    %v3655 = vld [vmem:[%s8 + $0x358] sm:$0xff]
    %v3656 = vld [vmem:[%s8 + $0x360] sm:$0xff]
    %v3657 = vld [vmem:[%s8 + $0x368] sm:$0xff]
    %v3658 = vld [vmem:[%s8 + $0x370] sm:$0xff]
    %v3659 = vld [vmem:[%s8 + $0x378] sm:$0xff]
    %v3660 = vld [vmem:[%s8 + $0x380] sm:$0xff]
    %v3661 = vld [vmem:[%s8 + $0x388] sm:$0xff]
    %v3662 = vld [vmem:[%s8 + $0x390] sm:$0xff]
    %v3663 = vld [vmem:[%s8 + $0x398] sm:$0xff]
    %v3664 = vld [vmem:[%s8 + $0x3a0] sm:$0xff]
    %v3665 = vld [vmem:[%s8 + $0x3a8] sm:$0xff]
    %v3666 = vld [vmem:[%s8 + $0x3b0] sm:$0xff]
    %v3667 = vld [vmem:[%s8 + $0x3b8] sm:$0xff]
    %v3668 = vld [vmem:[%s8 + $0x3c0] sm:$0xff]
    %v3669 = vld [vmem:[%s8 + $0x3c8] sm:$0xff]
    %v3670 = vld [vmem:[%s8 + $0x3d0] sm:$0xff]
    %v3671 = vld [vmem:[%s8 + $0x3d8] sm:$0xff]
    %v3672 = vld [vmem:[%s8 + $0x3e0] sm:$0xff]
    %v3673 = vld [vmem:[%s8 + $0x3e8] sm:$0xff]
    %v3674 = vld [vmem:[%s8 + $0x3f0] sm:$0xff]
    %v3675 = vld [vmem:[%s8 + $0x3f8] sm:$0xff]
    %v3676 = vld [vmem:[%s10] sm:$0xf]
    %v3678 = vlaneseq
    %v3679 = vshrl.u32 %v3678, 7
    %v3680 = vsub.s32 0, %v3679
    %v3681 = vrot.slane %v3676, %v3680
    %v3682 = vlaneseq
    %v3683 = vshrl.u32 %v3682, 7
    %v3684 = vsub.s32 1, %v3683
    %v3685 = vrot.slane %v3676, %v3684
    %v3686 = vlaneseq
    %v3687 = vshrl.u32 %v3686, 7
    %v3688 = vsub.s32 2, %v3687
    %v3689 = vrot.slane %v3676, %v3688
    %v3690 = vlaneseq
    %v3691 = vshrl.u32 %v3690, 7
    %v3692 = vsub.s32 3, %v3691
    %v3693 = vrot.slane %v3676, %v3692
    %v3826 = vunpack.c.l.b16 %v3548
    %v3827 = vunpack.c.h.b16 %v3548
    %v3828 = vunpack.c.l.b16 %v3549
    %v3829 = vunpack.c.h.b16 %v3549
    %v3830 = vunpack.c.l.b16 %v3550
    %v3831 = vunpack.c.h.b16 %v3550
    %v3832 = vunpack.c.l.b16 %v3551
    %v3833 = vunpack.c.h.b16 %v3551
    %v3834 = vunpack.c.l.b16 %v3552
    %v3835 = vunpack.c.h.b16 %v3552
    %v3836 = vunpack.c.l.b16 %v3553
    %v3837 = vunpack.c.h.b16 %v3553
    %v3838 = vunpack.c.l.b16 %v3554
    %v3839 = vunpack.c.h.b16 %v3554
    %v3840 = vunpack.c.l.b16 %v3555
    %v3841 = vunpack.c.h.b16 %v3555
    %v3842 = vunpack.c.l.b16 %v3556
    %v3843 = vunpack.c.h.b16 %v3556
    %v3844 = vunpack.c.l.b16 %v3557
    %v3845 = vunpack.c.h.b16 %v3557
    %v3846 = vunpack.c.l.b16 %v3558
    %v3847 = vunpack.c.h.b16 %v3558
    %v3848 = vunpack.c.l.b16 %v3559
    %v3849 = vunpack.c.h.b16 %v3559
    %v3850 = vunpack.c.l.b16 %v3560
    %v3851 = vunpack.c.h.b16 %v3560
    %v3852 = vunpack.c.l.b16 %v3561
    %v3853 = vunpack.c.h.b16 %v3561
    %v3854 = vunpack.c.l.b16 %v3562
    %v3855 = vunpack.c.h.b16 %v3562
    %v3856 = vunpack.c.l.b16 %v3563
    %v3857 = vunpack.c.h.b16 %v3563
    %v3858 = vunpack.c.l.b16 %v3564
    %v3859 = vunpack.c.h.b16 %v3564
    %v3860 = vunpack.c.l.b16 %v3565
    %v3861 = vunpack.c.h.b16 %v3565
    %v3862 = vunpack.c.l.b16 %v3566
    %v3863 = vunpack.c.h.b16 %v3566
    %v3864 = vunpack.c.l.b16 %v3567
    %v3865 = vunpack.c.h.b16 %v3567
    %v3866 = vunpack.c.l.b16 %v3568
    %v3867 = vunpack.c.h.b16 %v3568
    %v3868 = vunpack.c.l.b16 %v3569
    %v3869 = vunpack.c.h.b16 %v3569
    %v3870 = vunpack.c.l.b16 %v3570
    %v3871 = vunpack.c.h.b16 %v3570
    %v3872 = vunpack.c.l.b16 %v3571
    %v3873 = vunpack.c.h.b16 %v3571
    %v3874 = vunpack.c.l.b16 %v3572
    %v3875 = vunpack.c.h.b16 %v3572
    %v3876 = vunpack.c.l.b16 %v3573
    %v3877 = vunpack.c.h.b16 %v3573
    %v3878 = vunpack.c.l.b16 %v3574
    %v3879 = vunpack.c.h.b16 %v3574
    %v3880 = vunpack.c.l.b16 %v3575
    %v3881 = vunpack.c.h.b16 %v3575
    %v3882 = vunpack.c.l.b16 %v3576
    %v3883 = vunpack.c.h.b16 %v3576
    %v3884 = vunpack.c.l.b16 %v3577
    %v3885 = vunpack.c.h.b16 %v3577
    %v3886 = vunpack.c.l.b16 %v3578
    %v3887 = vunpack.c.h.b16 %v3578
    %v3888 = vunpack.c.l.b16 %v3579
    %v3889 = vunpack.c.h.b16 %v3579
    %v3890 = vunpack.c.l.b16 %v3580
    %v3891 = vunpack.c.h.b16 %v3580
    %v3892 = vunpack.c.l.b16 %v3581
    %v3893 = vunpack.c.h.b16 %v3581
    %v3894 = vunpack.c.l.b16 %v3582
    %v3895 = vunpack.c.h.b16 %v3582
    %v3896 = vunpack.c.l.b16 %v3583
    %v3897 = vunpack.c.h.b16 %v3583
    %v3898 = vunpack.c.l.b16 %v3584
    %v3899 = vunpack.c.h.b16 %v3584
    %v3900 = vunpack.c.l.b16 %v3585
    %v3901 = vunpack.c.h.b16 %v3585
    %v3902 = vunpack.c.l.b16 %v3586
    %v3903 = vunpack.c.h.b16 %v3586
    %v3904 = vunpack.c.l.b16 %v3587
    %v3905 = vunpack.c.h.b16 %v3587
    %v3906 = vunpack.c.l.b16 %v3588
    %v3907 = vunpack.c.h.b16 %v3588
    %v3908 = vunpack.c.l.b16 %v3589
    %v3909 = vunpack.c.h.b16 %v3589
    %v3910 = vunpack.c.l.b16 %v3590
    %v3911 = vunpack.c.h.b16 %v3590
    %v3912 = vunpack.c.l.b16 %v3591
    %v3913 = vunpack.c.h.b16 %v3591
    %v3914 = vunpack.c.l.b16 %v3592
    %v3915 = vunpack.c.h.b16 %v3592
    %v3916 = vunpack.c.l.b16 %v3593
    %v3917 = vunpack.c.h.b16 %v3593
    %v3918 = vunpack.c.l.b16 %v3594
    %v3919 = vunpack.c.h.b16 %v3594
    %v3920 = vunpack.c.l.b16 %v3595
    %v3921 = vunpack.c.h.b16 %v3595
    %v3922 = vunpack.c.l.b16 %v3596
    %v3923 = vunpack.c.h.b16 %v3596
    %v3924 = vunpack.c.l.b16 %v3597
    %v3925 = vunpack.c.h.b16 %v3597
    %v3926 = vunpack.c.l.b16 %v3598
    %v3927 = vunpack.c.h.b16 %v3598
    %v3928 = vunpack.c.l.b16 %v3599
    %v3929 = vunpack.c.h.b16 %v3599
    %v3930 = vunpack.c.l.b16 %v3600
    %v3931 = vunpack.c.h.b16 %v3600
    %v3932 = vunpack.c.l.b16 %v3601
    %v3933 = vunpack.c.h.b16 %v3601
    %v3934 = vunpack.c.l.b16 %v3602
    %v3935 = vunpack.c.h.b16 %v3602
    %v3936 = vunpack.c.l.b16 %v3603
    %v3937 = vunpack.c.h.b16 %v3603
    %v3938 = vunpack.c.l.b16 %v3604
    %v3939 = vunpack.c.h.b16 %v3604
    %v3940 = vunpack.c.l.b16 %v3605
    %v3941 = vunpack.c.h.b16 %v3605
    %v3942 = vunpack.c.l.b16 %v3606
    %v3943 = vunpack.c.h.b16 %v3606
    %v3944 = vunpack.c.l.b16 %v3607
    %v3945 = vunpack.c.h.b16 %v3607
    %v3946 = vunpack.c.l.b16 %v3608
    %v3947 = vunpack.c.h.b16 %v3608
    %v3948 = vunpack.c.l.b16 %v3609
    %v3949 = vunpack.c.h.b16 %v3609
    %v3950 = vunpack.c.l.b16 %v3610
    %v3951 = vunpack.c.h.b16 %v3610
    %v3952 = vunpack.c.l.b16 %v3611
    %v3953 = vunpack.c.h.b16 %v3611
    %v3954 = vunpack.c.l.b16 %v3612
    %v3955 = vunpack.c.h.b16 %v3612
    %v3956 = vunpack.c.l.b16 %v3613
    %v3957 = vunpack.c.h.b16 %v3613
    %v3958 = vunpack.c.l.b16 %v3614
    %v3959 = vunpack.c.h.b16 %v3614
    %v3960 = vunpack.c.l.b16 %v3615
    %v3961 = vunpack.c.h.b16 %v3615
    %v3962 = vunpack.c.l.b16 %v3616
    %v3963 = vunpack.c.h.b16 %v3616
    %v3964 = vunpack.c.l.b16 %v3617
    %v3965 = vunpack.c.h.b16 %v3617
    %v3966 = vunpack.c.l.b16 %v3618
    %v3967 = vunpack.c.h.b16 %v3618
    %v3968 = vunpack.c.l.b16 %v3619
    %v3969 = vunpack.c.h.b16 %v3619
    %v3970 = vunpack.c.l.b16 %v3620
    %v3971 = vunpack.c.h.b16 %v3620
    %v3972 = vunpack.c.l.b16 %v3621
    %v3973 = vunpack.c.h.b16 %v3621
    %v3974 = vunpack.c.l.b16 %v3622
    %v3975 = vunpack.c.h.b16 %v3622
    %v3976 = vunpack.c.l.b16 %v3623
    %v3977 = vunpack.c.h.b16 %v3623
    %v3978 = vunpack.c.l.b16 %v3624
    %v3979 = vunpack.c.h.b16 %v3624
    %v3980 = vunpack.c.l.b16 %v3625
    %v3981 = vunpack.c.h.b16 %v3625
    %v3982 = vunpack.c.l.b16 %v3626
    %v3983 = vunpack.c.h.b16 %v3626
    %v3984 = vunpack.c.l.b16 %v3627
    %v3985 = vunpack.c.h.b16 %v3627
    %v3986 = vunpack.c.l.b16 %v3628
    %v3987 = vunpack.c.h.b16 %v3628
    %v3988 = vunpack.c.l.b16 %v3629
    %v3989 = vunpack.c.h.b16 %v3629
    %v3990 = vunpack.c.l.b16 %v3630
    %v3991 = vunpack.c.h.b16 %v3630
    %v3992 = vunpack.c.l.b16 %v3631
    %v3993 = vunpack.c.h.b16 %v3631
    %v3994 = vunpack.c.l.b16 %v3632
    %v3995 = vunpack.c.h.b16 %v3632
    %v3996 = vunpack.c.l.b16 %v3633
    %v3997 = vunpack.c.h.b16 %v3633
    %v3998 = vunpack.c.l.b16 %v3634
    %v3999 = vunpack.c.h.b16 %v3634
    %v4000 = vunpack.c.l.b16 %v3635
    %v4001 = vunpack.c.h.b16 %v3635
    %v4002 = vunpack.c.l.b16 %v3636
    %v4003 = vunpack.c.h.b16 %v3636
    %v4004 = vunpack.c.l.b16 %v3637
    %v4005 = vunpack.c.h.b16 %v3637
    %v4006 = vunpack.c.l.b16 %v3638
    %v4007 = vunpack.c.h.b16 %v3638
    %v4008 = vunpack.c.l.b16 %v3639
    %v4009 = vunpack.c.h.b16 %v3639
    %v4010 = vunpack.c.l.b16 %v3640
    %v4011 = vunpack.c.h.b16 %v3640
    %v4012 = vunpack.c.l.b16 %v3641
    %v4013 = vunpack.c.h.b16 %v3641
    %v4014 = vunpack.c.l.b16 %v3642
    %v4015 = vunpack.c.h.b16 %v3642
    %v4016 = vunpack.c.l.b16 %v3643
    %v4017 = vunpack.c.h.b16 %v3643
    %v4018 = vunpack.c.l.b16 %v3644
    %v4019 = vunpack.c.h.b16 %v3644
    %v4020 = vunpack.c.l.b16 %v3645
    %v4021 = vunpack.c.h.b16 %v3645
    %v4022 = vunpack.c.l.b16 %v3646
    %v4023 = vunpack.c.h.b16 %v3646
    %v4024 = vunpack.c.l.b16 %v3647
    %v4025 = vunpack.c.h.b16 %v3647
    %v4026 = vunpack.c.l.b16 %v3648
    %v4027 = vunpack.c.h.b16 %v3648
    %v4028 = vunpack.c.l.b16 %v3649
    %v4029 = vunpack.c.h.b16 %v3649
    %v4030 = vunpack.c.l.b16 %v3650
    %v4031 = vunpack.c.h.b16 %v3650
    %v4032 = vunpack.c.l.b16 %v3651
    %v4033 = vunpack.c.h.b16 %v3651
    %v4034 = vunpack.c.l.b16 %v3652
    %v4035 = vunpack.c.h.b16 %v3652
    %v4036 = vunpack.c.l.b16 %v3653
    %v4037 = vunpack.c.h.b16 %v3653
    %v4038 = vunpack.c.l.b16 %v3654
    %v4039 = vunpack.c.h.b16 %v3654
    %v4040 = vunpack.c.l.b16 %v3655
    %v4041 = vunpack.c.h.b16 %v3655
    %v4042 = vunpack.c.l.b16 %v3656
    %v4043 = vunpack.c.h.b16 %v3656
    %v4044 = vunpack.c.l.b16 %v3657
    %v4045 = vunpack.c.h.b16 %v3657
    %v4046 = vunpack.c.l.b16 %v3658
    %v4047 = vunpack.c.h.b16 %v3658
    %v4048 = vunpack.c.l.b16 %v3659
    %v4049 = vunpack.c.h.b16 %v3659
    %v4050 = vunpack.c.l.b16 %v3660
    %v4051 = vunpack.c.h.b16 %v3660
    %v4052 = vunpack.c.l.b16 %v3661
    %v4053 = vunpack.c.h.b16 %v3661
    %v4054 = vunpack.c.l.b16 %v3662
    %v4055 = vunpack.c.h.b16 %v3662
    %v4056 = vunpack.c.l.b16 %v3663
    %v4057 = vunpack.c.h.b16 %v3663
    %v4058 = vunpack.c.l.b16 %v3664
    %v4059 = vunpack.c.h.b16 %v3664
    %v4060 = vunpack.c.l.b16 %v3665
    %v4061 = vunpack.c.h.b16 %v3665
    %v4062 = vunpack.c.l.b16 %v3666
    %v4063 = vunpack.c.h.b16 %v3666
    %v4064 = vunpack.c.l.b16 %v3667
    %v4065 = vunpack.c.h.b16 %v3667
    %v4066 = vunpack.c.l.b16 %v3668
    %v4067 = vunpack.c.h.b16 %v3668
    %v4068 = vunpack.c.l.b16 %v3669
    %v4069 = vunpack.c.h.b16 %v3669
    %v4070 = vunpack.c.l.b16 %v3670
    %v4071 = vunpack.c.h.b16 %v3670
    %v4072 = vunpack.c.l.b16 %v3671
    %v4073 = vunpack.c.h.b16 %v3671
    %v4074 = vunpack.c.l.b16 %v3672
    %v4075 = vunpack.c.h.b16 %v3672
    %v4076 = vunpack.c.l.b16 %v3673
    %v4077 = vunpack.c.h.b16 %v3673
    %v4078 = vunpack.c.l.b16 %v3674
    %v4079 = vunpack.c.h.b16 %v3674
    %v4080 = vunpack.c.l.b16 %v3675
    %v4081 = vunpack.c.h.b16 %v3675
    %v4082 = vpack.c.b16 %v3830, %v3826
    %v4083 = vpack.c.b16 %v3831, %v3827
    %v4084 = vpack.c.b16 %v3832, %v3828
    %v4085 = vpack.c.b16 %v3833, %v3829
    %v4086 = vpack.c.b16 %v3838, %v3834
    %v4087 = vpack.c.b16 %v3839, %v3835
    %v4088 = vpack.c.b16 %v3840, %v3836
    %v4089 = vpack.c.b16 %v3841, %v3837
    %v4090 = vpack.c.b16 %v3846, %v3842
    %v4091 = vpack.c.b16 %v3847, %v3843
    %v4092 = vpack.c.b16 %v3848, %v3844
    %v4093 = vpack.c.b16 %v3849, %v3845
    %v4094 = vpack.c.b16 %v3854, %v3850
    %v4095 = vpack.c.b16 %v3855, %v3851
    %v4096 = vpack.c.b16 %v3856, %v3852
    %v4097 = vpack.c.b16 %v3857, %v3853
    %v4098 = vpack.c.b16 %v3862, %v3858
    %v4099 = vpack.c.b16 %v3863, %v3859
    %v4100 = vpack.c.b16 %v3864, %v3860
    %v4101 = vpack.c.b16 %v3865, %v3861
    %v4102 = vpack.c.b16 %v3870, %v3866
    %v4103 = vpack.c.b16 %v3871, %v3867
    %v4104 = vpack.c.b16 %v3872, %v3868
    %v4105 = vpack.c.b16 %v3873, %v3869
    %v4106 = vpack.c.b16 %v3878, %v3874
    %v4107 = vpack.c.b16 %v3879, %v3875
    %v4108 = vpack.c.b16 %v3880, %v3876
    %v4109 = vpack.c.b16 %v3881, %v3877
    %v4110 = vpack.c.b16 %v3886, %v3882
    %v4111 = vpack.c.b16 %v3887, %v3883
    %v4112 = vpack.c.b16 %v3888, %v3884
    %v4113 = vpack.c.b16 %v3889, %v3885
    %v4114 = vpack.c.b16 %v3894, %v3890
    %v4115 = vpack.c.b16 %v3895, %v3891
    %v4116 = vpack.c.b16 %v3896, %v3892
    %v4117 = vpack.c.b16 %v3897, %v3893
    %v4118 = vpack.c.b16 %v3902, %v3898
    %v4119 = vpack.c.b16 %v3903, %v3899
    %v4120 = vpack.c.b16 %v3904, %v3900
    %v4121 = vpack.c.b16 %v3905, %v3901
    %v4122 = vpack.c.b16 %v3910, %v3906
    %v4123 = vpack.c.b16 %v3911, %v3907
    %v4124 = vpack.c.b16 %v3912, %v3908
    %v4125 = vpack.c.b16 %v3913, %v3909
    %v4126 = vpack.c.b16 %v3918, %v3914
    %v4127 = vpack.c.b16 %v3919, %v3915
    %v4128 = vpack.c.b16 %v3920, %v3916
    %v4129 = vpack.c.b16 %v3921, %v3917
    %v4130 = vpack.c.b16 %v3926, %v3922
    %v4131 = vpack.c.b16 %v3927, %v3923
    %v4132 = vpack.c.b16 %v3928, %v3924
    %v4133 = vpack.c.b16 %v3929, %v3925
    %v4134 = vpack.c.b16 %v3934, %v3930
    %v4135 = vpack.c.b16 %v3935, %v3931
    %v4136 = vpack.c.b16 %v3936, %v3932
    %v4137 = vpack.c.b16 %v3937, %v3933
    %v4138 = vpack.c.b16 %v3942, %v3938
    %v4139 = vpack.c.b16 %v3943, %v3939
    %v4140 = vpack.c.b16 %v3944, %v3940
    %v4141 = vpack.c.b16 %v3945, %v3941
    %v4142 = vpack.c.b16 %v3950, %v3946
    %v4143 = vpack.c.b16 %v3951, %v3947
    %v4144 = vpack.c.b16 %v3952, %v3948
    %v4145 = vpack.c.b16 %v3953, %v3949
    %v4146 = vpack.c.b16 %v3958, %v3954
    %v4147 = vpack.c.b16 %v3959, %v3955
    %v4148 = vpack.c.b16 %v3960, %v3956
    %v4149 = vpack.c.b16 %v3961, %v3957
    %v4150 = vpack.c.b16 %v3966, %v3962
    %v4151 = vpack.c.b16 %v3967, %v3963
    %v4152 = vpack.c.b16 %v3968, %v3964
    %v4153 = vpack.c.b16 %v3969, %v3965
    %v4154 = vpack.c.b16 %v3974, %v3970
    %v4155 = vpack.c.b16 %v3975, %v3971
    %v4156 = vpack.c.b16 %v3976, %v3972
    %v4157 = vpack.c.b16 %v3977, %v3973
    %v4158 = vpack.c.b16 %v3982, %v3978
    %v4159 = vpack.c.b16 %v3983, %v3979
    %v4160 = vpack.c.b16 %v3984, %v3980
    %v4161 = vpack.c.b16 %v3985, %v3981
    %v4162 = vpack.c.b16 %v3990, %v3986
    %v4163 = vpack.c.b16 %v3991, %v3987
    %v4164 = vpack.c.b16 %v3992, %v3988
    %v4165 = vpack.c.b16 %v3993, %v3989
    %v4166 = vpack.c.b16 %v3998, %v3994
    %v4167 = vpack.c.b16 %v3999, %v3995
    %v4168 = vpack.c.b16 %v4000, %v3996
    %v4169 = vpack.c.b16 %v4001, %v3997
    %v4170 = vpack.c.b16 %v4006, %v4002
    %v4171 = vpack.c.b16 %v4007, %v4003
    %v4172 = vpack.c.b16 %v4008, %v4004
    %v4173 = vpack.c.b16 %v4009, %v4005
    %v4174 = vpack.c.b16 %v4014, %v4010
    %v4175 = vpack.c.b16 %v4015, %v4011
    %v4176 = vpack.c.b16 %v4016, %v4012
    %v4177 = vpack.c.b16 %v4017, %v4013
    %v4178 = vpack.c.b16 %v4022, %v4018
    %v4179 = vpack.c.b16 %v4023, %v4019
    %v4180 = vpack.c.b16 %v4024, %v4020
    %v4181 = vpack.c.b16 %v4025, %v4021
    %v4182 = vpack.c.b16 %v4030, %v4026
    %v4183 = vpack.c.b16 %v4031, %v4027
    %v4184 = vpack.c.b16 %v4032, %v4028
    %v4185 = vpack.c.b16 %v4033, %v4029
    %v4186 = vpack.c.b16 %v4038, %v4034
    %v4187 = vpack.c.b16 %v4039, %v4035
    %v4188 = vpack.c.b16 %v4040, %v4036
    %v4189 = vpack.c.b16 %v4041, %v4037
    %v4190 = vpack.c.b16 %v4046, %v4042
    %v4191 = vpack.c.b16 %v4047, %v4043
    %v4192 = vpack.c.b16 %v4048, %v4044
    %v4193 = vpack.c.b16 %v4049, %v4045
    %v4194 = vpack.c.b16 %v4054, %v4050
    %v4195 = vpack.c.b16 %v4055, %v4051
    %v4196 = vpack.c.b16 %v4056, %v4052
    %v4197 = vpack.c.b16 %v4057, %v4053
    %v4198 = vpack.c.b16 %v4062, %v4058
    %v4199 = vpack.c.b16 %v4063, %v4059
    %v4200 = vpack.c.b16 %v4064, %v4060
    %v4201 = vpack.c.b16 %v4065, %v4061
    %v4202 = vpack.c.b16 %v4070, %v4066
    %v4203 = vpack.c.b16 %v4071, %v4067
    %v4204 = vpack.c.b16 %v4072, %v4068
    %v4205 = vpack.c.b16 %v4073, %v4069
    %v4206 = vpack.c.b16 %v4078, %v4074
    %v4207 = vpack.c.b16 %v4079, %v4075
    %v4208 = vpack.c.b16 %v4080, %v4076
    %v4209 = vpack.c.b16 %v4081, %v4077
    %4338 = vmatprep.subr.bf16.mxu0 %v4083
    %4339 = vmatpush1.bf16.msra.mxu0 %v4082
    %4340 = vmatprep.subr.bf16.mxu0 %v4087
    %4341 = vmatpush1.bf16.msra.mxu0 %v4086
    %4342 = vmatprep.subr.bf16.mxu0 %v4091
    %4343 = vmatpush1.bf16.msra.mxu0 %v4090
    %4344 = vmatprep.subr.bf16.mxu0 %v4095
    %4345 = vmatpush1.bf16.msra.mxu0 %v4094
    %4346 = vmatprep.subr.bf16.mxu0 %v4099
    %4347 = vmatpush1.bf16.msra.mxu0 %v4098
    %4348 = vmatprep.subr.bf16.mxu0 %v4103
    %4349 = vmatpush1.bf16.msra.mxu0 %v4102
    %4350 = vmatprep.subr.bf16.mxu0 %v4107
    %4351 = vmatpush1.bf16.msra.mxu0 %v4106
    %4352 = vmatprep.subr.bf16.mxu0 %v4111
    %4353 = vmatpush1.bf16.msra.mxu0 %v4110
    %4354 = vmatprep.subr.bf16.mxu0 %v4115
    %4355 = vmatpush1.bf16.msra.mxu0 %v4114
    %4356 = vmatprep.subr.bf16.mxu0 %v4119
    %4357 = vmatpush1.bf16.msra.mxu0 %v4118
    %4358 = vmatprep.subr.bf16.mxu0 %v4123
    %4359 = vmatpush1.bf16.msra.mxu0 %v4122
    %4360 = vmatprep.subr.bf16.mxu0 %v4127
    %4361 = vmatpush1.bf16.msra.mxu0 %v4126
    %4362 = vmatprep.subr.bf16.mxu0 %v4131
    %4363 = vmatpush1.bf16.msra.mxu0 %v4130
    %4364 = vmatprep.subr.bf16.mxu0 %v4135
    %4365 = vmatpush1.bf16.msra.mxu0 %v4134
    %4366 = vmatprep.subr.bf16.mxu0 %v4139
    %4367 = vmatpush1.bf16.msra.mxu0 %v4138
    %4368 = vmatprep.subr.bf16.mxu0 %v4143
    %4369 = vmatpush1.bf16.msra.mxu0 %v4142
    %4370 = vmatprep.mubr.bf16.mxu0 %v3545
    %4371 = vmatmul.mubr.bf16.gmra.mrb[0].mxu0 %v3544
    %v4372 = vpop.f32.mrb[0].mxu0
    %v4373 = vadd.f32 %v3681, %v4372
    %v4374 = vpop.f32.mrb[0].mxu0
    %v4375 = vadd.f32 %v3685, %v4374
    %v4376 = vpop.f32.mrb[0].mxu0
    %v4377 = vadd.f32 %v3681, %v4376
    %v4378 = vpop.f32.mrb[0].mxu0
    %v4379 = vadd.f32 %v3685, %v4378
    %4380 = vdwg.mxu0
    %4381 = vmatprep.subr.bf16.mxu0 %v4147
    %4382 = vmatpush1.bf16.msra.mxu0 %v4146
    %4383 = vmatprep.subr.bf16.mxu0 %v4151
    %4384 = vmatpush1.bf16.msra.mxu0 %v4150
    %4385 = vmatprep.subr.bf16.mxu0 %v4155
    %4386 = vmatpush1.bf16.msra.mxu0 %v4154
    %4387 = vmatprep.subr.bf16.mxu0 %v4159
    %4388 = vmatpush1.bf16.msra.mxu0 %v4158
    %4389 = vmatprep.subr.bf16.mxu0 %v4163
    %4390 = vmatpush1.bf16.msra.mxu0 %v4162
    %4391 = vmatprep.subr.bf16.mxu0 %v4167
    %4392 = vmatpush1.bf16.msra.mxu0 %v4166
    %4393 = vmatprep.subr.bf16.mxu0 %v4171
    %4394 = vmatpush1.bf16.msra.mxu0 %v4170
    %4395 = vmatprep.subr.bf16.mxu0 %v4175
    %4396 = vmatpush1.bf16.msra.mxu0 %v4174
    %4397 = vmatprep.subr.bf16.mxu0 %v4179
    %4398 = vmatpush1.bf16.msra.mxu0 %v4178
    %4399 = vmatprep.subr.bf16.mxu0 %v4183
    %4400 = vmatpush1.bf16.msra.mxu0 %v4182
    %4401 = vmatprep.subr.bf16.mxu0 %v4187
    %4402 = vmatpush1.bf16.msra.mxu0 %v4186
    %4403 = vmatprep.subr.bf16.mxu0 %v4191
    %4404 = vmatpush1.bf16.msra.mxu0 %v4190
    %4405 = vmatprep.subr.bf16.mxu0 %v4195
    %4406 = vmatpush1.bf16.msra.mxu0 %v4194
    %4407 = vmatprep.subr.bf16.mxu0 %v4199
    %4408 = vmatpush1.bf16.msra.mxu0 %v4198
    %4409 = vmatprep.subr.bf16.mxu0 %v4203
    %4410 = vmatpush1.bf16.msra.mxu0 %v4202
    %4411 = vmatprep.subr.bf16.mxu0 %v4207
    %4412 = vmatpush1.bf16.msra.mxu0 %v4206
    %4413 = vmatprep.mubr.bf16.mxu0 %v3547
    %4414 = vmatmul.mubr.bf16.gmra.mrb[0].mxu0 %v3546
    %v4415 = vpop.f32.mrb[0].mxu0
    %v4416 = vadd.f32 %v4373, %v4415
    %v4417 = vpop.f32.mrb[0].mxu0
    %v4418 = vadd.f32 %v4375, %v4417
    %v4419 = vpop.f32.mrb[0].mxu0
    %v4420 = vadd.f32 %v4377, %v4419
    %v4421 = vpop.f32.mrb[0].mxu0
    %v4422 = vadd.f32 %v4379, %v4421
    %4423 = vdwg.mxu0
    %4424 = vmatprep.subr.bf16.mxu0 %v4085
    %4425 = vmatpush1.bf16.msra.mxu0 %v4084
    %4426 = vmatprep.subr.bf16.mxu0 %v4089
    %4427 = vmatpush1.bf16.msra.mxu0 %v4088
    %4428 = vmatprep.subr.bf16.mxu0 %v4093
    %4429 = vmatpush1.bf16.msra.mxu0 %v4092
    %4430 = vmatprep.subr.bf16.mxu0 %v4097
    %4431 = vmatpush1.bf16.msra.mxu0 %v4096
    %4432 = vmatprep.subr.bf16.mxu0 %v4101
    %4433 = vmatpush1.bf16.msra.mxu0 %v4100
    %4434 = vmatprep.subr.bf16.mxu0 %v4105
    %4435 = vmatpush1.bf16.msra.mxu0 %v4104
    %4436 = vmatprep.subr.bf16.mxu0 %v4109
    %4437 = vmatpush1.bf16.msra.mxu0 %v4108
    %4438 = vmatprep.subr.bf16.mxu0 %v4113
    %4439 = vmatpush1.bf16.msra.mxu0 %v4112
    %4440 = vmatprep.subr.bf16.mxu0 %v4117
    %4441 = vmatpush1.bf16.msra.mxu0 %v4116
    %4442 = vmatprep.subr.bf16.mxu0 %v4121
    %4443 = vmatpush1.bf16.msra.mxu0 %v4120
    %4444 = vmatprep.subr.bf16.mxu0 %v4125
    %4445 = vmatpush1.bf16.msra.mxu0 %v4124
    %4446 = vmatprep.subr.bf16.mxu0 %v4129
    %4447 = vmatpush1.bf16.msra.mxu0 %v4128
    %4448 = vmatprep.subr.bf16.mxu0 %v4133
    %4449 = vmatpush1.bf16.msra.mxu0 %v4132
    %4450 = vmatprep.subr.bf16.mxu0 %v4137
    %4451 = vmatpush1.bf16.msra.mxu0 %v4136
    %4452 = vmatprep.subr.bf16.mxu0 %v4141
    %4453 = vmatpush1.bf16.msra.mxu0 %v4140
    %4454 = vmatprep.subr.bf16.mxu0 %v4145
    %4455 = vmatpush1.bf16.msra.mxu0 %v4144
    %4456 = vmatprep.mubr.bf16.mxu0 %v3545
    %4457 = vmatmul.mubr.bf16.gmra.mrb[0].mxu0 %v3544
    %v4458 = vpop.f32.mrb[0].mxu0
    %v4459 = vadd.f32 %v3689, %v4458
    %v4460 = vpop.f32.mrb[0].mxu0
    %v4461 = vadd.f32 %v3693, %v4460
    %v4462 = vpop.f32.mrb[0].mxu0
    %v4463 = vadd.f32 %v3689, %v4462
    %v4464 = vpop.f32.mrb[0].mxu0
    %v4465 = vadd.f32 %v3693, %v4464
    %4466 = vdwg.mxu0
    %4467 = vmatprep.subr.bf16.mxu0 %v4149
    %4468 = vmatpush1.bf16.msra.mxu0 %v4148
    %4469 = vmatprep.subr.bf16.mxu0 %v4153
    %4470 = vmatpush1.bf16.msra.mxu0 %v4152
    %4471 = vmatprep.subr.bf16.mxu0 %v4157
    %4472 = vmatpush1.bf16.msra.mxu0 %v4156
    %4473 = vmatprep.subr.bf16.mxu0 %v4161
    %4474 = vmatpush1.bf16.msra.mxu0 %v4160
    %4475 = vmatprep.subr.bf16.mxu0 %v4165
    %4476 = vmatpush1.bf16.msra.mxu0 %v4164
    %4477 = vmatprep.subr.bf16.mxu0 %v4169
    %4478 = vmatpush1.bf16.msra.mxu0 %v4168
    %4479 = vmatprep.subr.bf16.mxu0 %v4173
    %4480 = vmatpush1.bf16.msra.mxu0 %v4172
    %4481 = vmatprep.subr.bf16.mxu0 %v4177
    %4482 = vmatpush1.bf16.msra.mxu0 %v4176
    %4483 = vmatprep.subr.bf16.mxu0 %v4181
    %4484 = vmatpush1.bf16.msra.mxu0 %v4180
    %4485 = vmatprep.subr.bf16.mxu0 %v4185
    %4486 = vmatpush1.bf16.msra.mxu0 %v4184
    %4487 = vmatprep.subr.bf16.mxu0 %v4189
    %4488 = vmatpush1.bf16.msra.mxu0 %v4188
    %4489 = vmatprep.subr.bf16.mxu0 %v4193
    %4490 = vmatpush1.bf16.msra.mxu0 %v4192
    %4491 = vmatprep.subr.bf16.mxu0 %v4197
    %4492 = vmatpush1.bf16.msra.mxu0 %v4196
    %4493 = vmatprep.subr.bf16.mxu0 %v4201
    %4494 = vmatpush1.bf16.msra.mxu0 %v4200
    %4495 = vmatprep.subr.bf16.mxu0 %v4205
    %4496 = vmatpush1.bf16.msra.mxu0 %v4204
    %4497 = vmatprep.subr.bf16.mxu0 %v4209
    %4498 = vmatpush1.bf16.msra.mxu0 %v4208
    %4499 = vmatprep.mubr.bf16.mxu0 %v3547
    %4500 = vmatmul.mubr.bf16.gmra.mrb[0].mxu0 %v3546
    %v4501 = vpop.f32.mrb[0].mxu0
    %v4502 = vadd.f32 %v4459, %v4501
    %v4503 = vpop.f32.mrb[0].mxu0
    %v4504 = vadd.f32 %v4461, %v4503
    %v4505 = vpop.f32.mrb[0].mxu0
    %v4506 = vadd.f32 %v4463, %v4505
    %v4507 = vpop.f32.mrb[0].mxu0
    %v4508 = vadd.f32 %v4465, %v4507
    %4509 = vdwg.mxu0
    %v4510 = vld [vmem:[%s9] sm:$0xff]
    %v4511 = vld [vmem:[%s9 + $0x8] sm:$0xff]
    %v4512 = vld [vmem:[%s9 + $0x10] sm:$0xff]
    %v4513 = vld [vmem:[%s9 + $0x18] sm:$0xff]
    %v4514 = vld [vmem:[%s9 + $0x20] sm:$0xff]
    %v4515 = vld [vmem:[%s9 + $0x28] sm:$0xff]
    %v4516 = vld [vmem:[%s9 + $0x30] sm:$0xff]
    %v4517 = vld [vmem:[%s9 + $0x38] sm:$0xff]
    %v4518 = vld [vmem:[%s9 + $0x40] sm:$0xff]
    %v4519 = vld [vmem:[%s9 + $0x48] sm:$0xff]
    %v4520 = vld [vmem:[%s9 + $0x50] sm:$0xff]
    %v4521 = vld [vmem:[%s9 + $0x58] sm:$0xff]
    %v4522 = vld [vmem:[%s9 + $0x60] sm:$0xff]
    %v4523 = vld [vmem:[%s9 + $0x68] sm:$0xff]
    %v4524 = vld [vmem:[%s9 + $0x70] sm:$0xff]
    %v4525 = vld [vmem:[%s9 + $0x78] sm:$0xff]
    %v4526 = vld [vmem:[%s9 + $0x80] sm:$0xff]
    %v4527 = vld [vmem:[%s9 + $0x88] sm:$0xff]
    %v4528 = vld [vmem:[%s9 + $0x90] sm:$0xff]
    %v4529 = vld [vmem:[%s9 + $0x98] sm:$0xff]
    %v4530 = vld [vmem:[%s9 + $0xa0] sm:$0xff]
    %v4531 = vld [vmem:[%s9 + $0xa8] sm:$0xff]
    %v4532 = vld [vmem:[%s9 + $0xb0] sm:$0xff]
    %v4533 = vld [vmem:[%s9 + $0xb8] sm:$0xff]
    %v4534 = vld [vmem:[%s9 + $0xc0] sm:$0xff]
    %v4535 = vld [vmem:[%s9 + $0xc8] sm:$0xff]
    %v4536 = vld [vmem:[%s9 + $0xd0] sm:$0xff]
    %v4537 = vld [vmem:[%s9 + $0xd8] sm:$0xff]
    %v4538 = vld [vmem:[%s9 + $0xe0] sm:$0xff]
    %v4539 = vld [vmem:[%s9 + $0xe8] sm:$0xff]
    %v4540 = vld [vmem:[%s9 + $0xf0] sm:$0xff]
    %v4541 = vld [vmem:[%s9 + $0xf8] sm:$0xff]
    %v4574 = vunpack.c.l.b16 %v4510
    %v4575 = vunpack.c.h.b16 %v4510
    %v4576 = vunpack.c.l.b16 %v4511
    %v4577 = vunpack.c.h.b16 %v4511
    %v4578 = vunpack.c.l.b16 %v4512
    %v4579 = vunpack.c.h.b16 %v4512
    %v4580 = vunpack.c.l.b16 %v4513
    %v4581 = vunpack.c.h.b16 %v4513
    %v4582 = vunpack.c.l.b16 %v4514
    %v4583 = vunpack.c.h.b16 %v4514
    %v4584 = vunpack.c.l.b16 %v4515
    %v4585 = vunpack.c.h.b16 %v4515
    %v4586 = vunpack.c.l.b16 %v4516
    %v4587 = vunpack.c.h.b16 %v4516
    %v4588 = vunpack.c.l.b16 %v4517
    %v4589 = vunpack.c.h.b16 %v4517
    %v4590 = vunpack.c.l.b16 %v4518
    %v4591 = vunpack.c.h.b16 %v4518
    %v4592 = vunpack.c.l.b16 %v4519
    %v4593 = vunpack.c.h.b16 %v4519
    %v4594 = vunpack.c.l.b16 %v4520
    %v4595 = vunpack.c.h.b16 %v4520
    %v4596 = vunpack.c.l.b16 %v4521
    %v4597 = vunpack.c.h.b16 %v4521
    %v4598 = vunpack.c.l.b16 %v4522
    %v4599 = vunpack.c.h.b16 %v4522
    %v4600 = vunpack.c.l.b16 %v4523
    %v4601 = vunpack.c.h.b16 %v4523
    %v4602 = vunpack.c.l.b16 %v4524
    %v4603 = vunpack.c.h.b16 %v4524
    %v4604 = vunpack.c.l.b16 %v4525
    %v4605 = vunpack.c.h.b16 %v4525
    %v4606 = vunpack.c.l.b16 %v4526
    %v4607 = vunpack.c.h.b16 %v4526
    %v4608 = vunpack.c.l.b16 %v4527
    %v4609 = vunpack.c.h.b16 %v4527
    %v4610 = vunpack.c.l.b16 %v4528
    %v4611 = vunpack.c.h.b16 %v4528
    %v4612 = vunpack.c.l.b16 %v4529
    %v4613 = vunpack.c.h.b16 %v4529
    %v4614 = vunpack.c.l.b16 %v4530
    %v4615 = vunpack.c.h.b16 %v4530
    %v4616 = vunpack.c.l.b16 %v4531
    %v4617 = vunpack.c.h.b16 %v4531
    %v4618 = vunpack.c.l.b16 %v4532
    %v4619 = vunpack.c.h.b16 %v4532
    %v4620 = vunpack.c.l.b16 %v4533
    %v4621 = vunpack.c.h.b16 %v4533
    %v4622 = vunpack.c.l.b16 %v4534
    %v4623 = vunpack.c.h.b16 %v4534
    %v4624 = vunpack.c.l.b16 %v4535
    %v4625 = vunpack.c.h.b16 %v4535
    %v4626 = vunpack.c.l.b16 %v4536
    %v4627 = vunpack.c.h.b16 %v4536
    %v4628 = vunpack.c.l.b16 %v4537
    %v4629 = vunpack.c.h.b16 %v4537
    %v4630 = vunpack.c.l.b16 %v4538
    %v4631 = vunpack.c.h.b16 %v4538
    %v4632 = vunpack.c.l.b16 %v4539
    %v4633 = vunpack.c.h.b16 %v4539
    %v4634 = vunpack.c.l.b16 %v4540
    %v4635 = vunpack.c.h.b16 %v4540
    %v4636 = vunpack.c.l.b16 %v4541
    %v4637 = vunpack.c.h.b16 %v4541
    %v4638 = vpack.c.b16 %v4578, %v4574
    %v4639 = vpack.c.b16 %v4579, %v4575
    %v4640 = vpack.c.b16 %v4580, %v4576
    %v4641 = vpack.c.b16 %v4581, %v4577
    %v4642 = vpack.c.b16 %v4586, %v4582
    %v4643 = vpack.c.b16 %v4587, %v4583
    %v4644 = vpack.c.b16 %v4588, %v4584
    %v4645 = vpack.c.b16 %v4589, %v4585
    %v4646 = vpack.c.b16 %v4594, %v4590
    %v4647 = vpack.c.b16 %v4595, %v4591
    %v4648 = vpack.c.b16 %v4596, %v4592
    %v4649 = vpack.c.b16 %v4597, %v4593
    %v4650 = vpack.c.b16 %v4602, %v4598
    %v4651 = vpack.c.b16 %v4603, %v4599
    %v4652 = vpack.c.b16 %v4604, %v4600
    %v4653 = vpack.c.b16 %v4605, %v4601
    %v4654 = vpack.c.b16 %v4610, %v4606
    %v4655 = vpack.c.b16 %v4611, %v4607
    %v4656 = vpack.c.b16 %v4612, %v4608
    %v4657 = vpack.c.b16 %v4613, %v4609
    %v4658 = vpack.c.b16 %v4618, %v4614
    %v4659 = vpack.c.b16 %v4619, %v4615
    %v4660 = vpack.c.b16 %v4620, %v4616
    %v4661 = vpack.c.b16 %v4621, %v4617
    %v4662 = vpack.c.b16 %v4626, %v4622
    %v4663 = vpack.c.b16 %v4627, %v4623
    %v4664 = vpack.c.b16 %v4628, %v4624
    %v4665 = vpack.c.b16 %v4629, %v4625
    %v4666 = vpack.c.b16 %v4634, %v4630
    %v4667 = vpack.c.b16 %v4635, %v4631
    %v4668 = vpack.c.b16 %v4636, %v4632
    %v4669 = vpack.c.b16 %v4637, %v4633
    %4702 = vmatprep.subr.bf16.mxu0 %v4639
    %4703 = vmatpush1.bf16.msra.mxu0 %v4638
    %4704 = vmatprep.subr.bf16.mxu0 %v4643
    %4705 = vmatpush1.bf16.msra.mxu0 %v4642
    %4706 = vmatprep.subr.bf16.mxu0 %v4647
    %4707 = vmatpush1.bf16.msra.mxu0 %v4646
    %4708 = vmatprep.subr.bf16.mxu0 %v4651
    %4709 = vmatpush1.bf16.msra.mxu0 %v4650
    %4710 = vmatprep.subr.bf16.mxu0 %v4655
    %4711 = vmatpush1.bf16.msra.mxu0 %v4654
    %4712 = vmatprep.subr.bf16.mxu0 %v4659
    %4713 = vmatpush1.bf16.msra.mxu0 %v4658
    %4714 = vmatprep.subr.bf16.mxu0 %v4663
    %4715 = vmatpush1.bf16.msra.mxu0 %v4662
    %4716 = vmatprep.subr.bf16.mxu0 %v4667
    %4717 = vmatpush1.bf16.msra.mxu0 %v4666
    %4718 = vmatprep.subr.bf16.mxu0 0
    %4719 = vmatpush1.bf16.msra.mxu0 0
    %4720 = vmatprep.subr.bf16.mxu0 0
    %4721 = vmatpush1.bf16.msra.mxu0 0
    %4722 = vmatprep.subr.bf16.mxu0 0
    %4723 = vmatpush1.bf16.msra.mxu0 0
    %4724 = vmatprep.subr.bf16.mxu0 0
    %4725 = vmatpush1.bf16.msra.mxu0 0
    %4726 = vmatprep.subr.bf16.mxu0 0
    %4727 = vmatpush1.bf16.msra.mxu0 0
    %4728 = vmatprep.subr.bf16.mxu0 0
    %4729 = vmatpush1.bf16.msra.mxu0 0
    %4730 = vmatprep.subr.bf16.mxu0 0
    %4731 = vmatpush1.bf16.msra.mxu0 0
    %4732 = vmatprep.subr.bf16.mxu0 0
    %4733 = vmatpush1.bf16.msra.mxu0 0
    %4734 = vmatprep.mubr.bf16.mxu0 0
    %4735 = vmatmul.mubr.bf16.gmra.mrb[0].mxu0 0
    %v4736 = vpop.f32.mrb[0].mxu0
    %v4737 = vadd.f32 0.0, %v4736
    %v4738 = vpop.f32.mrb[0].mxu0
    %v4739 = vadd.f32 0.0, %v4738
    %v4740 = vpop.f32.mrb[0].mxu0
    %v4741 = vpop.f32.mrb[0].mxu0
    %4742 = vdwg.mxu0
    %4743 = vmatprep.subr.bf16.mxu0 %v4641
    %4744 = vmatpush1.bf16.msra.mxu0 %v4640
    %4745 = vmatprep.subr.bf16.mxu0 %v4645
    %4746 = vmatpush1.bf16.msra.mxu0 %v4644
    %4747 = vmatprep.subr.bf16.mxu0 %v4649
    %4748 = vmatpush1.bf16.msra.mxu0 %v4648
    %4749 = vmatprep.subr.bf16.mxu0 %v4653
    %4750 = vmatpush1.bf16.msra.mxu0 %v4652
    %4751 = vmatprep.subr.bf16.mxu0 %v4657
    %4752 = vmatpush1.bf16.msra.mxu0 %v4656
    %4753 = vmatprep.subr.bf16.mxu0 %v4661
    %4754 = vmatpush1.bf16.msra.mxu0 %v4660
    %4755 = vmatprep.subr.bf16.mxu0 %v4665
    %4756 = vmatpush1.bf16.msra.mxu0 %v4664
    %4757 = vmatprep.subr.bf16.mxu0 %v4669
    %4758 = vmatpush1.bf16.msra.mxu0 %v4668
    %4759 = vmatprep.subr.bf16.mxu0 0
    %4760 = vmatpush1.bf16.msra.mxu0 0
    %4761 = vmatprep.subr.bf16.mxu0 0
    %4762 = vmatpush1.bf16.msra.mxu0 0
    %4763 = vmatprep.subr.bf16.mxu0 0
    %4764 = vmatpush1.bf16.msra.mxu0 0
    %4765 = vmatprep.subr.bf16.mxu0 0
    %4766 = vmatpush1.bf16.msra.mxu0 0
    %4767 = vmatprep.subr.bf16.mxu0 0
    %4768 = vmatpush1.bf16.msra.mxu0 0
    %4769 = vmatprep.subr.bf16.mxu0 0
    %4770 = vmatpush1.bf16.msra.mxu0 0
    %4771 = vmatprep.subr.bf16.mxu0 0
    %4772 = vmatpush1.bf16.msra.mxu0 0
    %4773 = vmatprep.subr.bf16.mxu0 0
    %4774 = vmatpush1.bf16.msra.mxu0 0
    %4775 = vmatprep.mubr.bf16.mxu0 0
    %4776 = vmatmul.mubr.bf16.gmra.mrb[0].mxu0 0
    %v4777 = vpop.f32.mrb[0].mxu0
    %v4778 = vadd.f32 0.0, %v4777
    %v4779 = vpop.f32.mrb[0].mxu0
    %v4780 = vadd.f32 0.0, %v4779
    %v4781 = vpop.f32.mrb[0].mxu0
    %v4782 = vpop.f32.mrb[0].mxu0
    %4783 = vdwg.mxu0
    %v4784 = vadd.f32 %v4416, %v4737
    %v4785 = vadd.f32 %v4418, %v4739
    %v4786 = vadd.f32 %v4502, %v4778
    %v4787 = vadd.f32 %v4504, %v4780
    %v4788 = vxor.u32 %v4784, 2147483648
    %v4789 = vxor.u32 %v4785, 2147483648
    %v4790 = vxor.u32 %v4787, 2147483648
    %v4791 = vmul.f32 %v4788, 1.442695
    %v4792 = vpow.pop %v4791
    %v4793 = vmul.f32 %v4789, 1.442695
    %v4794 = vpow.pop %v4793
    %v4795 = vmul.f32 %v4790, 1.442695
    %v4796 = vpow.pop %v4795
    %v4797 = vadd.f32 %v4792, 1.0
    %v4798 = vadd.f32 %v4794, 1.0
    %v4799 = vadd.f32 %v4796, 1.0
    %v4800 = vrcp.pop %v4797
    %v4801 = vmul.f32 1.0, %v4800
    %v4802 = vrcp.pop %v4798
    %v4803 = vmul.f32 1.0, %v4802
    %v4804 = vrcp.pop %v4799
    %v4805 = vmul.f32 1.0, %v4804
    %v4806 = vtanh.pop %v4786
    %v4807 = vmul.f32 %v4803, 0.0
    %v4808 = vmul.f32 %v4801, %v4806
    %v4809 = vadd.f32 %v4807, %v4808
    %v4810 = vtanh.pop %v4809
    %v4811 = vmul.f32 %v4805, %v4810
    %v4812 = vpack.c.bf16 %v4811, %v4811
    %4813 = vmatprep.subr.bf16.mxu0 %v4639
    %4814 = vmatpush1.bf16.msra.mxu0 %v4638
    %4815 = vmatprep.subr.bf16.mxu0 %v4643
    %4816 = vmatpush1.bf16.msra.mxu0 %v4642
    %4817 = vmatprep.subr.bf16.mxu0 %v4647
    %4818 = vmatpush1.bf16.msra.mxu0 %v4646
    %4819 = vmatprep.subr.bf16.mxu0 %v4651
    %4820 = vmatpush1.bf16.msra.mxu0 %v4650
    %4821 = vmatprep.subr.bf16.mxu0 %v4655
    %4822 = vmatpush1.bf16.msra.mxu0 %v4654
    %4823 = vmatprep.subr.bf16.mxu0 %v4659
    %4824 = vmatpush1.bf16.msra.mxu0 %v4658
    %4825 = vmatprep.subr.bf16.mxu0 %v4663
    %4826 = vmatpush1.bf16.msra.mxu0 %v4662
    %4827 = vmatprep.subr.bf16.mxu0 %v4667
    %4828 = vmatpush1.bf16.msra.mxu0 %v4666
    %4829 = vmatprep.subr.bf16.mxu0 0
    %4830 = vmatpush1.bf16.msra.mxu0 0
    %4831 = vmatprep.subr.bf16.mxu0 0
    %4832 = vmatpush1.bf16.msra.mxu0 0
    %4833 = vmatprep.subr.bf16.mxu0 0
    %4834 = vmatpush1.bf16.msra.mxu0 0
    %4835 = vmatprep.subr.bf16.mxu0 0
    %4836 = vmatpush1.bf16.msra.mxu0 0
    %4837 = vmatprep.subr.bf16.mxu0 0
    %4838 = vmatpush1.bf16.msra.mxu0 0
    %4839 = vmatprep.subr.bf16.mxu0 0
    %4840 = vmatpush1.bf16.msra.mxu0 0
    %4841 = vmatprep.subr.bf16.mxu0 0
    %4842 = vmatpush1.bf16.msra.mxu0 0
    %4843 = vmatprep.subr.bf16.mxu0 0
    %4844 = vmatpush1.bf16.msra.mxu0 0
    %4845 = vmatprep.mubr.bf16.mxu0 0
    %4846 = vmatmul.mubr.bf16.gmra.mrb[0].mxu0 %v4812
    %v4847 = vpop.f32.mrb[0].mxu0
    %v4848 = vadd.f32 0.0, %v4847
    %v4849 = vpop.f32.mrb[0].mxu0
    %v4850 = vadd.f32 0.0, %v4849
    %v4851 = vpop.f32.mrb[0].mxu0
    %v4852 = vpop.f32.mrb[0].mxu0
    %4853 = vdwg.mxu0
    %4854 = vmatprep.subr.bf16.mxu0 %v4641
    %4855 = vmatpush1.bf16.msra.mxu0 %v4640
    %4856 = vmatprep.subr.bf16.mxu0 %v4645
    %4857 = vmatpush1.bf16.msra.mxu0 %v4644
    %4858 = vmatprep.subr.bf16.mxu0 %v4649
    %4859 = vmatpush1.bf16.msra.mxu0 %v4648
    %4860 = vmatprep.subr.bf16.mxu0 %v4653
    %4861 = vmatpush1.bf16.msra.mxu0 %v4652
    %4862 = vmatprep.subr.bf16.mxu0 %v4657
    %4863 = vmatpush1.bf16.msra.mxu0 %v4656
    %4864 = vmatprep.subr.bf16.mxu0 %v4661
    %4865 = vmatpush1.bf16.msra.mxu0 %v4660
    %4866 = vmatprep.subr.bf16.mxu0 %v4665
    %4867 = vmatpush1.bf16.msra.mxu0 %v4664
    %4868 = vmatprep.subr.bf16.mxu0 %v4669
    %4869 = vmatpush1.bf16.msra.mxu0 %v4668
    %4870 = vmatprep.subr.bf16.mxu0 0
    %4871 = vmatpush1.bf16.msra.mxu0 0
    %4872 = vmatprep.subr.bf16.mxu0 0
    %4873 = vmatpush1.bf16.msra.mxu0 0
    %4874 = vmatprep.subr.bf16.mxu0 0
    %4875 = vmatpush1.bf16.msra.mxu0 0
    %4876 = vmatprep.subr.bf16.mxu0 0
    %4877 = vmatpush1.bf16.msra.mxu0 0
    %4878 = vmatprep.subr.bf16.mxu0 0
    %4879 = vmatpush1.bf16.msra.mxu0 0
    %4880 = vmatprep.subr.bf16.mxu0 0
    %4881 = vmatpush1.bf16.msra.mxu0 0
    %4882 = vmatprep.subr.bf16.mxu0 0
    %4883 = vmatpush1.bf16.msra.mxu0 0
    %4884 = vmatprep.subr.bf16.mxu0 0
    %4885 = vmatpush1.bf16.msra.mxu0 0
    %4886 = vmatprep.mubr.bf16.mxu0 0
    %4887 = vmatmul.mubr.bf16.gmra.mrb[0].mxu0 %v4812
    %v4888 = vpop.f32.mrb[0].mxu0
    %v4889 = vadd.f32 0.0, %v4888
    %v4890 = vpop.f32.mrb[0].mxu0
    %v4891 = vadd.f32 0.0, %v4890
    %v4892 = vpop.f32.mrb[0].mxu0
    %v4893 = vpop.f32.mrb[0].mxu0
    %4894 = vdwg.mxu0
    %v4899 = vrot.slane %v4848, 6
    %v4900 = vrot.slane %v4850, 6
    %v4901 = vrot.slane %v4889, 6
    %v4902 = vrot.slane %v4891, 6
    %v4907 = vadd.f32 %v4416, %v4899
    %v4908 = vadd.f32 %v4418, %v4900
    %v4909 = vadd.f32 %v4502, %v4901
    %v4910 = vadd.f32 %v4504, %v4902
    %v4911 = vxor.u32 %v4907, 2147483648
    %v4912 = vxor.u32 %v4908, 2147483648
    %v4913 = vxor.u32 %v4910, 2147483648
    %v4914 = vmul.f32 %v4911, 1.442695
    %v4915 = vpow.pop %v4914
    %v4916 = vmul.f32 %v4912, 1.442695
    %v4917 = vpow.pop %v4916
    %v4918 = vmul.f32 %v4913, 1.442695
    %v4919 = vpow.pop %v4918
    %v4920 = vadd.f32 %v4915, 1.0
    %v4921 = vadd.f32 %v4917, 1.0
    %v4922 = vadd.f32 %v4919, 1.0
    %v4923 = vrcp.pop %v4920
    %v4924 = vmul.f32 1.0, %v4923
    %v4925 = vrcp.pop %v4921
    %v4926 = vmul.f32 1.0, %v4925
    %v4927 = vrcp.pop %v4922
    %v4928 = vmul.f32 1.0, %v4927
    %v4929 = vtanh.pop %v4909
    %v4931 = vrot.slane %v4809, 6
    %v4933 = vmul.f32 %v4926, %v4931
    %v4934 = vmul.f32 %v4924, %v4929
    %v4935 = vadd.f32 %v4933, %v4934
    %v4936 = vtanh.pop %v4935
    %v4937 = vmul.f32 %v4928, %v4936
    %v4938 = vpack.c.bf16 %v4937, %v4937
    %v4940 = vrot.slane %v4938, 1
    %4942 = vmatprep.subr.bf16.mxu0 %v4639
    %4943 = vmatpush1.bf16.msra.mxu0 %v4638
    %4944 = vmatprep.subr.bf16.mxu0 %v4643
    %4945 = vmatpush1.bf16.msra.mxu0 %v4642
    %4946 = vmatprep.subr.bf16.mxu0 %v4647
    %4947 = vmatpush1.bf16.msra.mxu0 %v4646
    %4948 = vmatprep.subr.bf16.mxu0 %v4651
    %4949 = vmatpush1.bf16.msra.mxu0 %v4650
    %4950 = vmatprep.subr.bf16.mxu0 %v4655
    %4951 = vmatpush1.bf16.msra.mxu0 %v4654
    %4952 = vmatprep.subr.bf16.mxu0 %v4659
    %4953 = vmatpush1.bf16.msra.mxu0 %v4658
    %4954 = vmatprep.subr.bf16.mxu0 %v4663
    %4955 = vmatpush1.bf16.msra.mxu0 %v4662
    %4956 = vmatprep.subr.bf16.mxu0 %v4667
    %4957 = vmatpush1.bf16.msra.mxu0 %v4666
    %4958 = vmatprep.subr.bf16.mxu0 0
    %4959 = vmatpush1.bf16.msra.mxu0 0
    %4960 = vmatprep.subr.bf16.mxu0 0
    %4961 = vmatpush1.bf16.msra.mxu0 0
    %4962 = vmatprep.subr.bf16.mxu0 0
    %4963 = vmatpush1.bf16.msra.mxu0 0
    %4964 = vmatprep.subr.bf16.mxu0 0
    %4965 = vmatpush1.bf16.msra.mxu0 0
    %4966 = vmatprep.subr.bf16.mxu0 0
    %4967 = vmatpush1.bf16.msra.mxu0 0
    %4968 = vmatprep.subr.bf16.mxu0 0
    %4969 = vmatpush1.bf16.msra.mxu0 0
    %4970 = vmatprep.subr.bf16.mxu0 0
    %4971 = vmatpush1.bf16.msra.mxu0 0
    %4972 = vmatprep.subr.bf16.mxu0 0
    %4973 = vmatpush1.bf16.msra.mxu0 0
    %4974 = vmatprep.mubr.bf16.mxu0 0
    %4975 = vmatmul.mubr.bf16.gmra.mrb[0].mxu0 %v4940
    %v4976 = vpop.f32.mrb[0].mxu0
    %v4977 = vadd.f32 0.0, %v4976
    %v4978 = vpop.f32.mrb[0].mxu0
    %v4979 = vadd.f32 0.0, %v4978
    %v4980 = vpop.f32.mrb[0].mxu0
    %v4981 = vpop.f32.mrb[0].mxu0
    %4982 = vdwg.mxu0
    %4983 = vmatprep.subr.bf16.mxu0 %v4641
    %4984 = vmatpush1.bf16.msra.mxu0 %v4640
    %4985 = vmatprep.subr.bf16.mxu0 %v4645
    %4986 = vmatpush1.bf16.msra.mxu0 %v4644
    %4987 = vmatprep.subr.bf16.mxu0 %v4649
    %4988 = vmatpush1.bf16.msra.mxu0 %v4648
    %4989 = vmatprep.subr.bf16.mxu0 %v4653
    %4990 = vmatpush1.bf16.msra.mxu0 %v4652
    %4991 = vmatprep.subr.bf16.mxu0 %v4657
    %4992 = vmatpush1.bf16.msra.mxu0 %v4656
    %4993 = vmatprep.subr.bf16.mxu0 %v4661
    %4994 = vmatpush1.bf16.msra.mxu0 %v4660
    %4995 = vmatprep.subr.bf16.mxu0 %v4665
    %4996 = vmatpush1.bf16.msra.mxu0 %v4664
    %4997 = vmatprep.subr.bf16.mxu0 %v4669
    %4998 = vmatpush1.bf16.msra.mxu0 %v4668
    %4999 = vmatprep.subr.bf16.mxu0 0
    %5000 = vmatpush1.bf16.msra.mxu0 0
    %5001 = vmatprep.subr.bf16.mxu0 0
    %5002 = vmatpush1.bf16.msra.mxu0 0
    %5003 = vmatprep.subr.bf16.mxu0 0
    %5004 = vmatpush1.bf16.msra.mxu0 0
    %5005 = vmatprep.subr.bf16.mxu0 0
    %5006 = vmatpush1.bf16.msra.mxu0 0
    %5007 = vmatprep.subr.bf16.mxu0 0
    %5008 = vmatpush1.bf16.msra.mxu0 0
    %5009 = vmatprep.subr.bf16.mxu0 0
    %5010 = vmatpush1.bf16.msra.mxu0 0
    %5011 = vmatprep.subr.bf16.mxu0 0
    %5012 = vmatpush1.bf16.msra.mxu0 0
    %5013 = vmatprep.subr.bf16.mxu0 0
    %5014 = vmatpush1.bf16.msra.mxu0 0
    %5015 = vmatprep.mubr.bf16.mxu0 0
    %5016 = vmatmul.mubr.bf16.gmra.mrb[0].mxu0 %v4940
    %v5017 = vpop.f32.mrb[0].mxu0
    %v5018 = vadd.f32 0.0, %v5017
    %v5019 = vpop.f32.mrb[0].mxu0
    %v5020 = vadd.f32 0.0, %v5019
    %v5021 = vpop.f32.mrb[0].mxu0
    %v5022 = vpop.f32.mrb[0].mxu0
    %5023 = vdwg.mxu0
    %v5028 = vrot.slane %v4977, 4
    %v5029 = vrot.slane %v4979, 4
    %v5030 = vrot.slane %v5018, 4
    %v5031 = vrot.slane %v5020, 4
    %v5036 = vadd.f32 %v4416, %v5028
    %v5037 = vadd.f32 %v4418, %v5029
    %v5038 = vadd.f32 %v4502, %v5030
    %v5039 = vadd.f32 %v4504, %v5031
    %v5040 = vxor.u32 %v5036, 2147483648
    %v5041 = vxor.u32 %v5037, 2147483648
    %v5042 = vxor.u32 %v5039, 2147483648
    %v5043 = vmul.f32 %v5040, 1.442695
    %v5044 = vpow.pop %v5043
    %v5045 = vmul.f32 %v5041, 1.442695
    %v5046 = vpow.pop %v5045
    %v5047 = vmul.f32 %v5042, 1.442695
    %v5048 = vpow.pop %v5047
    %v5049 = vadd.f32 %v5044, 1.0
    %v5050 = vadd.f32 %v5046, 1.0
    %v5051 = vadd.f32 %v5048, 1.0
    %v5052 = vrcp.pop %v5049
    %v5053 = vmul.f32 1.0, %v5052
    %v5054 = vrcp.pop %v5050
    %v5055 = vmul.f32 1.0, %v5054
    %v5056 = vrcp.pop %v5051
    %v5057 = vmul.f32 1.0, %v5056
    %v5058 = vtanh.pop %v5038
    %v5060 = vrot.slane %v4935, 6
    %v5062 = vmul.f32 %v5055, %v5060
    %v5063 = vmul.f32 %v5053, %v5058
    %v5064 = vadd.f32 %v5062, %v5063
    %v5065 = vtanh.pop %v5064
    %v5066 = vmul.f32 %v5057, %v5065
    %v5067 = vpack.c.bf16 %v5066, %v5066
    %v5069 = vrot.slane %v5067, 2
    %5071 = vmatprep.subr.bf16.mxu0 %v4639
    %5072 = vmatpush1.bf16.msra.mxu0 %v4638
    %5073 = vmatprep.subr.bf16.mxu0 %v4643
    %5074 = vmatpush1.bf16.msra.mxu0 %v4642
    %5075 = vmatprep.subr.bf16.mxu0 %v4647
    %5076 = vmatpush1.bf16.msra.mxu0 %v4646
    %5077 = vmatprep.subr.bf16.mxu0 %v4651
    %5078 = vmatpush1.bf16.msra.mxu0 %v4650
    %5079 = vmatprep.subr.bf16.mxu0 %v4655
    %5080 = vmatpush1.bf16.msra.mxu0 %v4654
    %5081 = vmatprep.subr.bf16.mxu0 %v4659
    %5082 = vmatpush1.bf16.msra.mxu0 %v4658
    %5083 = vmatprep.subr.bf16.mxu0 %v4663
    %5084 = vmatpush1.bf16.msra.mxu0 %v4662
    %5085 = vmatprep.subr.bf16.mxu0 %v4667
    %5086 = vmatpush1.bf16.msra.mxu0 %v4666
    %5087 = vmatprep.subr.bf16.mxu0 0
    %5088 = vmatpush1.bf16.msra.mxu0 0
    %5089 = vmatprep.subr.bf16.mxu0 0
    %5090 = vmatpush1.bf16.msra.mxu0 0
    %5091 = vmatprep.subr.bf16.mxu0 0
    %5092 = vmatpush1.bf16.msra.mxu0 0
    %5093 = vmatprep.subr.bf16.mxu0 0
    %5094 = vmatpush1.bf16.msra.mxu0 0
    %5095 = vmatprep.subr.bf16.mxu0 0
    %5096 = vmatpush1.bf16.msra.mxu0 0
    %5097 = vmatprep.subr.bf16.mxu0 0
    %5098 = vmatpush1.bf16.msra.mxu0 0
    %5099 = vmatprep.subr.bf16.mxu0 0
    %5100 = vmatpush1.bf16.msra.mxu0 0
    %5101 = vmatprep.subr.bf16.mxu0 0
    %5102 = vmatpush1.bf16.msra.mxu0 0
    %5103 = vmatprep.mubr.bf16.mxu0 0
    %5104 = vmatmul.mubr.bf16.gmra.mrb[0].mxu0 %v5069
    %v5105 = vpop.f32.mrb[0].mxu0
    %v5106 = vadd.f32 0.0, %v5105
    %v5107 = vpop.f32.mrb[0].mxu0
    %v5108 = vadd.f32 0.0, %v5107
    %v5109 = vpop.f32.mrb[0].mxu0
    %v5110 = vpop.f32.mrb[0].mxu0
    %5111 = vdwg.mxu0
    %5112 = vmatprep.subr.bf16.mxu0 %v4641
    %5113 = vmatpush1.bf16.msra.mxu0 %v4640
    %5114 = vmatprep.subr.bf16.mxu0 %v4645
    %5115 = vmatpush1.bf16.msra.mxu0 %v4644
    %5116 = vmatprep.subr.bf16.mxu0 %v4649
    %5117 = vmatpush1.bf16.msra.mxu0 %v4648
    %5118 = vmatprep.subr.bf16.mxu0 %v4653
    %5119 = vmatpush1.bf16.msra.mxu0 %v4652
    %5120 = vmatprep.subr.bf16.mxu0 %v4657
    %5121 = vmatpush1.bf16.msra.mxu0 %v4656
    %5122 = vmatprep.subr.bf16.mxu0 %v4661
    %5123 = vmatpush1.bf16.msra.mxu0 %v4660
    %5124 = vmatprep.subr.bf16.mxu0 %v4665
    %5125 = vmatpush1.bf16.msra.mxu0 %v4664
    %5126 = vmatprep.subr.bf16.mxu0 %v4669
    %5127 = vmatpush1.bf16.msra.mxu0 %v4668
    %5128 = vmatprep.subr.bf16.mxu0 0
    %5129 = vmatpush1.bf16.msra.mxu0 0
    %5130 = vmatprep.subr.bf16.mxu0 0
    %5131 = vmatpush1.bf16.msra.mxu0 0
    %5132 = vmatprep.subr.bf16.mxu0 0
    %5133 = vmatpush1.bf16.msra.mxu0 0
    %5134 = vmatprep.subr.bf16.mxu0 0
    %5135 = vmatpush1.bf16.msra.mxu0 0
    %5136 = vmatprep.subr.bf16.mxu0 0
    %5137 = vmatpush1.bf16.msra.mxu0 0
    %5138 = vmatprep.subr.bf16.mxu0 0
    %5139 = vmatpush1.bf16.msra.mxu0 0
    %5140 = vmatprep.subr.bf16.mxu0 0
    %5141 = vmatpush1.bf16.msra.mxu0 0
    %5142 = vmatprep.subr.bf16.mxu0 0
    %5143 = vmatpush1.bf16.msra.mxu0 0
    %5144 = vmatprep.mubr.bf16.mxu0 0
    %5145 = vmatmul.mubr.bf16.gmra.mrb[0].mxu0 %v5069
    %v5146 = vpop.f32.mrb[0].mxu0
    %v5147 = vadd.f32 0.0, %v5146
    %v5148 = vpop.f32.mrb[0].mxu0
    %v5149 = vadd.f32 0.0, %v5148
    %v5150 = vpop.f32.mrb[0].mxu0
    %v5151 = vpop.f32.mrb[0].mxu0
    %5152 = vdwg.mxu0
    %v5157 = vrot.slane %v5106, 2
    %v5158 = vrot.slane %v5108, 2
    %v5159 = vrot.slane %v5147, 2
    %v5160 = vrot.slane %v5149, 2
    %v5165 = vadd.f32 %v4416, %v5157
    %v5166 = vadd.f32 %v4418, %v5158
    %v5167 = vadd.f32 %v4502, %v5159
    %v5168 = vadd.f32 %v4504, %v5160
    %v5169 = vxor.u32 %v5165, 2147483648
    %v5170 = vxor.u32 %v5166, 2147483648
    %v5171 = vxor.u32 %v5168, 2147483648
    %v5172 = vmul.f32 %v5169, 1.442695
    %v5173 = vpow.pop %v5172
    %v5174 = vmul.f32 %v5170, 1.442695
    %v5175 = vpow.pop %v5174
    %v5176 = vmul.f32 %v5171, 1.442695
    %v5177 = vpow.pop %v5176
    %v5178 = vadd.f32 %v5173, 1.0
    %v5179 = vadd.f32 %v5175, 1.0
    %v5180 = vadd.f32 %v5177, 1.0
    %v5181 = vrcp.pop %v5178
    %v5182 = vmul.f32 1.0, %v5181
    %v5183 = vrcp.pop %v5179
    %v5184 = vmul.f32 1.0, %v5183
    %v5185 = vrcp.pop %v5180
    %v5186 = vmul.f32 1.0, %v5185
    %v5187 = vtanh.pop %v5167
    %v5189 = vrot.slane %v5064, 6
    %v5191 = vmul.f32 %v5184, %v5189
    %v5192 = vmul.f32 %v5182, %v5187
    %v5193 = vadd.f32 %v5191, %v5192
    %v5194 = vtanh.pop %v5193
    %v5195 = vmul.f32 %v5186, %v5194
    %v5196 = vpack.c.bf16 %v5195, %v5195
    %v5198 = vrot.slane %v5196, 3
    %5200 = vmatprep.subr.bf16.mxu0 %v4639
    %5201 = vmatpush1.bf16.msra.mxu0 %v4638
    %5202 = vmatprep.subr.bf16.mxu0 %v4643
    %5203 = vmatpush1.bf16.msra.mxu0 %v4642
    %5204 = vmatprep.subr.bf16.mxu0 %v4647
    %5205 = vmatpush1.bf16.msra.mxu0 %v4646
    %5206 = vmatprep.subr.bf16.mxu0 %v4651
    %5207 = vmatpush1.bf16.msra.mxu0 %v4650
    %5208 = vmatprep.subr.bf16.mxu0 %v4655
    %5209 = vmatpush1.bf16.msra.mxu0 %v4654
    %5210 = vmatprep.subr.bf16.mxu0 %v4659
    %5211 = vmatpush1.bf16.msra.mxu0 %v4658
    %5212 = vmatprep.subr.bf16.mxu0 %v4663
    %5213 = vmatpush1.bf16.msra.mxu0 %v4662
    %5214 = vmatprep.subr.bf16.mxu0 %v4667
    %5215 = vmatpush1.bf16.msra.mxu0 %v4666
    %5216 = vmatprep.subr.bf16.mxu0 0
    %5217 = vmatpush1.bf16.msra.mxu0 0
    %5218 = vmatprep.subr.bf16.mxu0 0
    %5219 = vmatpush1.bf16.msra.mxu0 0
    %5220 = vmatprep.subr.bf16.mxu0 0
    %5221 = vmatpush1.bf16.msra.mxu0 0
    %5222 = vmatprep.subr.bf16.mxu0 0
    %5223 = vmatpush1.bf16.msra.mxu0 0
    %5224 = vmatprep.subr.bf16.mxu0 0
    %5225 = vmatpush1.bf16.msra.mxu0 0
    %5226 = vmatprep.subr.bf16.mxu0 0
    %5227 = vmatpush1.bf16.msra.mxu0 0
    %5228 = vmatprep.subr.bf16.mxu0 0
    %5229 = vmatpush1.bf16.msra.mxu0 0
    %5230 = vmatprep.subr.bf16.mxu0 0
    %5231 = vmatpush1.bf16.msra.mxu0 0
    %5232 = vmatprep.mubr.bf16.mxu0 0
    %5233 = vmatmul.mubr.bf16.gmra.mrb[0].mxu0 %v5198
    %v5234 = vpop.f32.mrb[0].mxu0
    %v5235 = vadd.f32 0.0, %v5234
    %v5236 = vpop.f32.mrb[0].mxu0
    %v5237 = vadd.f32 0.0, %v5236
    %v5238 = vpop.f32.mrb[0].mxu0
    %v5239 = vpop.f32.mrb[0].mxu0
    %5240 = vdwg.mxu0
    %5241 = vmatprep.subr.bf16.mxu0 %v4641
    %5242 = vmatpush1.bf16.msra.mxu0 %v4640
    %5243 = vmatprep.subr.bf16.mxu0 %v4645
    %5244 = vmatpush1.bf16.msra.mxu0 %v4644
    %5245 = vmatprep.subr.bf16.mxu0 %v4649
    %5246 = vmatpush1.bf16.msra.mxu0 %v4648
    %5247 = vmatprep.subr.bf16.mxu0 %v4653
    %5248 = vmatpush1.bf16.msra.mxu0 %v4652
    %5249 = vmatprep.subr.bf16.mxu0 %v4657
    %5250 = vmatpush1.bf16.msra.mxu0 %v4656
    %5251 = vmatprep.subr.bf16.mxu0 %v4661
    %5252 = vmatpush1.bf16.msra.mxu0 %v4660
    %5253 = vmatprep.subr.bf16.mxu0 %v4665
    %5254 = vmatpush1.bf16.msra.mxu0 %v4664
    %5255 = vmatprep.subr.bf16.mxu0 %v4669
    %5256 = vmatpush1.bf16.msra.mxu0 %v4668
    %5257 = vmatprep.subr.bf16.mxu0 0
    %5258 = vmatpush1.bf16.msra.mxu0 0
    %5259 = vmatprep.subr.bf16.mxu0 0
    %5260 = vmatpush1.bf16.msra.mxu0 0
    %5261 = vmatprep.subr.bf16.mxu0 0
    %5262 = vmatpush1.bf16.msra.mxu0 0
    %5263 = vmatprep.subr.bf16.mxu0 0
    %5264 = vmatpush1.bf16.msra.mxu0 0
    %5265 = vmatprep.subr.bf16.mxu0 0
    %5266 = vmatpush1.bf16.msra.mxu0 0
    %5267 = vmatprep.subr.bf16.mxu0 0
    %5268 = vmatpush1.bf16.msra.mxu0 0
    %5269 = vmatprep.subr.bf16.mxu0 0
    %5270 = vmatpush1.bf16.msra.mxu0 0
    %5271 = vmatprep.subr.bf16.mxu0 0
    %5272 = vmatpush1.bf16.msra.mxu0 0
    %5273 = vmatprep.mubr.bf16.mxu0 0
    %5274 = vmatmul.mubr.bf16.gmra.mrb[0].mxu0 %v5198
    %v5275 = vpop.f32.mrb[0].mxu0
    %v5276 = vadd.f32 0.0, %v5275
    %v5277 = vpop.f32.mrb[0].mxu0
    %v5278 = vadd.f32 0.0, %v5277
    %v5279 = vpop.f32.mrb[0].mxu0
    %v5280 = vpop.f32.mrb[0].mxu0
    %5281 = vdwg.mxu0
    %v5282 = vadd.f32 %v4420, %v5235
    %v5283 = vadd.f32 %v4422, %v5237
    %v5284 = vadd.f32 %v4506, %v5276
    %v5285 = vadd.f32 %v4508, %v5278
    %v5286 = vxor.u32 %v5282, 2147483648
    %v5287 = vxor.u32 %v5283, 2147483648
    %v5288 = vxor.u32 %v5285, 2147483648
    %v5289 = vmul.f32 %v5286, 1.442695
    %v5290 = vpow.pop %v5289
    %v5291 = vmul.f32 %v5287, 1.442695
    %v5292 = vpow.pop %v5291
    %v5293 = vmul.f32 %v5288, 1.442695
    %v5294 = vpow.pop %v5293
    %v5295 = vadd.f32 %v5290, 1.0
    %v5296 = vadd.f32 %v5292, 1.0
    %v5297 = vadd.f32 %v5294, 1.0
    %v5298 = vrcp.pop %v5295
    %v5299 = vmul.f32 1.0, %v5298
    %v5300 = vrcp.pop %v5296
    %v5301 = vmul.f32 1.0, %v5300
    %v5302 = vrcp.pop %v5297
    %v5303 = vmul.f32 1.0, %v5302
    %v5304 = vtanh.pop %v5284
    %v5306 = vrot.slane %v5193, 6
    %v5308 = vmul.f32 %v5301, %v5306
    %v5309 = vmul.f32 %v5299, %v5304
    %v5310 = vadd.f32 %v5308, %v5309
    %v5311 = vtanh.pop %v5310
    %v5312 = vmul.f32 %v5303, %v5311
    %v5313 = vpack.c.bf16 %v5312, %v5312
    %5314 = vmatprep.subr.bf16.mxu0 %v4639
    %5315 = vmatpush1.bf16.msra.mxu0 %v4638
    %5316 = vmatprep.subr.bf16.mxu0 %v4643
    %5317 = vmatpush1.bf16.msra.mxu0 %v4642
    %5318 = vmatprep.subr.bf16.mxu0 %v4647
    %5319 = vmatpush1.bf16.msra.mxu0 %v4646
    %5320 = vmatprep.subr.bf16.mxu0 %v4651
    %5321 = vmatpush1.bf16.msra.mxu0 %v4650
    %5322 = vmatprep.subr.bf16.mxu0 %v4655
    %5323 = vmatpush1.bf16.msra.mxu0 %v4654
    %5324 = vmatprep.subr.bf16.mxu0 %v4659
    %5325 = vmatpush1.bf16.msra.mxu0 %v4658
    %5326 = vmatprep.subr.bf16.mxu0 %v4663
    %5327 = vmatpush1.bf16.msra.mxu0 %v4662
    %5328 = vmatprep.subr.bf16.mxu0 %v4667
    %5329 = vmatpush1.bf16.msra.mxu0 %v4666
    %5330 = vmatprep.subr.bf16.mxu0 0
    %5331 = vmatpush1.bf16.msra.mxu0 0
    %5332 = vmatprep.subr.bf16.mxu0 0
    %5333 = vmatpush1.bf16.msra.mxu0 0
    %5334 = vmatprep.subr.bf16.mxu0 0
    %5335 = vmatpush1.bf16.msra.mxu0 0
    %5336 = vmatprep.subr.bf16.mxu0 0
    %5337 = vmatpush1.bf16.msra.mxu0 0
    %5338 = vmatprep.subr.bf16.mxu0 0
    %5339 = vmatpush1.bf16.msra.mxu0 0
    %5340 = vmatprep.subr.bf16.mxu0 0
    %5341 = vmatpush1.bf16.msra.mxu0 0
    %5342 = vmatprep.subr.bf16.mxu0 0
    %5343 = vmatpush1.bf16.msra.mxu0 0
    %5344 = vmatprep.subr.bf16.mxu0 0
    %5345 = vmatpush1.bf16.msra.mxu0 0
    %5346 = vmatprep.mubr.bf16.mxu0 0
    %5347 = vmatmul.mubr.bf16.gmra.mrb[0].mxu0 %v5313
    %v5348 = vpop.f32.mrb[0].mxu0
    %v5349 = vadd.f32 0.0, %v5348
    %v5350 = vpop.f32.mrb[0].mxu0
    %v5351 = vadd.f32 0.0, %v5350
    %v5352 = vpop.f32.mrb[0].mxu0
    %v5353 = vpop.f32.mrb[0].mxu0
    %5354 = vdwg.mxu0
    %5355 = vmatprep.subr.bf16.mxu0 %v4641
    %5356 = vmatpush1.bf16.msra.mxu0 %v4640
    %5357 = vmatprep.subr.bf16.mxu0 %v4645
    %5358 = vmatpush1.bf16.msra.mxu0 %v4644
    %5359 = vmatprep.subr.bf16.mxu0 %v4649
    %5360 = vmatpush1.bf16.msra.mxu0 %v4648
    %5361 = vmatprep.subr.bf16.mxu0 %v4653
    %5362 = vmatpush1.bf16.msra.mxu0 %v4652
    %5363 = vmatprep.subr.bf16.mxu0 %v4657
    %5364 = vmatpush1.bf16.msra.mxu0 %v4656
    %5365 = vmatprep.subr.bf16.mxu0 %v4661
    %5366 = vmatpush1.bf16.msra.mxu0 %v4660
    %5367 = vmatprep.subr.bf16.mxu0 %v4665
    %5368 = vmatpush1.bf16.msra.mxu0 %v4664
    %5369 = vmatprep.subr.bf16.mxu0 %v4669
    %5370 = vmatpush1.bf16.msra.mxu0 %v4668
    %5371 = vmatprep.subr.bf16.mxu0 0
    %5372 = vmatpush1.bf16.msra.mxu0 0
    %5373 = vmatprep.subr.bf16.mxu0 0
    %5374 = vmatpush1.bf16.msra.mxu0 0
    %5375 = vmatprep.subr.bf16.mxu0 0
    %5376 = vmatpush1.bf16.msra.mxu0 0
    %5377 = vmatprep.subr.bf16.mxu0 0
    %5378 = vmatpush1.bf16.msra.mxu0 0
    %5379 = vmatprep.subr.bf16.mxu0 0
    %5380 = vmatpush1.bf16.msra.mxu0 0
    %5381 = vmatprep.subr.bf16.mxu0 0
    %5382 = vmatpush1.bf16.msra.mxu0 0
    %5383 = vmatprep.subr.bf16.mxu0 0
    %5384 = vmatpush1.bf16.msra.mxu0 0
    %5385 = vmatprep.subr.bf16.mxu0 0
    %5386 = vmatpush1.bf16.msra.mxu0 0
    %5387 = vmatprep.mubr.bf16.mxu0 0
    %5388 = vmatmul.mubr.bf16.gmra.mrb[0].mxu0 %v5313
    %v5389 = vpop.f32.mrb[0].mxu0
    %v5390 = vadd.f32 0.0, %v5389
    %v5391 = vpop.f32.mrb[0].mxu0
    %v5392 = vadd.f32 0.0, %v5391
    %v5393 = vpop.f32.mrb[0].mxu0
    %v5394 = vpop.f32.mrb[0].mxu0
    %5395 = vdwg.mxu0
    %v5400 = vrot.slane %v5349, 6
    %v5401 = vrot.slane %v5351, 6
    %v5402 = vrot.slane %v5390, 6
    %v5403 = vrot.slane %v5392, 6
    %v5408 = vadd.f32 %v4420, %v5400
    %v5409 = vadd.f32 %v4422, %v5401
    %v5410 = vadd.f32 %v4506, %v5402
    %v5411 = vadd.f32 %v4508, %v5403
    %v5412 = vxor.u32 %v5408, 2147483648
    %v5413 = vxor.u32 %v5409, 2147483648
    %v5414 = vxor.u32 %v5411, 2147483648
    %v5415 = vmul.f32 %v5412, 1.442695
    %v5416 = vpow.pop %v5415
    %v5417 = vmul.f32 %v5413, 1.442695
    %v5418 = vpow.pop %v5417
    %v5419 = vmul.f32 %v5414, 1.442695
    %v5420 = vpow.pop %v5419
    %v5421 = vadd.f32 %v5416, 1.0
    %v5422 = vadd.f32 %v5418, 1.0
    %v5423 = vadd.f32 %v5420, 1.0
    %v5424 = vrcp.pop %v5421
    %v5425 = vmul.f32 1.0, %v5424
    %v5426 = vrcp.pop %v5422
    %v5427 = vmul.f32 1.0, %v5426
    %v5428 = vrcp.pop %v5423
    %v5429 = vmul.f32 1.0, %v5428
    %v5430 = vtanh.pop %v5410
    %v5432 = vrot.slane %v5310, 6
    %v5434 = vmul.f32 %v5427, %v5432
    %v5435 = vmul.f32 %v5425, %v5430
    %v5436 = vadd.f32 %v5434, %v5435
    %v5437 = vtanh.pop %v5436
    %v5438 = vmul.f32 %v5429, %v5437
    %v5439 = vpack.c.bf16 %v5438, %v5438
    %v5441 = vrot.slane %v5439, 1
    %5443 = vmatprep.subr.bf16.mxu0 %v4639
    %5444 = vmatpush1.bf16.msra.mxu0 %v4638
    %5445 = vmatprep.subr.bf16.mxu0 %v4643
    %5446 = vmatpush1.bf16.msra.mxu0 %v4642
    %5447 = vmatprep.subr.bf16.mxu0 %v4647
    %5448 = vmatpush1.bf16.msra.mxu0 %v4646
    %5449 = vmatprep.subr.bf16.mxu0 %v4651
    %5450 = vmatpush1.bf16.msra.mxu0 %v4650
    %5451 = vmatprep.subr.bf16.mxu0 %v4655
    %5452 = vmatpush1.bf16.msra.mxu0 %v4654
    %5453 = vmatprep.subr.bf16.mxu0 %v4659
    %5454 = vmatpush1.bf16.msra.mxu0 %v4658
    %5455 = vmatprep.subr.bf16.mxu0 %v4663
    %5456 = vmatpush1.bf16.msra.mxu0 %v4662
    %5457 = vmatprep.subr.bf16.mxu0 %v4667
    %5458 = vmatpush1.bf16.msra.mxu0 %v4666
    %5459 = vmatprep.subr.bf16.mxu0 0
    %5460 = vmatpush1.bf16.msra.mxu0 0
    %5461 = vmatprep.subr.bf16.mxu0 0
    %5462 = vmatpush1.bf16.msra.mxu0 0
    %5463 = vmatprep.subr.bf16.mxu0 0
    %5464 = vmatpush1.bf16.msra.mxu0 0
    %5465 = vmatprep.subr.bf16.mxu0 0
    %5466 = vmatpush1.bf16.msra.mxu0 0
    %5467 = vmatprep.subr.bf16.mxu0 0
    %5468 = vmatpush1.bf16.msra.mxu0 0
    %5469 = vmatprep.subr.bf16.mxu0 0
    %5470 = vmatpush1.bf16.msra.mxu0 0
    %5471 = vmatprep.subr.bf16.mxu0 0
    %5472 = vmatpush1.bf16.msra.mxu0 0
    %5473 = vmatprep.subr.bf16.mxu0 0
    %5474 = vmatpush1.bf16.msra.mxu0 0
    %5475 = vmatprep.mubr.bf16.mxu0 0
    %5476 = vmatmul.mubr.bf16.gmra.mrb[0].mxu0 %v5441
    %v5477 = vpop.f32.mrb[0].mxu0
    %v5478 = vadd.f32 0.0, %v5477
    %v5479 = vpop.f32.mrb[0].mxu0
    %v5480 = vadd.f32 0.0, %v5479
    %v5481 = vpop.f32.mrb[0].mxu0
    %v5482 = vpop.f32.mrb[0].mxu0
    %5483 = vdwg.mxu0
    %5484 = vmatprep.subr.bf16.mxu0 %v4641
    %5485 = vmatpush1.bf16.msra.mxu0 %v4640
    %5486 = vmatprep.subr.bf16.mxu0 %v4645
    %5487 = vmatpush1.bf16.msra.mxu0 %v4644
    %5488 = vmatprep.subr.bf16.mxu0 %v4649
    %5489 = vmatpush1.bf16.msra.mxu0 %v4648
    %5490 = vmatprep.subr.bf16.mxu0 %v4653
    %5491 = vmatpush1.bf16.msra.mxu0 %v4652
    %5492 = vmatprep.subr.bf16.mxu0 %v4657
    %5493 = vmatpush1.bf16.msra.mxu0 %v4656
    %5494 = vmatprep.subr.bf16.mxu0 %v4661
    %5495 = vmatpush1.bf16.msra.mxu0 %v4660
    %5496 = vmatprep.subr.bf16.mxu0 %v4665
    %5497 = vmatpush1.bf16.msra.mxu0 %v4664
    %5498 = vmatprep.subr.bf16.mxu0 %v4669
    %5499 = vmatpush1.bf16.msra.mxu0 %v4668
    %5500 = vmatprep.subr.bf16.mxu0 0
    %5501 = vmatpush1.bf16.msra.mxu0 0
    %5502 = vmatprep.subr.bf16.mxu0 0
    %5503 = vmatpush1.bf16.msra.mxu0 0
    %5504 = vmatprep.subr.bf16.mxu0 0
    %5505 = vmatpush1.bf16.msra.mxu0 0
    %5506 = vmatprep.subr.bf16.mxu0 0
    %5507 = vmatpush1.bf16.msra.mxu0 0
    %5508 = vmatprep.subr.bf16.mxu0 0
    %5509 = vmatpush1.bf16.msra.mxu0 0
    %5510 = vmatprep.subr.bf16.mxu0 0
    %5511 = vmatpush1.bf16.msra.mxu0 0
    %5512 = vmatprep.subr.bf16.mxu0 0
    %5513 = vmatpush1.bf16.msra.mxu0 0
    %5514 = vmatprep.subr.bf16.mxu0 0
    %5515 = vmatpush1.bf16.msra.mxu0 0
    %5516 = vmatprep.mubr.bf16.mxu0 0
    %5517 = vmatmul.mubr.bf16.gmra.mrb[0].mxu0 %v5441
    %v5518 = vpop.f32.mrb[0].mxu0
    %v5519 = vadd.f32 0.0, %v5518
    %v5520 = vpop.f32.mrb[0].mxu0
    %v5521 = vadd.f32 0.0, %v5520
    %v5522 = vpop.f32.mrb[0].mxu0
    %v5523 = vpop.f32.mrb[0].mxu0
    %5524 = vdwg.mxu0
    %v5529 = vrot.slane %v5478, 4
    %v5530 = vrot.slane %v5480, 4
    %v5531 = vrot.slane %v5519, 4
    %v5532 = vrot.slane %v5521, 4
    %v5537 = vadd.f32 %v4420, %v5529
    %v5538 = vadd.f32 %v4422, %v5530
    %v5539 = vadd.f32 %v4506, %v5531
    %v5540 = vadd.f32 %v4508, %v5532
    %v5541 = vxor.u32 %v5537, 2147483648
    %v5542 = vxor.u32 %v5538, 2147483648
    %v5543 = vxor.u32 %v5540, 2147483648
    %v5544 = vmul.f32 %v5541, 1.442695
    %v5545 = vpow.pop %v5544
    %v5546 = vmul.f32 %v5542, 1.442695
    %v5547 = vpow.pop %v5546
    %v5548 = vmul.f32 %v5543, 1.442695
    %v5549 = vpow.pop %v5548
    %v5550 = vadd.f32 %v5545, 1.0
    %v5551 = vadd.f32 %v5547, 1.0
    %v5552 = vadd.f32 %v5549, 1.0
    %v5553 = vrcp.pop %v5550
    %v5554 = vmul.f32 1.0, %v5553
    %v5555 = vrcp.pop %v5551
    %v5556 = vmul.f32 1.0, %v5555
    %v5557 = vrcp.pop %v5552
    %v5558 = vmul.f32 1.0, %v5557
    %v5559 = vtanh.pop %v5539
    %v5561 = vrot.slane %v5436, 6
    %v5563 = vmul.f32 %v5556, %v5561
    %v5564 = vmul.f32 %v5554, %v5559
    %v5565 = vadd.f32 %v5563, %v5564
    %v5566 = vtanh.pop %v5565
    %v5567 = vmul.f32 %v5558, %v5566
    %v5568 = vpack.c.bf16 %v5567, %v5567
    %v5570 = vrot.slane %v5568, 2
    %5572 = vmatprep.subr.bf16.mxu0 %v4639
    %5573 = vmatpush1.bf16.msra.mxu0 %v4638
    %5574 = vmatprep.subr.bf16.mxu0 %v4643
    %5575 = vmatpush1.bf16.msra.mxu0 %v4642
    %5576 = vmatprep.subr.bf16.mxu0 %v4647
    %5577 = vmatpush1.bf16.msra.mxu0 %v4646
    %5578 = vmatprep.subr.bf16.mxu0 %v4651
    %5579 = vmatpush1.bf16.msra.mxu0 %v4650
    %5580 = vmatprep.subr.bf16.mxu0 %v4655
    %5581 = vmatpush1.bf16.msra.mxu0 %v4654
    %5582 = vmatprep.subr.bf16.mxu0 %v4659
    %5583 = vmatpush1.bf16.msra.mxu0 %v4658
    %5584 = vmatprep.subr.bf16.mxu0 %v4663
    %5585 = vmatpush1.bf16.msra.mxu0 %v4662
    %5586 = vmatprep.subr.bf16.mxu0 %v4667
    %5587 = vmatpush1.bf16.msra.mxu0 %v4666
    %5588 = vmatprep.subr.bf16.mxu0 0
    %5589 = vmatpush1.bf16.msra.mxu0 0
    %5590 = vmatprep.subr.bf16.mxu0 0
    %5591 = vmatpush1.bf16.msra.mxu0 0
    %5592 = vmatprep.subr.bf16.mxu0 0
    %5593 = vmatpush1.bf16.msra.mxu0 0
    %5594 = vmatprep.subr.bf16.mxu0 0
    %5595 = vmatpush1.bf16.msra.mxu0 0
    %5596 = vmatprep.subr.bf16.mxu0 0
    %5597 = vmatpush1.bf16.msra.mxu0 0
    %5598 = vmatprep.subr.bf16.mxu0 0
    %5599 = vmatpush1.bf16.msra.mxu0 0
    %5600 = vmatprep.subr.bf16.mxu0 0
    %5601 = vmatpush1.bf16.msra.mxu0 0
    %5602 = vmatprep.subr.bf16.mxu0 0
    %5603 = vmatpush1.bf16.msra.mxu0 0
    %5604 = vmatprep.mubr.bf16.mxu0 0
    %5605 = vmatmul.mubr.bf16.gmra.mrb[0].mxu0 %v5570
    %v5606 = vpop.f32.mrb[0].mxu0
    %v5607 = vadd.f32 0.0, %v5606
    %v5608 = vpop.f32.mrb[0].mxu0
    %v5609 = vadd.f32 0.0, %v5608
    %v5610 = vpop.f32.mrb[0].mxu0
    %v5611 = vpop.f32.mrb[0].mxu0
    %5612 = vdwg.mxu0
    %5613 = vmatprep.subr.bf16.mxu0 %v4641
    %5614 = vmatpush1.bf16.msra.mxu0 %v4640
    %5615 = vmatprep.subr.bf16.mxu0 %v4645
    %5616 = vmatpush1.bf16.msra.mxu0 %v4644
    %5617 = vmatprep.subr.bf16.mxu0 %v4649
    %5618 = vmatpush1.bf16.msra.mxu0 %v4648
    %5619 = vmatprep.subr.bf16.mxu0 %v4653
    %5620 = vmatpush1.bf16.msra.mxu0 %v4652
    %5621 = vmatprep.subr.bf16.mxu0 %v4657
    %5622 = vmatpush1.bf16.msra.mxu0 %v4656
    %5623 = vmatprep.subr.bf16.mxu0 %v4661
    %5624 = vmatpush1.bf16.msra.mxu0 %v4660
    %5625 = vmatprep.subr.bf16.mxu0 %v4665
    %5626 = vmatpush1.bf16.msra.mxu0 %v4664
    %5627 = vmatprep.subr.bf16.mxu0 %v4669
    %5628 = vmatpush1.bf16.msra.mxu0 %v4668
    %5629 = vmatprep.subr.bf16.mxu0 0
    %5630 = vmatpush1.bf16.msra.mxu0 0
    %5631 = vmatprep.subr.bf16.mxu0 0
    %5632 = vmatpush1.bf16.msra.mxu0 0
    %5633 = vmatprep.subr.bf16.mxu0 0
    %5634 = vmatpush1.bf16.msra.mxu0 0
    %5635 = vmatprep.subr.bf16.mxu0 0
    %5636 = vmatpush1.bf16.msra.mxu0 0
    %5637 = vmatprep.subr.bf16.mxu0 0
    %5638 = vmatpush1.bf16.msra.mxu0 0
    %5639 = vmatprep.subr.bf16.mxu0 0
    %5640 = vmatpush1.bf16.msra.mxu0 0
    %5641 = vmatprep.subr.bf16.mxu0 0
    %5642 = vmatpush1.bf16.msra.mxu0 0
    %5643 = vmatprep.subr.bf16.mxu0 0
    %5644 = vmatpush1.bf16.msra.mxu0 0
    %5645 = vmatprep.mubr.bf16.mxu0 0
    %5646 = vmatmul.mubr.bf16.gmra.mrb[0].mxu0 %v5570
    %v5647 = vpop.f32.mrb[0].mxu0
    %v5648 = vadd.f32 0.0, %v5647
    %v5649 = vpop.f32.mrb[0].mxu0
    %v5650 = vadd.f32 0.0, %v5649
    %v5651 = vpop.f32.mrb[0].mxu0
    %v5652 = vpop.f32.mrb[0].mxu0
    %5653 = vdwg.mxu0
    %v5658 = vrot.slane %v5607, 2
    %v5659 = vrot.slane %v5609, 2
    %v5660 = vrot.slane %v5648, 2
    %v5661 = vrot.slane %v5650, 2
    %v5666 = vadd.f32 %v4420, %v5658
    %v5667 = vadd.f32 %v4422, %v5659
    %v5668 = vadd.f32 %v4506, %v5660
    %v5669 = vadd.f32 %v4508, %v5661
    %v5670 = vxor.u32 %v5666, 2147483648
    %v5671 = vxor.u32 %v5667, 2147483648
    %v5672 = vxor.u32 %v5669, 2147483648
    %v5673 = vmul.f32 %v5670, 1.442695
    %v5674 = vpow.pop %v5673
    %v5675 = vmul.f32 %v5671, 1.442695
    %v5676 = vpow.pop %v5675
    %v5677 = vmul.f32 %v5672, 1.442695
    %v5678 = vpow.pop %v5677
    %v5679 = vadd.f32 %v5674, 1.0
    %v5680 = vadd.f32 %v5676, 1.0
    %v5681 = vadd.f32 %v5678, 1.0
    %v5682 = vrcp.pop %v5679
    %v5683 = vmul.f32 1.0, %v5682
    %v5684 = vrcp.pop %v5680
    %v5685 = vmul.f32 1.0, %v5684
    %v5686 = vrcp.pop %v5681
    %v5687 = vmul.f32 1.0, %v5686
    %v5688 = vtanh.pop %v5668
    %v5690 = vrot.slane %v5565, 6
    %v5692 = vmul.f32 %v5685, %v5690
    %v5693 = vmul.f32 %v5683, %v5688
    %v5694 = vadd.f32 %v5692, %v5693
    %v5695 = vtanh.pop %v5694
    %v5696 = vmul.f32 %v5687, %v5695
    %vm5697 = vcmask 1041408
    %v5698 = vsel %vm5697, %v4811, %v4937
    %vm5699 = vcmask 1043456
    %v5700 = vsel %vm5699, %v5698, %v5066
    %vm5701 = vcmask 1045504
    %v5702 = vsel %vm5701, %v5700, %v5195
    %v5703 = vsel %vm5697, %v5312, %v5438
    %v5704 = vsel %vm5699, %v5703, %v5567
    %v5705 = vsel %vm5701, %v5704, %v5696
    %v5706 = vld [vmem:[%s11] sm:$0xff]
    %v5707 = vld [vmem:[%s11 + $0x8] sm:$0xff]
    %v5708 = vld [vmem:[%s11 + $0x10] sm:$0xff]
    %v5709 = vld [vmem:[%s11 + $0x18] sm:$0xff]
    %v5710 = vld [vmem:[%s11 + $0x20] sm:$0xff]
    %v5711 = vld [vmem:[%s11 + $0x28] sm:$0xff]
    %v5712 = vld [vmem:[%s11 + $0x30] sm:$0xff]
    %v5713 = vld [vmem:[%s11 + $0x38] sm:$0xff]
    %v5714 = vld [vmem:[%s11 + $0x40] sm:$0xff]
    %v5715 = vld [vmem:[%s11 + $0x48] sm:$0xff]
    %v5716 = vld [vmem:[%s11 + $0x50] sm:$0xff]
    %v5717 = vld [vmem:[%s11 + $0x58] sm:$0xff]
    %v5718 = vld [vmem:[%s11 + $0x60] sm:$0xff]
    %v5719 = vld [vmem:[%s11 + $0x68] sm:$0xff]
    %v5720 = vld [vmem:[%s11 + $0x70] sm:$0xff]
    %v5721 = vld [vmem:[%s11 + $0x78] sm:$0xff]
    %v5722 = vld [vmem:[%s12] sm:$0x1]
    %v5724 = vlaneseq
    %v5725 = vshrl.u32 %v5724, 7
    %v5726 = vsub.s32 0, %v5725
    %v5727 = vrot.slane %v5722, %v5726
    %5729 = vmatprep.subr.mxu0 0.0
    %5730 = vmatpush1.msra.mxu0 %v5706
    %5731 = vmatprep.subr.mxu0 0.0
    %5732 = vmatpush1.msra.mxu0 %v5707
    %5733 = vmatprep.subr.mxu0 0.0
    %5734 = vmatpush1.msra.mxu0 %v5708
    %5735 = vmatprep.subr.mxu0 0.0
    %5736 = vmatpush1.msra.mxu0 %v5709
    %5737 = vmatprep.subr.mxu0 0.0
    %5738 = vmatpush1.msra.mxu0 %v5710
    %5739 = vmatprep.subr.mxu0 0.0
    %5740 = vmatpush1.msra.mxu0 %v5711
    %5741 = vmatprep.subr.mxu0 0.0
    %5742 = vmatpush1.msra.mxu0 %v5712
    %5743 = vmatprep.subr.mxu0 0.0
    %5744 = vmatpush1.msra.mxu0 %v5713
    %5745 = vmatprep.subr.mxu0 0.0
    %5746 = vmatpush1.msra.mxu0 %v5714
    %5747 = vmatprep.subr.mxu0 0.0
    %5748 = vmatpush1.msra.mxu0 %v5715
    %5749 = vmatprep.subr.mxu0 0.0
    %5750 = vmatpush1.msra.mxu0 %v5716
    %5751 = vmatprep.subr.mxu0 0.0
    %5752 = vmatpush1.msra.mxu0 %v5717
    %5753 = vmatprep.subr.mxu0 0.0
    %5754 = vmatpush1.msra.mxu0 %v5718
    %5755 = vmatprep.subr.mxu0 0.0
    %5756 = vmatpush1.msra.mxu0 %v5719
    %5757 = vmatprep.subr.mxu0 0.0
    %5758 = vmatpush1.msra.mxu0 %v5720
    %5759 = vmatprep.subr.mxu0 0.0
    %5760 = vmatpush1.msra.mxu0 %v5721
    %5761 = vmatprep.subr.mxu0 0.0
    %5762 = vmatpush1.msra.mxu0 0.0
    %5763 = vmatprep.subr.mxu0 0.0
    %5764 = vmatpush1.msra.mxu0 0.0
    %5765 = vmatprep.subr.mxu0 0.0
    %5766 = vmatpush1.msra.mxu0 0.0
    %5767 = vmatprep.subr.mxu0 0.0
    %5768 = vmatpush1.msra.mxu0 0.0
    %5769 = vmatprep.subr.mxu0 0.0
    %5770 = vmatpush1.msra.mxu0 0.0
    %5771 = vmatprep.subr.mxu0 0.0
    %5772 = vmatpush1.msra.mxu0 0.0
    %5773 = vmatprep.subr.mxu0 0.0
    %5774 = vmatpush1.msra.mxu0 0.0
    %5775 = vmatprep.subr.mxu0 0.0
    %5776 = vmatpush1.msra.mxu0 0.0
    %5777 = vmatprep.subr.mxu0 0.0
    %5778 = vmatpush1.msra.mxu0 0.0
    %5779 = vmatprep.subr.mxu0 0.0
    %5780 = vmatpush1.msra.mxu0 0.0
    %5781 = vmatprep.subr.mxu0 0.0
    %5782 = vmatpush1.msra.mxu0 0.0
    %5783 = vmatprep.subr.mxu0 0.0
    %5784 = vmatpush1.msra.mxu0 0.0
    %5785 = vmatprep.subr.mxu0 0.0
    %5786 = vmatpush1.msra.mxu0 0.0
    %5787 = vmatprep.subr.mxu0 0.0
    %5788 = vmatpush1.msra.mxu0 0.0
    %5789 = vmatprep.subr.mxu0 0.0
    %5790 = vmatpush1.msra.mxu0 0.0
    %5791 = vmatprep.subr.mxu0 0.0
    %5792 = vmatpush1.msra.mxu0 0.0
    %5793 = vmatprep.mubr.f32.mxu0 0.0
    %5794 = vmatmul.mubr.f32.gmra.mrb[0].mxu0 %v5702
    %v5795 = vpop.f32.mrb[0].mxu0
    %v5796 = vadd.f32 %v5727, %v5795
    %v5797 = vpop.f32.mrb[0].mxu0
    %5798 = vmatprep.mubr.f32.mxu0 0.0
    %5799 = vmatmul.mubr.f32.gmra.mrb[0].mxu0 %v5705
    %v5800 = vpop.f32.mrb[0].mxu0
    %v5801 = vadd.f32 %v5727, %v5800
    %v5802 = vpop.f32.mrb[0].mxu0
    %5803 = vdwg.mxu0
    %v5804 = vxor.u32 %v5796, 2147483648
    %v5805 = vxor.u32 %v5801, 2147483648
    %v5806 = vmul.f32 %v5804, 1.442695
    %v5807 = vpow.pop %v5806
    %v5808 = vmul.f32 %v5805, 1.442695
    %v5809 = vpow.pop %v5808
    %v5810 = vadd.f32 %v5807, 1.0
    %v5811 = vadd.f32 %v5809, 1.0
    %v5812 = vrcp.pop %v5810
    %v5813 = vmul.f32 1.0, %v5812
    %v5814 = vrcp.pop %v5811
    %v5815 = vmul.f32 1.0, %v5814
    %v5817 = vrot.slane %v5813, 2
    %v5819 = vadd.f32 %v5813, %v5817
    %v5820 = vrot.slane %v5813, 4
    %v5822 = vadd.f32 %v5819, %v5820
    %v5823 = vrot.slane %v5813, 6
    %v5825 = vadd.f32 %v5822, %v5823
    %v5826 = vadd.f32 %v5825, %v5815
    %v5828 = vrot.slane %v5815, 2
    %v5830 = vadd.f32 %v5826, %v5828
    %v5831 = vrot.slane %v5815, 4
    %v5833 = vadd.f32 %v5830, %v5831
    %v5834 = vrot.slane %v5815, 6
    %v5836 = vadd.f32 %v5833, %v5834
    %v5837 = vmul.f32 %v5836, 0.125
    %vm5838 = vcmask 33792
    %5839 = vst.msk [vmem:[#allocation2] sm:$0x3] %vm5838, %v5837
    // Predicated region
    $region54: #{bio_model_lstm_forward.1} parent=1 // pred_check
      _
    $region55: #{bio_model_lstm_forward.1} parent=1 // pred_check_branch
      %5841 = sbr.rel (0) target = $region57
    $region56: #{bio_model_lstm_forward.1} parent=1 // pred_region
      %s5843 = ssub.s32 32, 32
      %5844 = vsyncadd [#allocation3], %s5843
      %s5846 = sshll.u32 [#allocation2], 4
      %s5847 = int_to_ptr.vmem [resolvable:$true] %s5846
      %5849 = dma.vmem_to_hbm [thread:$0]  %s5847, 32, %s13, [#allocation3]
    $region57: #{bio_model_lstm_forward.1} parent=1 // pred_fallthru
      _
    // Predicated region
    $region58: #{bio_model_lstm_forward.1} parent=1 // pred_check
      _
    $region59: #{bio_model_lstm_forward.1} parent=1 // pred_check_branch
      %5851 = sbr.rel (0) target = $region61
    $region60: #{bio_model_lstm_forward.1} parent=1 // pred_region
      %5852 = dma.done [#allocation3], 32
    $region61: #{bio_model_lstm_forward.1} parent=1 // pred_fallthru
      _
    %5853 = vsyncpa [#allocation3], 1

</llo_original>
